<compile_context>
chip_gen: v5e
topology: v5e:2x2
jax: 0.10.0
libtpu: 0.0.40
codegen_flags: <defaults>
</compile_context>

<pallas_src>
import math
import jax
import jax.numpy as jnp
from jax.experimental import pallas as pl
from jax.experimental.pallas import tpu as pltpu


LAYER_DIMS = [
    (784, 128), (128, 64), (64, 32), (32, 12),      # encoder
    (12, 32), (32, 64), (64, 128), (128, 784),      # decoder
]
LANE = 128
DEFAULT_TILE_B = 128   # use 256 on v6e / v7x (256-row MXU)


def _padded(d):
    # pad narrow hidden dims up to a full 128-lane vreg; 128/784 are left as-is
    return d if d >= LANE else LANE


# ----------------------------------------------------------------------------
# Kernel: full forward pass (encoder -> +noise -> decoder) for one batch tile.
# ----------------------------------------------------------------------------
def autoencoder_kernel(
    x_ref, noise_ref,
    w1, w2, w3, w4, w5, w6, w7, w8,     # bf16 weights, (in, out), padded to 128 lanes
    bias_ref,                           # (8, 128) f32: biases of layers 1..7 (row 7 unused)
    b8_ref,                             # (1, 784) f32: bias of layer 8
    out_x_ref, out_z_ref,
):
    f32 = jnp.float32

    def mm(h, w_ref):
        # cast activations to the weight dtype (bf16) for the native MXU path,
        # accumulate in f32
        return jnp.dot(h.astype(w_ref.dtype), w_ref[...], preferred_element_type=f32)

    x = x_ref[...]
    b = bias_ref[...]   # (8, 128) f32

    # ---- encoder: Linear/ReLU x3, Linear(32->12) ----
    h = jnp.maximum(mm(x, w1) + b[0], 0.0)
    h = jnp.maximum(mm(h, w2) + b[1], 0.0)
    h = jnp.maximum(mm(h, w3) + b[2], 0.0)
    z = mm(h, w4) + b[3]                 # padded lanes (12..127) are exactly zero

    # ---- add Gaussian noise to the latent (torch.normal(mean=0, std=1)) ----
    z = z + noise_ref[...]               # noise padded with zeros in lanes 12..127
    out_z_ref[...] = z                   # lane-dense (tile_b, 128) store; wrapper slices :12

    # ---- decoder: ReLU, Linear(12,32), Linear(32,64), ReLU, Linear(64,128),
    #               ReLU, Linear(128,784), Tanh ----
    d = jnp.maximum(z, 0.0)
    d = mm(d, w5) + b[4]
    d = mm(d, w6) + b[5]
    d = jnp.maximum(d, 0.0)
    d = mm(d, w7) + b[6]
    d = jnp.maximum(d, 0.0)
    d = mm(d, w8) + b8_ref[...]
    out_x_ref[...] = jnp.tanh(d)


# ----------------------------------------------------------------------------
# Wrapper: batch-tiled grid; weights/biases VMEM-resident via constant index_map.
# ----------------------------------------------------------------------------
def autoencoder_forward(x, noise, params, *, tile_b=DEFAULT_TILE_B):
    weights, bias_pack, b8 = params
    B, D_in = x.shape
    latent = noise.shape[1]

    num_tiles = pl.cdiv(B, tile_b)
    B_pad = num_tiles * tile_b

    # pad batch to a multiple of tile_b and noise lanes to 128 (zeros -> no effect)
    x_p = jnp.pad(x, ((0, B_pad - B), (0, 0)))
    noise_p = jnp.pad(noise, ((0, B_pad - B), (0, LANE - latent)))

    operands = [x_p, noise_p] + list(weights) + [bias_pack, b8]

    in_specs = [
        pl.BlockSpec((tile_b, D_in), lambda i: (i, 0)),     # x tile
        pl.BlockSpec((tile_b, LANE), lambda i: (i, 0)),     # noise tile
    ]
    for w in weights:
        in_specs.append(pl.BlockSpec(w.shape, lambda i: (0, 0)))       # resident weights
    in_specs.append(pl.BlockSpec(bias_pack.shape, lambda i: (0, 0)))   # packed biases
    in_specs.append(pl.BlockSpec(b8.shape, lambda i: (0, 0)))          # layer-8 bias

    out_specs = (
        pl.BlockSpec((tile_b, D_in), lambda i: (i, 0)),     # reconstruction tile
        pl.BlockSpec((tile_b, LANE), lambda i: (i, 0)),     # latent slab tile (128 lanes)
    )
    out_shape = (
        jax.ShapeDtypeStruct((B_pad, D_in), jnp.float32),
        jax.ShapeDtypeStruct((B_pad, LANE), jnp.float32),
    )

    out_x, out_z = pl.pallas_call(
        autoencoder_kernel,
        out_shape=out_shape,
        grid=(num_tiles,),
        in_specs=in_specs,
        out_specs=out_specs,
        compiler_params=pltpu.CompilerParams(
            dimension_semantics=("parallel",),   # shard batch tiles across v7x's 2 TCs
        ),
    )(*operands)

    # strip batch padding and the padded latent lanes
    return out_x[:B], out_z[:B, :latent]


# ----------------------------------------------------------------------------
# Deterministic parameter init (PyTorch nn.Linear default: U(-1/sqrt(fan_in), ...)),
# zero-padded to 128-lane hidden dims, weights cast to bf16, biases packed.
# ----------------------------------------------------------------------------
def init_params(key, weight_dtype=jnp.bfloat16):
    weights = []
    biases_padded = []
    for (fan_in, fan_out) in LAYER_DIMS:
        key, kw, kb = jax.random.split(key, 3)
        bound = 1.0 / math.sqrt(fan_in)
        w = jax.random.uniform(kw, (fan_in, fan_out), jnp.float32, -bound, bound)
        bvec = jax.random.uniform(kb, (fan_out,), jnp.float32, -bound, bound)

        pi, po = _padded(fan_in), _padded(fan_out)
        w_pad = jnp.zeros((pi, po), jnp.float32).at[:fan_in, :fan_out].set(w)
        b_pad = jnp.zeros((po,), jnp.float32).at[:fan_out].set(bvec)

        weights.append(w_pad.astype(weight_dtype))
        biases_padded.append(b_pad)

    # pack the 7 narrow biases into one (8, 128) operand; layer-8 bias stays separate
    bias_pack = jnp.zeros((8, LANE), jnp.float32)
    for i in range(7):
        bias_pack = bias_pack.at[i, :].set(biases_padded[i])
    b8 = biases_padded[7].reshape(1, 784)

    return weights, bias_pack, b8


# ----------------------------------------------------------------------------
# Pure-JAX reference (mirrors the kernel's bf16-weight / f32-accumulate numerics).
# ----------------------------------------------------------------------------
def ref_forward(x, noise, params):
    weights, bias_pack, b8 = params
    f32 = jnp.float32

    def mm(h, w):
        return jnp.dot(h.astype(w.dtype), w, preferred_element_type=f32)

    b = [bias_pack[i] for i in range(7)] + [b8[0]]
    h = jnp.maximum(mm(x, weights[0]) + b[0], 0.0)
    h = jnp.maximum(mm(h, weights[1]) + b[1], 0.0)
    h = jnp.maximum(mm(h, weights[2]) + b[2], 0.0)
    z = mm(h, weights[3]) + b[3]
    z = z + jnp.pad(noise, ((0, 0), (0, LANE - noise.shape[1])))
    d = jnp.maximum(z, 0.0)
    d = mm(d, weights[4]) + b[4]
    d = mm(d, weights[5]) + b[5]
    d = jnp.maximum(d, 0.0)
    d = mm(d, weights[6]) + b[6]
    d = jnp.maximum(d, 0.0)
    d = mm(d, weights[7]) + b[7]
    return jnp.tanh(d), z[:, :noise.shape[1]]


if __name__ == "__main__":
    key = jax.random.PRNGKey(0)
    key, k_params, k_x, k_noise = jax.random.split(key, 4)

    B = 256                      # two 128-row batch tiles -> exercises the grid/pipelining
    params = init_params(k_params)
    x = jax.random.normal(k_x, (B, 784), jnp.float32)
    # torch.normal(mean=zeros, std=ones) equivalent (different RNG stream, same distribution)
    # TODO(synk): noise is generated host-side and passed in (matches the torch module's
    # per-call normal sample) rather than via pltpu.prng_* inside the kernel.
    noise = jax.random.normal(k_noise, (B, 12), jnp.float32)

    out_x, out_z = autoencoder_forward(x, noise, params, tile_b=128)
    jax.block_until_ready((out_x, out_z))

    assert out_x.shape == (B, 784) and out_z.shape == (B, 12)

    ref_x, ref_z = ref_forward(x, noise, params)
    assert jnp.allclose(out_z, ref_z, atol=2e-2, rtol=2e-2), "latent mismatch"
    assert jnp.allclose(out_x, ref_x, atol=2e-2, rtol=2e-2), "reconstruction mismatch"

    print("KERNEL_OK")
</pallas_src>

<mosaic_0001>
module attributes {stable_mosaic.version = 11 : i64} {
  func.func @autoencoder_kernel(%arg0: i32, %arg1: memref<128x784xf32, #tpu.memory_space<vmem>>, %arg2: memref<128x128xf32, #tpu.memory_space<vmem>>, %arg3: memref<784x128xbf16, #tpu.memory_space<vmem>>, %arg4: memref<128x128xbf16, #tpu.memory_space<vmem>>, %arg5: memref<128x128xbf16, #tpu.memory_space<vmem>>, %arg6: memref<128x128xbf16, #tpu.memory_space<vmem>>, %arg7: memref<128x128xbf16, #tpu.memory_space<vmem>>, %arg8: memref<128x128xbf16, #tpu.memory_space<vmem>>, %arg9: memref<128x128xbf16, #tpu.memory_space<vmem>>, %arg10: memref<128x784xbf16, #tpu.memory_space<vmem>>, %arg11: memref<8x128xf32, #tpu.memory_space<vmem>>, %arg12: memref<1x784xf32, #tpu.memory_space<vmem>>, %arg13: memref<128x784xf32, #tpu.memory_space<vmem>>, %arg14: memref<128x128xf32, #tpu.memory_space<vmem>>) attributes {dimension_semantics = [#tpu.dimension_semantics<parallel>], iteration_bounds = array<i64: 2>, scalar_prefetch = 0 : i64, scratch_operands = 0 : i64, tpu.core_type = #tpu.core_type<tc>, window_params = [{transform_indices = @transform_0, window_bounds = array<i64: 128, 784>}, {transform_indices = @transform_1, window_bounds = array<i64: 128, 128>}, {pipeline_mode = #tpu.pipeline_mode<synchronous>, transform_indices = @transform_2, window_bounds = array<i64: 784, 128>}, {pipeline_mode = #tpu.pipeline_mode<synchronous>, transform_indices = @transform_3, window_bounds = array<i64: 128, 128>}, {pipeline_mode = #tpu.pipeline_mode<synchronous>, transform_indices = @transform_4, window_bounds = array<i64: 128, 128>}, {pipeline_mode = #tpu.pipeline_mode<synchronous>, transform_indices = @transform_5, window_bounds = array<i64: 128, 128>}, {pipeline_mode = #tpu.pipeline_mode<synchronous>, transform_indices = @transform_6, window_bounds = array<i64: 128, 128>}, {pipeline_mode = #tpu.pipeline_mode<synchronous>, transform_indices = @transform_7, window_bounds = array<i64: 128, 128>}, {pipeline_mode = #tpu.pipeline_mode<synchronous>, transform_indices = @transform_8, window_bounds = array<i64: 128, 128>}, {pipeline_mode = #tpu.pipeline_mode<synchronous>, transform_indices = @transform_9, window_bounds = array<i64: 128, 784>}, {pipeline_mode = #tpu.pipeline_mode<synchronous>, transform_indices = @transform_10, window_bounds = array<i64: 8, 128>}, {pipeline_mode = #tpu.pipeline_mode<synchronous>, transform_indices = @transform_11, window_bounds = array<i64: 1, 784>}, {transform_indices = @transform_12, window_bounds = array<i64: 128, 784>}, {transform_indices = @transform_13, window_bounds = array<i64: 128, 128>}]} {
    %c0 = arith.constant 0 : index
    %c0_0 = arith.constant 0 : index
    %0 = vector.load %arg1[%c0, %c0_0] : memref<128x784xf32, #tpu.memory_space<vmem>>, vector<128x784xf32>
    %c0_1 = arith.constant 0 : index
    %c0_2 = arith.constant 0 : index
    %1 = vector.load %arg11[%c0_1, %c0_2] : memref<8x128xf32, #tpu.memory_space<vmem>>, vector<8x128xf32>
    %2 = arith.truncf %0 : vector<128x784xf32> to vector<128x784xbf16>
    %c0_3 = arith.constant 0 : index
    %c0_4 = arith.constant 0 : index
    %3 = vector.load %arg3[%c0_3, %c0_4] : memref<784x128xbf16, #tpu.memory_space<vmem>>, vector<784x128xbf16>
    %cst = arith.constant dense<0.000000e+00> : vector<128x128xf32>
    %4 = tpu.matmul %2, %3, %cst {dimension_numbers = #tpu.dot_dimension_numbers<[1], [0], [0], [1], [0, 0, 1, 1], [], []>} : vector<128x784xbf16>, vector<784x128xbf16>, vector<128x128xf32> -> vector<128x128xf32>
    %5 = vector.extract_strided_slice %1 {offsets = [0, 0], sizes = [1, 128], strides = [1, 1]} : vector<8x128xf32> to vector<1x128xf32>
    %6 = vector.shape_cast %5 : vector<1x128xf32> to vector<128xf32>
    %7 = vector.shape_cast %6 : vector<128xf32> to vector<1x128xf32>
    %8 = vector.broadcast %7 : vector<1x128xf32> to vector<128x128xf32>
    %9 = arith.addf %4, %8 : vector<128x128xf32>
    %cst_5 = arith.constant 0.000000e+00 : f32
    %10 = vector.broadcast %cst_5 : f32 to vector<128x128xf32>
    %11 = arith.maximumf %9, %10 : vector<128x128xf32>
    %12 = arith.truncf %11 : vector<128x128xf32> to vector<128x128xbf16>
    %c0_6 = arith.constant 0 : index
    %c0_7 = arith.constant 0 : index
    %13 = vector.load %arg4[%c0_6, %c0_7] : memref<128x128xbf16, #tpu.memory_space<vmem>>, vector<128x128xbf16>
    %cst_8 = arith.constant dense<0.000000e+00> : vector<128x128xf32>
    %14 = tpu.matmul %12, %13, %cst_8 {dimension_numbers = #tpu.dot_dimension_numbers<[1], [0], [0], [1], [0, 0, 1, 1], [], []>} : vector<128x128xbf16>, vector<128x128xbf16>, vector<128x128xf32> -> vector<128x128xf32>
    %15 = vector.extract_strided_slice %1 {offsets = [1, 0], sizes = [1, 128], strides = [1, 1]} : vector<8x128xf32> to vector<1x128xf32>
    %16 = vector.shape_cast %15 : vector<1x128xf32> to vector<128xf32>
    %17 = vector.shape_cast %16 : vector<128xf32> to vector<1x128xf32>
    %18 = vector.broadcast %17 : vector<1x128xf32> to vector<128x128xf32>
    %19 = arith.addf %14, %18 : vector<128x128xf32>
    %cst_9 = arith.constant 0.000000e+00 : f32
    %20 = vector.broadcast %cst_9 : f32 to vector<128x128xf32>
    %21 = arith.maximumf %19, %20 : vector<128x128xf32>
    %22 = arith.truncf %21 : vector<128x128xf32> to vector<128x128xbf16>
    %c0_10 = arith.constant 0 : index
    %c0_11 = arith.constant 0 : index
    %23 = vector.load %arg5[%c0_10, %c0_11] : memref<128x128xbf16, #tpu.memory_space<vmem>>, vector<128x128xbf16>
    %cst_12 = arith.constant dense<0.000000e+00> : vector<128x128xf32>
    %24 = tpu.matmul %22, %23, %cst_12 {dimension_numbers = #tpu.dot_dimension_numbers<[1], [0], [0], [1], [0, 0, 1, 1], [], []>} : vector<128x128xbf16>, vector<128x128xbf16>, vector<128x128xf32> -> vector<128x128xf32>
    %25 = vector.extract_strided_slice %1 {offsets = [2, 0], sizes = [1, 128], strides = [1, 1]} : vector<8x128xf32> to vector<1x128xf32>
    %26 = vector.shape_cast %25 : vector<1x128xf32> to vector<128xf32>
    %27 = vector.shape_cast %26 : vector<128xf32> to vector<1x128xf32>
    %28 = vector.broadcast %27 : vector<1x128xf32> to vector<128x128xf32>
    %29 = arith.addf %24, %28 : vector<128x128xf32>
    %cst_13 = arith.constant 0.000000e+00 : f32
    %30 = vector.broadcast %cst_13 : f32 to vector<128x128xf32>
    %31 = arith.maximumf %29, %30 : vector<128x128xf32>
    %32 = arith.truncf %31 : vector<128x128xf32> to vector<128x128xbf16>
    %c0_14 = arith.constant 0 : index
    %c0_15 = arith.constant 0 : index
    %33 = vector.load %arg6[%c0_14, %c0_15] : memref<128x128xbf16, #tpu.memory_space<vmem>>, vector<128x128xbf16>
    %cst_16 = arith.constant dense<0.000000e+00> : vector<128x128xf32>
    %34 = tpu.matmul %32, %33, %cst_16 {dimension_numbers = #tpu.dot_dimension_numbers<[1], [0], [0], [1], [0, 0, 1, 1], [], []>} : vector<128x128xbf16>, vector<128x128xbf16>, vector<128x128xf32> -> vector<128x128xf32>
    %35 = vector.extract_strided_slice %1 {offsets = [3, 0], sizes = [1, 128], strides = [1, 1]} : vector<8x128xf32> to vector<1x128xf32>
    %36 = vector.shape_cast %35 : vector<1x128xf32> to vector<128xf32>
    %37 = vector.shape_cast %36 : vector<128xf32> to vector<1x128xf32>
    %38 = vector.broadcast %37 : vector<1x128xf32> to vector<128x128xf32>
    %39 = arith.addf %34, %38 : vector<128x128xf32>
    %c0_17 = arith.constant 0 : index
    %c0_18 = arith.constant 0 : index
    %40 = vector.load %arg2[%c0_17, %c0_18] : memref<128x128xf32, #tpu.memory_space<vmem>>, vector<128x128xf32>
    %41 = arith.addf %39, %40 : vector<128x128xf32>
    %c0_19 = arith.constant 0 : index
    %c0_20 = arith.constant 0 : index
    %42 = vector.load %arg14[%c0_19, %c0_20] : memref<128x128xf32, #tpu.memory_space<vmem>>, vector<128x128xf32>
    tpu.vector_store %arg14[%c0_19, %c0_20], %41 {strides = array<i32>} : memref<128x128xf32, #tpu.memory_space<vmem>>, vector<128x128xf32>,
    %cst_21 = arith.constant 0.000000e+00 : f32
    %43 = vector.broadcast %cst_21 : f32 to vector<128x128xf32>
    %44 = arith.maximumf %41, %43 : vector<128x128xf32>
    %45 = arith.truncf %44 : vector<128x128xf32> to vector<128x128xbf16>
    %c0_22 = arith.constant 0 : index
    %c0_23 = arith.constant 0 : index
    %46 = vector.load %arg7[%c0_22, %c0_23] : memref<128x128xbf16, #tpu.memory_space<vmem>>, vector<128x128xbf16>
    %cst_24 = arith.constant dense<0.000000e+00> : vector<128x128xf32>
    %47 = tpu.matmul %45, %46, %cst_24 {dimension_numbers = #tpu.dot_dimension_numbers<[1], [0], [0], [1], [0, 0, 1, 1], [], []>} : vector<128x128xbf16>, vector<128x128xbf16>, vector<128x128xf32> -> vector<128x128xf32>
    %48 = vector.extract_strided_slice %1 {offsets = [4, 0], sizes = [1, 128], strides = [1, 1]} : vector<8x128xf32> to vector<1x128xf32>
    %49 = vector.shape_cast %48 : vector<1x128xf32> to vector<128xf32>
    %50 = vector.shape_cast %49 : vector<128xf32> to vector<1x128xf32>
    %51 = vector.broadcast %50 : vector<1x128xf32> to vector<128x128xf32>
    %52 = arith.addf %47, %51 : vector<128x128xf32>
    %53 = arith.truncf %52 : vector<128x128xf32> to vector<128x128xbf16>
    %c0_25 = arith.constant 0 : index
    %c0_26 = arith.constant 0 : index
    %54 = vector.load %arg8[%c0_25, %c0_26] : memref<128x128xbf16, #tpu.memory_space<vmem>>, vector<128x128xbf16>
    %cst_27 = arith.constant dense<0.000000e+00> : vector<128x128xf32>
    %55 = tpu.matmul %53, %54, %cst_27 {dimension_numbers = #tpu.dot_dimension_numbers<[1], [0], [0], [1], [0, 0, 1, 1], [], []>} : vector<128x128xbf16>, vector<128x128xbf16>, vector<128x128xf32> -> vector<128x128xf32>
    %56 = vector.extract_strided_slice %1 {offsets = [5, 0], sizes = [1, 128], strides = [1, 1]} : vector<8x128xf32> to vector<1x128xf32>
    %57 = vector.shape_cast %56 : vector<1x128xf32> to vector<128xf32>
    %58 = vector.shape_cast %57 : vector<128xf32> to vector<1x128xf32>
    %59 = vector.broadcast %58 : vector<1x128xf32> to vector<128x128xf32>
    %60 = arith.addf %55, %59 : vector<128x128xf32>
    %cst_28 = arith.constant 0.000000e+00 : f32
    %61 = vector.broadcast %cst_28 : f32 to vector<128x128xf32>
    %62 = arith.maximumf %60, %61 : vector<128x128xf32>
    %63 = arith.truncf %62 : vector<128x128xf32> to vector<128x128xbf16>
    %c0_29 = arith.constant 0 : index
    %c0_30 = arith.constant 0 : index
    %64 = vector.load %arg9[%c0_29, %c0_30] : memref<128x128xbf16, #tpu.memory_space<vmem>>, vector<128x128xbf16>
    %cst_31 = arith.constant dense<0.000000e+00> : vector<128x128xf32>
    %65 = tpu.matmul %63, %64, %cst_31 {dimension_numbers = #tpu.dot_dimension_numbers<[1], [0], [0], [1], [0, 0, 1, 1], [], []>} : vector<128x128xbf16>, vector<128x128xbf16>, vector<128x128xf32> -> vector<128x128xf32>
    %66 = vector.extract_strided_slice %1 {offsets = [6, 0], sizes = [1, 128], strides = [1, 1]} : vector<8x128xf32> to vector<1x128xf32>
    %67 = vector.shape_cast %66 : vector<1x128xf32> to vector<128xf32>
    %68 = vector.shape_cast %67 : vector<128xf32> to vector<1x128xf32>
    %69 = vector.broadcast %68 : vector<1x128xf32> to vector<128x128xf32>
    %70 = arith.addf %65, %69 : vector<128x128xf32>
    %cst_32 = arith.constant 0.000000e+00 : f32
    %71 = vector.broadcast %cst_32 : f32 to vector<128x128xf32>
    %72 = arith.maximumf %70, %71 : vector<128x128xf32>
    %73 = arith.truncf %72 : vector<128x128xf32> to vector<128x128xbf16>
    %c0_33 = arith.constant 0 : index
    %c0_34 = arith.constant 0 : index
    %74 = vector.load %arg10[%c0_33, %c0_34] : memref<128x784xbf16, #tpu.memory_space<vmem>>, vector<128x784xbf16>
    %cst_35 = arith.constant dense<0.000000e+00> : vector<128x784xf32>
    %75 = tpu.matmul %73, %74, %cst_35 {dimension_numbers = #tpu.dot_dimension_numbers<[1], [0], [0], [1], [0, 0, 1, 1], [], []>} : vector<128x128xbf16>, vector<128x784xbf16>, vector<128x784xf32> -> vector<128x784xf32>
    %c0_36 = arith.constant 0 : index
    %c0_37 = arith.constant 0 : index
    %76 = vector.load %arg12[%c0_36, %c0_37] : memref<1x784xf32, #tpu.memory_space<vmem>>, vector<1x784xf32>
    %77 = vector.broadcast %76 : vector<1x784xf32> to vector<128x784xf32>
    %78 = arith.addf %75, %77 : vector<128x784xf32>
    %79 = math.tanh %78 : vector<128x784xf32>
    %c0_38 = arith.constant 0 : index
    %c0_39 = arith.constant 0 : index
    %80 = vector.load %arg13[%c0_38, %c0_39] : memref<128x784xf32, #tpu.memory_space<vmem>>, vector<128x784xf32>
    tpu.vector_store %arg13[%c0_38, %c0_39], %79 {strides = array<i32>} : memref<128x784xf32, #tpu.memory_space<vmem>>, vector<128x784xf32>,
    return
  }
  func.func @transform_0(%arg0: i32) -> (i32, i32) {
    %c0_i32 = arith.constant 0 : i32
    %c0_i32_0 = arith.constant 0 : i32
    return %arg0, %c0_i32 : i32, i32
  }
  func.func @transform_1(%arg0: i32) -> (i32, i32) {
    %c0_i32 = arith.constant 0 : i32
    %c0_i32_0 = arith.constant 0 : i32
    return %arg0, %c0_i32 : i32, i32
  }
  func.func @transform_2(%arg0: i32) -> (i32, i32) {
    %c0_i32 = arith.constant 0 : i32
    %c0_i32_0 = arith.constant 0 : i32
    %c0_i32_1 = arith.constant 0 : i32
    return %c0_i32, %c0_i32_0 : i32, i32
  }
  func.func @transform_3(%arg0: i32) -> (i32, i32) {
    %c0_i32 = arith.constant 0 : i32
    %c0_i32_0 = arith.constant 0 : i32
    %c0_i32_1 = arith.constant 0 : i32
    return %c0_i32, %c0_i32_0 : i32, i32
  }
  func.func @transform_4(%arg0: i32) -> (i32, i32) {
    %c0_i32 = arith.constant 0 : i32
    %c0_i32_0 = arith.constant 0 : i32
    %c0_i32_1 = arith.constant 0 : i32
    return %c0_i32, %c0_i32_0 : i32, i32
  }
  func.func @transform_5(%arg0: i32) -> (i32, i32) {
    %c0_i32 = arith.constant 0 : i32
    %c0_i32_0 = arith.constant 0 : i32
    %c0_i32_1 = arith.constant 0 : i32
    return %c0_i32, %c0_i32_0 : i32, i32
  }
  func.func @transform_6(%arg0: i32) -> (i32, i32) {
    %c0_i32 = arith.constant 0 : i32
    %c0_i32_0 = arith.constant 0 : i32
    %c0_i32_1 = arith.constant 0 : i32
    return %c0_i32, %c0_i32_0 : i32, i32
  }
  func.func @transform_7(%arg0: i32) -> (i32, i32) {
    %c0_i32 = arith.constant 0 : i32
    %c0_i32_0 = arith.constant 0 : i32
    %c0_i32_1 = arith.constant 0 : i32
    return %c0_i32, %c0_i32_0 : i32, i32
  }
  func.func @transform_8(%arg0: i32) -> (i32, i32) {
    %c0_i32 = arith.constant 0 : i32
    %c0_i32_0 = arith.constant 0 : i32
    %c0_i32_1 = arith.constant 0 : i32
    return %c0_i32, %c0_i32_0 : i32, i32
  }
  func.func @transform_9(%arg0: i32) -> (i32, i32) {
    %c0_i32 = arith.constant 0 : i32
    %c0_i32_0 = arith.constant 0 : i32
    %c0_i32_1 = arith.constant 0 : i32
    return %c0_i32, %c0_i32_0 : i32, i32
  }
  func.func @transform_10(%arg0: i32) -> (i32, i32) {
    %c0_i32 = arith.constant 0 : i32
    %c0_i32_0 = arith.constant 0 : i32
    %c0_i32_1 = arith.constant 0 : i32
    return %c0_i32, %c0_i32_0 : i32, i32
  }
  func.func @transform_11(%arg0: i32) -> (i32, i32) {
    %c0_i32 = arith.constant 0 : i32
    %c0_i32_0 = arith.constant 0 : i32
    %c0_i32_1 = arith.constant 0 : i32
    return %c0_i32, %c0_i32_0 : i32, i32
  }
  func.func @transform_12(%arg0: i32) -> (i32, i32) {
    %c0_i32 = arith.constant 0 : i32
    %c0_i32_0 = arith.constant 0 : i32
    return %arg0, %c0_i32 : i32, i32
  }
  func.func @transform_13(%arg0: i32) -> (i32, i32) {
    %c0_i32 = arith.constant 0 : i32
    %c0_i32_0 = arith.constant 0 : i32
    return %arg0, %c0_i32 : i32, i32
  }
}

</mosaic_0001>

<llo_original>
// kernel: tpu_custom_call.1
$region0: #{tpu_custom_call.1}
  #allocation0 [shape = 'u32[]', space=smem, size = 0x4, offset = 0x4, fixed_abs, tag = 'smem constant byte address 0x4 - core index']
  #allocation1 [shape = 'u32[72,128]{1,0:T(1,128)}', space=vmem, size = 0x9000, scoped, tag = 'internal scratch']
  %s0 = inlined_call_operand.vmem [shape: f32[256,784], index: 0, kind: input, shape index: {}]
  %s1 = inlined_call_operand.vmem [shape: f32[256,128], index: 1, kind: input, shape index: {}]
  %s2 = inlined_call_operand.vmem [shape: bf16[784,128], index: 2, kind: input, shape index: {}]
  %s3 = inlined_call_operand.vmem [shape: bf16[128,128], index: 3, kind: input, shape index: {}]
  %s4 = inlined_call_operand.vmem [shape: bf16[128,128], index: 4, kind: input, shape index: {}]
  %s5 = inlined_call_operand.vmem [shape: bf16[128,128], index: 5, kind: input, shape index: {}]
  %s6 = inlined_call_operand.vmem [shape: bf16[128,128], index: 6, kind: input, shape index: {}]
  %s7 = inlined_call_operand.vmem [shape: bf16[128,128], index: 7, kind: input, shape index: {}]
  %s8 = inlined_call_operand.vmem [shape: bf16[128,128], index: 8, kind: input, shape index: {}]
  %s9 = inlined_call_operand.vmem [shape: bf16[128,784], index: 9, kind: input, shape index: {}]
  %s10 = inlined_call_operand.vmem [shape: f32[8,128], index: 10, kind: input, shape index: {}]
  %s11 = inlined_call_operand.vmem [shape: f32[1,784], index: 11, kind: input, shape index: {}]
  %s12 = inlined_call_operand.vmem [shape: f32[256,784], index: 12, kind: output, shape index: {0}]
  %s13 = inlined_call_operand.hbm [shape: f32[256,128], index: 13, kind: output, shape index: {1}]
  %14 = xla_tuple %s12, %s13
  %s15 = sld [smem:[#allocation0]]
  $region89: #{tpu_custom_call.1} parent=0
    _
  %s17 = ssub.s32 1, %s15
  %s18 = scalar_select 0, %s17, %s15
  $region1: #{tpu_custom_call.1} parent=0
    #allocation2 [shape = 'u8[131072]{0}', space=vmem, size = 0x20000, scoped, tag = 'output window, operand 1']
    #allocation3 [shape = 's32[2]{0}', space=sflag, size = 0x8, scoped, tag = 'scoped memory for tpu_custom_call.1']
    %19 = vsyncpa [#allocation3], 0
    %s20 = scalar_lea.sflag [#allocation3], 1
    %21 = vsyncpa %s20, 0
    loop: start=0, step=1, limit=4
    $region2: #{tpu_custom_call.1} parent=1 // loop_pre_header
      _
    $region3: #{tpu_custom_call.1} parent=1 // loop_header
      %s23 = sphi 0, %s27
      %p24 = scmp.ge.s32.totalorder %s23, 4
      %s33 = sphi 0, %s35
      %s36 = sphi 0, %s33
      %s37 = sphi 0, %s36
      %s53 = sphi 0, %s37
      %s59 = sphi 0, %s61
      %s62 = sphi 0, %s59
      %s63 = sphi 0, %s62
      %s79 = sphi 0, %s63
      %s83 = sphi 0, %s83
      %s85 = sphi 0, %s83
      %s86 = sphi 0, %s85
      %s100 = sphi 0, %s86
      %s104 = sphi 0, %s104
      %s106 = sphi 0, %s104
      %s107 = sphi 0, %s106
      %s121 = sphi 0, %s107
      %s125 = sphi 0, %s125
      %s127 = sphi 0, %s125
      %s128 = sphi 0, %s127
      %s142 = sphi 0, %s128
      %s146 = sphi 0, %s146
      %s148 = sphi 0, %s146
      %s149 = sphi 0, %s148
      %s163 = sphi 0, %s149
      %s167 = sphi 0, %s167
      %s169 = sphi 0, %s167
      %s170 = sphi 0, %s169
      %s184 = sphi 0, %s170
      %s188 = sphi 0, %s188
      %s190 = sphi 0, %s188
      %s191 = sphi 0, %s190
      %s205 = sphi 0, %s191
      %s209 = sphi 0, %s209
      %s211 = sphi 0, %s209
      %s212 = sphi 0, %s211
      %s226 = sphi 0, %s212
      %s230 = sphi 0, %s230
      %s232 = sphi 0, %s230
      %s233 = sphi 0, %s232
      %s247 = sphi 0, %s233
      %s251 = sphi 0, %s251
      %s253 = sphi 0, %s251
      %s254 = sphi 0, %s253
      %s268 = sphi 0, %s254
      %s272 = sphi 0, %s272
      %s274 = sphi 0, %s272
      %s275 = sphi 0, %s274
      %s289 = sphi 0, %s275
      %s295 = sphi 0, %s297
      %s298 = sphi 0, %s295
      %s299 = sphi 0, %s298
      %s315 = sphi 0, %s299
      %s321 = sphi 0, %s323
      %s324 = sphi 0, %s321
      %s325 = sphi 0, %s324
      %s341 = sphi 0, %s325
    $region4: #{tpu_custom_call.1} parent=1 // loop_header_branch
      %26 = sbr.rel (%p24) target = $region8
    $region5: #{tpu_custom_call.1} parent=1 // loop_body
      %s28 = ssub.s32 %s23, 1
      %s29 = ssub.s32 %s23, 2
      %s30 = sadd.s32 %s23, 1
      %s31 = ssub.s32 %s23, %s30
      %p32 = scmp.eq.s32.totalorder %s31, 0
      %s34 = sadd.s32 %s33, 1
      %s35 = scalar_select %p32, %s33, %s34
      %p38 = pneg %p32
      %p39 = scmp.eq.s32.totalorder %s23, 1
      %p40 = por %p38, %p39
      %p41 = scmp.ne.s32.totalorder %s33, %s36
      %p42 = scmp.eq.s32.totalorder %s23, 0
      %p43 = por %p41, %p42
      %p44 = scmp.ne.s32.totalorder %s33, %s36
      %p45 = scmp.eq.s32.totalorder %s28, 1
      %p46 = por %p44, %p45
      %p47 = scmp.ne.s32.totalorder %s36, %s37
      %p48 = scmp.eq.s32.totalorder %s28, 0
      %p49 = por %p47, %p48
      %p50 = scmp.ne.s32.totalorder %s36, %s37
      %p51 = scmp.eq.s32.totalorder %s29, 1
      %p52 = por %p50, %p51
      %p54 = scmp.ne.s32.totalorder %s37, %s53
      %p55 = scmp.eq.s32.totalorder %s29, 0
      %p56 = por %p54, %p55
      %s57 = ssub.s32 %s23, %s30
      %p58 = scmp.eq.s32.totalorder %s57, 0
      %s60 = sadd.s32 %s59, 1
      %s61 = scalar_select %p58, %s59, %s60
      %p64 = pneg %p58
      %p65 = scmp.eq.s32.totalorder %s23, 1
      %p66 = por %p64, %p65
      %p67 = scmp.ne.s32.totalorder %s59, %s62
      %p68 = scmp.eq.s32.totalorder %s23, 0
      %p69 = por %p67, %p68
      %p70 = scmp.ne.s32.totalorder %s59, %s62
      %p71 = scmp.eq.s32.totalorder %s28, 1
      %p72 = por %p70, %p71
      %p73 = scmp.ne.s32.totalorder %s62, %s63
      %p74 = scmp.eq.s32.totalorder %s28, 0
      %p75 = por %p73, %p74
      %p76 = scmp.ne.s32.totalorder %s62, %s63
      %p77 = scmp.eq.s32.totalorder %s29, 1
      %p78 = por %p76, %p77
      %p80 = scmp.ne.s32.totalorder %s63, %s79
      %p81 = scmp.eq.s32.totalorder %s29, 0
      %p82 = por %p80, %p81
      %s84 = sadd.s32 %s83, 1
      %p87 = scmp.eq.s32.totalorder %s23, 1
      %p88 = scmp.ne.s32.totalorder %s83, %s85
      %p89 = scmp.eq.s32.totalorder %s23, 0
      %p90 = por %p88, %p89
      %p91 = scmp.ne.s32.totalorder %s83, %s85
      %p92 = scmp.eq.s32.totalorder %s28, 1
      %p93 = por %p91, %p92
      %p94 = scmp.ne.s32.totalorder %s85, %s86
      %p95 = scmp.eq.s32.totalorder %s28, 0
      %p96 = por %p94, %p95
      %p97 = scmp.ne.s32.totalorder %s85, %s86
      %p98 = scmp.eq.s32.totalorder %s29, 1
      %p99 = por %p97, %p98
      %p101 = scmp.ne.s32.totalorder %s86, %s100
      %p102 = scmp.eq.s32.totalorder %s29, 0
      %p103 = por %p101, %p102
      %s105 = sadd.s32 %s104, 1
      %p108 = scmp.eq.s32.totalorder %s23, 1
      %p109 = scmp.ne.s32.totalorder %s104, %s106
      %p110 = scmp.eq.s32.totalorder %s23, 0
      %p111 = por %p109, %p110
      %p112 = scmp.ne.s32.totalorder %s104, %s106
      %p113 = scmp.eq.s32.totalorder %s28, 1
      %p114 = por %p112, %p113
      %p115 = scmp.ne.s32.totalorder %s106, %s107
      %p116 = scmp.eq.s32.totalorder %s28, 0
      %p117 = por %p115, %p116
      %p118 = scmp.ne.s32.totalorder %s106, %s107
      %p119 = scmp.eq.s32.totalorder %s29, 1
      %p120 = por %p118, %p119
      %p122 = scmp.ne.s32.totalorder %s107, %s121
      %p123 = scmp.eq.s32.totalorder %s29, 0
      %p124 = por %p122, %p123
      %s126 = sadd.s32 %s125, 1
      %p129 = scmp.eq.s32.totalorder %s23, 1
      %p130 = scmp.ne.s32.totalorder %s125, %s127
      %p131 = scmp.eq.s32.totalorder %s23, 0
      %p132 = por %p130, %p131
      %p133 = scmp.ne.s32.totalorder %s125, %s127
      %p134 = scmp.eq.s32.totalorder %s28, 1
      %p135 = por %p133, %p134
      %p136 = scmp.ne.s32.totalorder %s127, %s128
      %p137 = scmp.eq.s32.totalorder %s28, 0
      %p138 = por %p136, %p137
      %p139 = scmp.ne.s32.totalorder %s127, %s128
      %p140 = scmp.eq.s32.totalorder %s29, 1
      %p141 = por %p139, %p140
      %p143 = scmp.ne.s32.totalorder %s128, %s142
      %p144 = scmp.eq.s32.totalorder %s29, 0
      %p145 = por %p143, %p144
      %s147 = sadd.s32 %s146, 1
      %p150 = scmp.eq.s32.totalorder %s23, 1
      %p151 = scmp.ne.s32.totalorder %s146, %s148
      %p152 = scmp.eq.s32.totalorder %s23, 0
      %p153 = por %p151, %p152
      %p154 = scmp.ne.s32.totalorder %s146, %s148
      %p155 = scmp.eq.s32.totalorder %s28, 1
      %p156 = por %p154, %p155
      %p157 = scmp.ne.s32.totalorder %s148, %s149
      %p158 = scmp.eq.s32.totalorder %s28, 0
      %p159 = por %p157, %p158
      %p160 = scmp.ne.s32.totalorder %s148, %s149
      %p161 = scmp.eq.s32.totalorder %s29, 1
      %p162 = por %p160, %p161
      %p164 = scmp.ne.s32.totalorder %s149, %s163
      %p165 = scmp.eq.s32.totalorder %s29, 0
      %p166 = por %p164, %p165
      %s168 = sadd.s32 %s167, 1
      %p171 = scmp.eq.s32.totalorder %s23, 1
      %p172 = scmp.ne.s32.totalorder %s167, %s169
      %p173 = scmp.eq.s32.totalorder %s23, 0
      %p174 = por %p172, %p173
      %p175 = scmp.ne.s32.totalorder %s167, %s169
      %p176 = scmp.eq.s32.totalorder %s28, 1
      %p177 = por %p175, %p176
      %p178 = scmp.ne.s32.totalorder %s169, %s170
      %p179 = scmp.eq.s32.totalorder %s28, 0
      %p180 = por %p178, %p179
      %p181 = scmp.ne.s32.totalorder %s169, %s170
      %p182 = scmp.eq.s32.totalorder %s29, 1
      %p183 = por %p181, %p182
      %p185 = scmp.ne.s32.totalorder %s170, %s184
      %p186 = scmp.eq.s32.totalorder %s29, 0
      %p187 = por %p185, %p186
      %s189 = sadd.s32 %s188, 1
      %p192 = scmp.eq.s32.totalorder %s23, 1
      %p193 = scmp.ne.s32.totalorder %s188, %s190
      %p194 = scmp.eq.s32.totalorder %s23, 0
      %p195 = por %p193, %p194
      %p196 = scmp.ne.s32.totalorder %s188, %s190
      %p197 = scmp.eq.s32.totalorder %s28, 1
      %p198 = por %p196, %p197
      %p199 = scmp.ne.s32.totalorder %s190, %s191
      %p200 = scmp.eq.s32.totalorder %s28, 0
      %p201 = por %p199, %p200
      %p202 = scmp.ne.s32.totalorder %s190, %s191
      %p203 = scmp.eq.s32.totalorder %s29, 1
      %p204 = por %p202, %p203
      %p206 = scmp.ne.s32.totalorder %s191, %s205
      %p207 = scmp.eq.s32.totalorder %s29, 0
      %p208 = por %p206, %p207
      %s210 = sadd.s32 %s209, 1
      %p213 = scmp.eq.s32.totalorder %s23, 1
      %p214 = scmp.ne.s32.totalorder %s209, %s211
      %p215 = scmp.eq.s32.totalorder %s23, 0
      %p216 = por %p214, %p215
      %p217 = scmp.ne.s32.totalorder %s209, %s211
      %p218 = scmp.eq.s32.totalorder %s28, 1
      %p219 = por %p217, %p218
      %p220 = scmp.ne.s32.totalorder %s211, %s212
      %p221 = scmp.eq.s32.totalorder %s28, 0
      %p222 = por %p220, %p221
      %p223 = scmp.ne.s32.totalorder %s211, %s212
      %p224 = scmp.eq.s32.totalorder %s29, 1
      %p225 = por %p223, %p224
      %p227 = scmp.ne.s32.totalorder %s212, %s226
      %p228 = scmp.eq.s32.totalorder %s29, 0
      %p229 = por %p227, %p228
      %s231 = sadd.s32 %s230, 1
      %p234 = scmp.eq.s32.totalorder %s23, 1
      %p235 = scmp.ne.s32.totalorder %s230, %s232
      %p236 = scmp.eq.s32.totalorder %s23, 0
      %p237 = por %p235, %p236
      %p238 = scmp.ne.s32.totalorder %s230, %s232
      %p239 = scmp.eq.s32.totalorder %s28, 1
      %p240 = por %p238, %p239
      %p241 = scmp.ne.s32.totalorder %s232, %s233
      %p242 = scmp.eq.s32.totalorder %s28, 0
      %p243 = por %p241, %p242
      %p244 = scmp.ne.s32.totalorder %s232, %s233
      %p245 = scmp.eq.s32.totalorder %s29, 1
      %p246 = por %p244, %p245
      %p248 = scmp.ne.s32.totalorder %s233, %s247
      %p249 = scmp.eq.s32.totalorder %s29, 0
      %p250 = por %p248, %p249
      %s252 = sadd.s32 %s251, 1
      %p255 = scmp.eq.s32.totalorder %s23, 1
      %p256 = scmp.ne.s32.totalorder %s251, %s253
      %p257 = scmp.eq.s32.totalorder %s23, 0
      %p258 = por %p256, %p257
      %p259 = scmp.ne.s32.totalorder %s251, %s253
      %p260 = scmp.eq.s32.totalorder %s28, 1
      %p261 = por %p259, %p260
      %p262 = scmp.ne.s32.totalorder %s253, %s254
      %p263 = scmp.eq.s32.totalorder %s28, 0
      %p264 = por %p262, %p263
      %p265 = scmp.ne.s32.totalorder %s253, %s254
      %p266 = scmp.eq.s32.totalorder %s29, 1
      %p267 = por %p265, %p266
      %p269 = scmp.ne.s32.totalorder %s254, %s268
      %p270 = scmp.eq.s32.totalorder %s29, 0
      %p271 = por %p269, %p270
      %s273 = sadd.s32 %s272, 1
      %p276 = scmp.eq.s32.totalorder %s23, 1
      %p277 = scmp.ne.s32.totalorder %s272, %s274
      %p278 = scmp.eq.s32.totalorder %s23, 0
      %p279 = por %p277, %p278
      %p280 = scmp.ne.s32.totalorder %s272, %s274
      %p281 = scmp.eq.s32.totalorder %s28, 1
      %p282 = por %p280, %p281
      %p283 = scmp.ne.s32.totalorder %s274, %s275
      %p284 = scmp.eq.s32.totalorder %s28, 0
      %p285 = por %p283, %p284
      %p286 = scmp.ne.s32.totalorder %s274, %s275
      %p287 = scmp.eq.s32.totalorder %s29, 1
      %p288 = por %p286, %p287
      %p290 = scmp.ne.s32.totalorder %s275, %s289
      %p291 = scmp.eq.s32.totalorder %s29, 0
      %p292 = por %p290, %p291
      %s293 = ssub.s32 %s23, %s30
      %p294 = scmp.eq.s32.totalorder %s293, 0
      %s296 = sadd.s32 %s295, 1
      %s297 = scalar_select %p294, %s295, %s296
      %p300 = pneg %p294
      %p301 = scmp.eq.s32.totalorder %s23, 1
      %p302 = por %p300, %p301
      %p303 = scmp.ne.s32.totalorder %s295, %s298
      %p304 = scmp.eq.s32.totalorder %s23, 0
      %p305 = por %p303, %p304
      %p306 = scmp.ne.s32.totalorder %s295, %s298
      %p307 = scmp.eq.s32.totalorder %s28, 1
      %p308 = por %p306, %p307
      %p309 = scmp.ne.s32.totalorder %s298, %s299
      %p310 = scmp.eq.s32.totalorder %s28, 0
      %p311 = por %p309, %p310
      %p312 = scmp.ne.s32.totalorder %s298, %s299
      %p313 = scmp.eq.s32.totalorder %s29, 1
      %p314 = por %p312, %p313
      %p316 = scmp.ne.s32.totalorder %s299, %s315
      %p317 = scmp.eq.s32.totalorder %s29, 0
      %p318 = por %p316, %p317
      %s319 = ssub.s32 %s23, %s30
      %p320 = scmp.eq.s32.totalorder %s319, 0
      %s322 = sadd.s32 %s321, 1
      %s323 = scalar_select %p320, %s321, %s322
      %p326 = pneg %p320
      %p327 = scmp.eq.s32.totalorder %s23, 1
      %p328 = por %p326, %p327
      %p329 = scmp.ne.s32.totalorder %s321, %s324
      %p330 = scmp.eq.s32.totalorder %s23, 0
      %p331 = por %p329, %p330
      %p332 = scmp.ne.s32.totalorder %s321, %s324
      %p333 = scmp.eq.s32.totalorder %s28, 1
      %p334 = por %p332, %p333
      %p335 = scmp.ne.s32.totalorder %s324, %s325
      %p336 = scmp.eq.s32.totalorder %s28, 0
      %p337 = por %p335, %p336
      %p338 = scmp.ne.s32.totalorder %s324, %s325
      %p339 = scmp.eq.s32.totalorder %s29, 1
      %p340 = por %p338, %p339
      %p342 = scmp.ne.s32.totalorder %s325, %s341
      %p343 = scmp.eq.s32.totalorder %s29, 0
      %p344 = por %p342, %p343
      %p345 = scmp.le.s32.totalorder 1, %s23
      %p346 = scmp.lt.s32.totalorder %s23, 3
      %p347 = pnand %p345, %p346
      %p348 = pneg %p347
      // Predicated region
      $region9: #{tpu_custom_call.1} parent=5 // pred_check
        _
      $region10: #{tpu_custom_call.1} parent=5 // pred_check_branch
        %350 = sbr.rel (%p347) target = $region12
      $region11: #{tpu_custom_call.1} parent=5 // pred_region
        %s351 = ssub.s32 %s23, 1
        // Predicated region
        $region13: #{tpu_custom_call.1} parent=11 // pred_check
          %p352 = pneg %p96
        $region14: #{tpu_custom_call.1} parent=11 // pred_check_branch
          %354 = sbr.rel (%p352) target = $region16
        $region15: #{tpu_custom_call.1} parent=11 // pred_region
          _
        $region16: #{tpu_custom_call.1} parent=11 // pred_fallthru
          _
        // Predicated region
        $region17: #{tpu_custom_call.1} parent=11 // pred_check
          %p355 = pneg %p117
        $region18: #{tpu_custom_call.1} parent=11 // pred_check_branch
          %357 = sbr.rel (%p355) target = $region20
        $region19: #{tpu_custom_call.1} parent=11 // pred_region
          _
        $region20: #{tpu_custom_call.1} parent=11 // pred_fallthru
          _
        // Predicated region
        $region21: #{tpu_custom_call.1} parent=11 // pred_check
          %p358 = pneg %p138
        $region22: #{tpu_custom_call.1} parent=11 // pred_check_branch
          %360 = sbr.rel (%p358) target = $region24
        $region23: #{tpu_custom_call.1} parent=11 // pred_region
          _
        $region24: #{tpu_custom_call.1} parent=11 // pred_fallthru
          _
        // Predicated region
        $region25: #{tpu_custom_call.1} parent=11 // pred_check
          %p361 = pneg %p159
        $region26: #{tpu_custom_call.1} parent=11 // pred_check_branch
          %363 = sbr.rel (%p361) target = $region28
        $region27: #{tpu_custom_call.1} parent=11 // pred_region
          _
        $region28: #{tpu_custom_call.1} parent=11 // pred_fallthru
          _
        // Predicated region
        $region29: #{tpu_custom_call.1} parent=11 // pred_check
          %p364 = pneg %p180
        $region30: #{tpu_custom_call.1} parent=11 // pred_check_branch
          %366 = sbr.rel (%p364) target = $region32
        $region31: #{tpu_custom_call.1} parent=11 // pred_region
          _
        $region32: #{tpu_custom_call.1} parent=11 // pred_fallthru
          _
        // Predicated region
        $region33: #{tpu_custom_call.1} parent=11 // pred_check
          %p367 = pneg %p201
        $region34: #{tpu_custom_call.1} parent=11 // pred_check_branch
          %369 = sbr.rel (%p367) target = $region36
        $region35: #{tpu_custom_call.1} parent=11 // pred_region
          _
        $region36: #{tpu_custom_call.1} parent=11 // pred_fallthru
          _
        // Predicated region
        $region37: #{tpu_custom_call.1} parent=11 // pred_check
          %p370 = pneg %p222
        $region38: #{tpu_custom_call.1} parent=11 // pred_check_branch
          %372 = sbr.rel (%p370) target = $region40
        $region39: #{tpu_custom_call.1} parent=11 // pred_region
          _
        $region40: #{tpu_custom_call.1} parent=11 // pred_fallthru
          _
        // Predicated region
        $region41: #{tpu_custom_call.1} parent=11 // pred_check
          %p373 = pneg %p243
        $region42: #{tpu_custom_call.1} parent=11 // pred_check_branch
          %375 = sbr.rel (%p373) target = $region44
        $region43: #{tpu_custom_call.1} parent=11 // pred_region
          _
        $region44: #{tpu_custom_call.1} parent=11 // pred_fallthru
          _
        // Predicated region
        $region45: #{tpu_custom_call.1} parent=11 // pred_check
          %p376 = pneg %p264
        $region46: #{tpu_custom_call.1} parent=11 // pred_check_branch
          %378 = sbr.rel (%p376) target = $region48
        $region47: #{tpu_custom_call.1} parent=11 // pred_region
          _
        $region48: #{tpu_custom_call.1} parent=11 // pred_fallthru
          _
        // Predicated region
        $region49: #{tpu_custom_call.1} parent=11 // pred_check
          %p379 = pneg %p285
        $region50: #{tpu_custom_call.1} parent=11 // pred_check_branch
          %381 = sbr.rel (%p379) target = $region52
        $region51: #{tpu_custom_call.1} parent=11 // pred_region
          _
        $region52: #{tpu_custom_call.1} parent=11 // pred_fallthru
          _
      $region12: #{tpu_custom_call.1} parent=5 // pred_fallthru
        _
      %p382 = scmp.lt.s32.totalorder %s23, 2
      // Predicated region
      $region53: #{tpu_custom_call.1} parent=5 // pred_check
        %p383 = pneg %p382
      $region54: #{tpu_custom_call.1} parent=5 // pred_check_branch
        %385 = sbr.rel (%p383) target = $region56
      $region55: #{tpu_custom_call.1} parent=5 // pred_region
        // Predicated region
        $region57: #{tpu_custom_call.1} parent=55 // pred_check
          %p386 = pneg %p43
        $region58: #{tpu_custom_call.1} parent=55 // pred_check_branch
          %388 = sbr.rel (%p386) target = $region60
        $region59: #{tpu_custom_call.1} parent=55 // pred_region
          %s389 = smul.u32 16, %s23
          %p390 = scmp.lt.s32.totalorder %s389, 31
          %s391 = scalar_select %p390, %s389, 31
          %s392 = smul.addr %s391, 7
          %s393 = smul.addr %s392, 8
          %s394 = scalar_lea.vmem %s0, %s393
          %s395 = smul.u32 16, %s23
        $region60: #{tpu_custom_call.1} parent=55 // pred_fallthru
          _
        // Predicated region
        $region61: #{tpu_custom_call.1} parent=55 // pred_check
          %p396 = pneg %p69
        $region62: #{tpu_custom_call.1} parent=55 // pred_check_branch
          %398 = sbr.rel (%p396) target = $region64
        $region63: #{tpu_custom_call.1} parent=55 // pred_region
          %s399 = smul.u32 16, %s23
          %p400 = scmp.lt.s32.totalorder %s399, 31
          %s401 = scalar_select %p400, %s399, 31
          %s402 = smul.addr %s401, 8
          %s403 = scalar_lea.vmem %s1, %s402
          %s404 = smul.u32 16, %s23
        $region64: #{tpu_custom_call.1} parent=55 // pred_fallthru
          _
      $region56: #{tpu_custom_call.1} parent=5 // pred_fallthru
        _
      %p405 = scmp.le.s32.totalorder 1, %s23
      %p406 = scmp.lt.s32.totalorder %s23, 3
      %p407 = pnand %p405, %p406
      %p408 = pneg %p407
      // Predicated region
      $region65: #{tpu_custom_call.1} parent=5 // pred_check
        _
      $region66: #{tpu_custom_call.1} parent=5 // pred_check_branch
        %410 = sbr.rel (%p407) target = $region68
      $region67: #{tpu_custom_call.1} parent=5 // pred_region
        %s411 = ssub.s32 %s23, 1
        %s412 = smul.u32 16, %s28
        %p413 = scmp.lt.s32.totalorder %s412, 31
        %s414 = scalar_select %p413, %s412, 31
        %s415 = smul.addr %s414, 7
        %s416 = smul.addr %s415, 8
        %s417 = scalar_lea.vmem %s0, %s416
        %p418 = pneg %p49
        %p419 = pneg %p46
        %s420 = smul.u32 16, %s28
        %p421 = scmp.lt.s32.totalorder %s420, 31
        %s422 = scalar_select %p421, %s420, 31
        %s423 = smul.addr %s422, 8
        %s424 = scalar_lea.vmem %s1, %s423
        %p425 = pneg %p75
        %p426 = pneg %p72
        %p427 = pneg %p96
        %p428 = pneg %p93
        %p429 = pneg %p117
        %p430 = pneg %p114
        %p431 = pneg %p138
        %p432 = pneg %p135
        %p433 = pneg %p159
        %p434 = pneg %p156
        %p435 = pneg %p180
        %p436 = pneg %p177
        %p437 = pneg %p201
        %p438 = pneg %p198
        %p439 = pneg %p222
        %p440 = pneg %p219
        %p441 = pneg %p243
        %p442 = pneg %p240
        %p443 = pneg %p264
        %p444 = pneg %p261
        %p445 = pneg %p285
        %p446 = pneg %p282
        %p447 = pneg %p311
        %p448 = pneg %p308
        %s449 = smul.u32 16, %s28
        %p450 = scmp.lt.s32.totalorder %s449, 31
        %s451 = scalar_select %p450, %s449, 31
        %s452 = smul.addr %s451, 7
        %s453 = smul.addr %s452, 8
        %s454 = scalar_lea.vmem %s12, %s453
        %p455 = pneg %p337
        %p456 = pneg %p334
        %s457 = sand.u32 %s324, 1
        %s458 = scalar_lea.sflag [#allocation3], %s457
        %s459 = sand.u32 %s324, 1
        %s460 = smul.addr %s459, 128
        %s461 = scalar_lea.vmem [#allocation2], %s460
        %s462 = smul.u32 16, %s28
        %p463 = scmp.lt.s32.totalorder %s462, 31
        %s464 = scalar_select %p463, %s462, 31
        %s465 = smul.addr %s464, 7
        %s466 = smul.addr %s465, 8
        %s467 = scalar_lea.vmem %s0, %s466
        %s468 = smul.u32 16, %s28
        %s469 = smul.u32 16, %s28
        %p470 = scmp.lt.s32.totalorder %s469, 31
        %s471 = scalar_select %p470, %s469, 31
        %s472 = smul.addr %s471, 8
        %s473 = scalar_lea.vmem %s1, %s472
        %s474 = smul.u32 16, %s28
        %s475 = smul.u32 16, %s28
        %p476 = scmp.lt.s32.totalorder %s475, 31
        %s477 = scalar_select %p476, %s475, 31
        %s478 = smul.addr %s477, 7
        %s479 = smul.addr %s478, 8
        %s480 = scalar_lea.vmem %s12, %s479
        %s481 = smul.u32 16, %s28
        %s482 = smul.u32 16, %s28
        %v484 = vld [vmem:[%s467] sm:$0xff]
        %v485 = vld [vmem:[%s467 + $0x8] sm:$0xff]
        %v486 = vld [vmem:[%s467 + $0x10] sm:$0xff]
        %v487 = vld [vmem:[%s467 + $0x18] sm:$0xff]
        %v488 = vld [vmem:[%s467 + $0x20] sm:$0xff]
        %v489 = vld [vmem:[%s467 + $0x28] sm:$0xff]
        %v490 = vld [vmem:[%s467 + $0x30] sm:$0xff]
        %v491 = vld [vmem:[%s467 + $0x38] sm:$0xff]
        %v492 = vld [vmem:[%s467 + $0x40] sm:$0xff]
        %v493 = vld [vmem:[%s467 + $0x48] sm:$0xff]
        %v494 = vld [vmem:[%s467 + $0x50] sm:$0xff]
        %v495 = vld [vmem:[%s467 + $0x58] sm:$0xff]
        %v496 = vld [vmem:[%s467 + $0x60] sm:$0xff]
        %v497 = vld [vmem:[%s467 + $0x68] sm:$0xff]
        %v498 = vld [vmem:[%s467 + $0x70] sm:$0xff]
        %v499 = vld [vmem:[%s467 + $0x78] sm:$0xff]
        %v500 = vld [vmem:[%s467 + $0x80] sm:$0xff]
        %v501 = vld [vmem:[%s467 + $0x88] sm:$0xff]
        %v502 = vld [vmem:[%s467 + $0x90] sm:$0xff]
        %v503 = vld [vmem:[%s467 + $0x98] sm:$0xff]
        %v504 = vld [vmem:[%s467 + $0xa0] sm:$0xff]
        %v505 = vld [vmem:[%s467 + $0xa8] sm:$0xff]
        %v506 = vld [vmem:[%s467 + $0xb0] sm:$0xff]
        %v507 = vld [vmem:[%s467 + $0xb8] sm:$0xff]
        %v508 = vld [vmem:[%s467 + $0xc0] sm:$0xff]
        %v509 = vld [vmem:[%s467 + $0xc8] sm:$0xff]
        %v510 = vld [vmem:[%s467 + $0xd0] sm:$0xff]
        %v511 = vld [vmem:[%s467 + $0xd8] sm:$0xff]
        %v512 = vld [vmem:[%s467 + $0xe0] sm:$0xff]
        %v513 = vld [vmem:[%s467 + $0xe8] sm:$0xff]
        %v514 = vld [vmem:[%s467 + $0xf0] sm:$0xff]
        %v515 = vld [vmem:[%s467 + $0xf8] sm:$0xff]
        %v516 = vld [vmem:[%s467 + $0x100] sm:$0xff]
        %v517 = vld [vmem:[%s467 + $0x108] sm:$0xff]
        %v518 = vld [vmem:[%s467 + $0x110] sm:$0xff]
        %v519 = vld [vmem:[%s467 + $0x118] sm:$0xff]
        %v520 = vld [vmem:[%s467 + $0x120] sm:$0xff]
        %v521 = vld [vmem:[%s467 + $0x128] sm:$0xff]
        %v522 = vld [vmem:[%s467 + $0x130] sm:$0xff]
        %v523 = vld [vmem:[%s467 + $0x138] sm:$0xff]
        %v524 = vld [vmem:[%s467 + $0x140] sm:$0xff]
        %v525 = vld [vmem:[%s467 + $0x148] sm:$0xff]
        %v526 = vld [vmem:[%s467 + $0x150] sm:$0xff]
        %v527 = vld [vmem:[%s467 + $0x158] sm:$0xff]
        %v528 = vld [vmem:[%s467 + $0x160] sm:$0xff]
        %v529 = vld [vmem:[%s467 + $0x168] sm:$0xff]
        %v530 = vld [vmem:[%s467 + $0x170] sm:$0xff]
        %v531 = vld [vmem:[%s467 + $0x178] sm:$0xff]
        %v532 = vld [vmem:[%s467 + $0x180] sm:$0xff]
        %v533 = vld [vmem:[%s467 + $0x188] sm:$0xff]
        %v534 = vld [vmem:[%s467 + $0x190] sm:$0xff]
        %v535 = vld [vmem:[%s467 + $0x198] sm:$0xff]
        %v536 = vld [vmem:[%s467 + $0x1a0] sm:$0xff]
        %v537 = vld [vmem:[%s467 + $0x1a8] sm:$0xff]
        %v538 = vld [vmem:[%s467 + $0x1b0] sm:$0xff]
        %v539 = vld [vmem:[%s467 + $0x1b8] sm:$0xff]
        %v540 = vld [vmem:[%s467 + $0x1c0] sm:$0xff]
        %v541 = vld [vmem:[%s467 + $0x1c8] sm:$0xff]
        %v542 = vld [vmem:[%s467 + $0x1d0] sm:$0xff]
        %v543 = vld [vmem:[%s467 + $0x1d8] sm:$0xff]
        %v544 = vld [vmem:[%s467 + $0x1e0] sm:$0xff]
        %v545 = vld [vmem:[%s467 + $0x1e8] sm:$0xff]
        %v546 = vld [vmem:[%s467 + $0x1f0] sm:$0xff]
        %v547 = vld [vmem:[%s467 + $0x1f8] sm:$0xff]
        %v548 = vld [vmem:[%s467 + $0x200] sm:$0xff]
        %v549 = vld [vmem:[%s467 + $0x208] sm:$0xff]
        %v550 = vld [vmem:[%s467 + $0x210] sm:$0xff]
        %v551 = vld [vmem:[%s467 + $0x218] sm:$0xff]
        %v552 = vld [vmem:[%s467 + $0x220] sm:$0xff]
        %v553 = vld [vmem:[%s467 + $0x228] sm:$0xff]
        %v554 = vld [vmem:[%s467 + $0x230] sm:$0xff]
        %v555 = vld [vmem:[%s467 + $0x238] sm:$0xff]
        %v556 = vld [vmem:[%s467 + $0x240] sm:$0xff]
        %v557 = vld [vmem:[%s467 + $0x248] sm:$0xff]
        %v558 = vld [vmem:[%s467 + $0x250] sm:$0xff]
        %v559 = vld [vmem:[%s467 + $0x258] sm:$0xff]
        %v560 = vld [vmem:[%s467 + $0x260] sm:$0xff]
        %v561 = vld [vmem:[%s467 + $0x268] sm:$0xff]
        %v562 = vld [vmem:[%s467 + $0x270] sm:$0xff]
        %v563 = vld [vmem:[%s467 + $0x278] sm:$0xff]
        %v564 = vld [vmem:[%s467 + $0x280] sm:$0xff]
        %v565 = vld [vmem:[%s467 + $0x288] sm:$0xff]
        %v566 = vld [vmem:[%s467 + $0x290] sm:$0xff]
        %v567 = vld [vmem:[%s467 + $0x298] sm:$0xff]
        %v568 = vld [vmem:[%s467 + $0x2a0] sm:$0xff]
        %v569 = vld [vmem:[%s467 + $0x2a8] sm:$0xff]
        %v570 = vld [vmem:[%s467 + $0x2b0] sm:$0xff]
        %v571 = vld [vmem:[%s467 + $0x2b8] sm:$0xff]
        %v572 = vld [vmem:[%s467 + $0x2c0] sm:$0xff]
        %v573 = vld [vmem:[%s467 + $0x2c8] sm:$0xff]
        %v574 = vld [vmem:[%s467 + $0x2d0] sm:$0xff]
        %v575 = vld [vmem:[%s467 + $0x2d8] sm:$0xff]
        %v576 = vld [vmem:[%s467 + $0x2e0] sm:$0xff]
        %v577 = vld [vmem:[%s467 + $0x2e8] sm:$0xff]
        %v578 = vld [vmem:[%s467 + $0x2f0] sm:$0xff]
        %v579 = vld [vmem:[%s467 + $0x2f8] sm:$0xff]
        %v580 = vld [vmem:[%s467 + $0x300] sm:$0xff]
        %v581 = vld [vmem:[%s467 + $0x308] sm:$0xff]
        %v582 = vld [vmem:[%s467 + $0x310] sm:$0xff]
        %v583 = vld [vmem:[%s467 + $0x318] sm:$0xff]
        %v584 = vld [vmem:[%s467 + $0x320] sm:$0xff]
        %v585 = vld [vmem:[%s467 + $0x328] sm:$0xff]
        %v586 = vld [vmem:[%s467 + $0x330] sm:$0xff]
        %v587 = vld [vmem:[%s467 + $0x338] sm:$0xff]
        %v588 = vld [vmem:[%s467 + $0x340] sm:$0xff]
        %v589 = vld [vmem:[%s467 + $0x348] sm:$0xff]
        %v590 = vld [vmem:[%s467 + $0x350] sm:$0xff]
        %v591 = vld [vmem:[%s467 + $0x358] sm:$0xff]
        %v592 = vld [vmem:[%s467 + $0x360] sm:$0xff]
        %v593 = vld [vmem:[%s467 + $0x368] sm:$0xff]
        %v594 = vld [vmem:[%s467 + $0x370] sm:$0xff]
        %v595 = vld [vmem:[%s467 + $0x378] sm:$0xff]
        %v596 = vld [vmem:[%s10] sm:$0xff]
        %v597 = vpack.c.bf16 %v491, %v484
        %v598 = vpack.c.bf16 %v492, %v485
        %v599 = vpack.c.bf16 %v493, %v486
        %v600 = vpack.c.bf16 %v494, %v487
        %v601 = vpack.c.bf16 %v495, %v488
        %v602 = vpack.c.bf16 %v496, %v489
        %v603 = vpack.c.bf16 %v497, %v490
        %v604 = vpack.c.bf16 %v505, %v498
        %v605 = vpack.c.bf16 %v506, %v499
        %v606 = vpack.c.bf16 %v507, %v500
        %v607 = vpack.c.bf16 %v508, %v501
        %v608 = vpack.c.bf16 %v509, %v502
        %v609 = vpack.c.bf16 %v510, %v503
        %v610 = vpack.c.bf16 %v511, %v504
        %v611 = vpack.c.bf16 %v519, %v512
        %v612 = vpack.c.bf16 %v520, %v513
        %v613 = vpack.c.bf16 %v521, %v514
        %v614 = vpack.c.bf16 %v522, %v515
        %v615 = vpack.c.bf16 %v523, %v516
        %v616 = vpack.c.bf16 %v524, %v517
        %v617 = vpack.c.bf16 %v525, %v518
        %v618 = vpack.c.bf16 %v533, %v526
        %v619 = vpack.c.bf16 %v534, %v527
        %v620 = vpack.c.bf16 %v535, %v528
        %v621 = vpack.c.bf16 %v536, %v529
        %v622 = vpack.c.bf16 %v537, %v530
        %v623 = vpack.c.bf16 %v538, %v531
        %v624 = vpack.c.bf16 %v539, %v532
        %v625 = vpack.c.bf16 %v547, %v540
        %v626 = vpack.c.bf16 %v548, %v541
        %v627 = vpack.c.bf16 %v549, %v542
        %v628 = vpack.c.bf16 %v550, %v543
        %v629 = vpack.c.bf16 %v551, %v544
        %v630 = vpack.c.bf16 %v552, %v545
        %v631 = vpack.c.bf16 %v553, %v546
        %v632 = vpack.c.bf16 %v561, %v554
        %v633 = vpack.c.bf16 %v562, %v555
        %v634 = vpack.c.bf16 %v563, %v556
        %v635 = vpack.c.bf16 %v564, %v557
        %v636 = vpack.c.bf16 %v565, %v558
        %v637 = vpack.c.bf16 %v566, %v559
        %v638 = vpack.c.bf16 %v567, %v560
        %v639 = vpack.c.bf16 %v575, %v568
        %v640 = vpack.c.bf16 %v576, %v569
        %v641 = vpack.c.bf16 %v577, %v570
        %v642 = vpack.c.bf16 %v578, %v571
        %v643 = vpack.c.bf16 %v579, %v572
        %v644 = vpack.c.bf16 %v580, %v573
        %v645 = vpack.c.bf16 %v581, %v574
        %v646 = vpack.c.bf16 %v589, %v582
        %v647 = vpack.c.bf16 %v590, %v583
        %v648 = vpack.c.bf16 %v591, %v584
        %v649 = vpack.c.bf16 %v592, %v585
        %v650 = vpack.c.bf16 %v593, %v586
        %v651 = vpack.c.bf16 %v594, %v587
        %v652 = vpack.c.bf16 %v595, %v588
        %v653 = vld [vmem:[%s2] sm:$0xf]
        %v654 = vld [vmem:[%s2 + $0x4] sm:$0xf]
        %v655 = vld [vmem:[%s2 + $0x8] sm:$0xf]
        %v656 = vld [vmem:[%s2 + $0xc] sm:$0xf]
        %v657 = vld [vmem:[%s2 + $0x10] sm:$0xf]
        %v658 = vld [vmem:[%s2 + $0x14] sm:$0xf]
        %v659 = vld [vmem:[%s2 + $0x18] sm:$0xf]
        %v660 = vld [vmem:[%s2 + $0x1c] sm:$0xf]
        %v661 = vld [vmem:[%s2 + $0x20] sm:$0xf]
        %v662 = vld [vmem:[%s2 + $0x24] sm:$0xf]
        %v663 = vld [vmem:[%s2 + $0x28] sm:$0xf]
        %v664 = vld [vmem:[%s2 + $0x2c] sm:$0xf]
        %v665 = vld [vmem:[%s2 + $0x30] sm:$0xf]
        %v666 = vld [vmem:[%s2 + $0x34] sm:$0xf]
        %v667 = vld [vmem:[%s2 + $0x38] sm:$0xf]
        %v668 = vld [vmem:[%s2 + $0x3c] sm:$0xf]
        %v669 = vld [vmem:[%s2 + $0x40] sm:$0xf]
        %v670 = vld [vmem:[%s2 + $0x44] sm:$0xf]
        %v671 = vld [vmem:[%s2 + $0x48] sm:$0xf]
        %v672 = vld [vmem:[%s2 + $0x4c] sm:$0xf]
        %v673 = vld [vmem:[%s2 + $0x50] sm:$0xf]
        %v674 = vld [vmem:[%s2 + $0x54] sm:$0xf]
        %v675 = vld [vmem:[%s2 + $0x58] sm:$0xf]
        %v676 = vld [vmem:[%s2 + $0x5c] sm:$0xf]
        %v677 = vld [vmem:[%s2 + $0x60] sm:$0xf]
        %v678 = vld [vmem:[%s2 + $0x64] sm:$0xf]
        %v679 = vld [vmem:[%s2 + $0x68] sm:$0xf]
        %v680 = vld [vmem:[%s2 + $0x6c] sm:$0xf]
        %v681 = vld [vmem:[%s2 + $0x70] sm:$0xf]
        %v682 = vld [vmem:[%s2 + $0x74] sm:$0xf]
        %v683 = vld [vmem:[%s2 + $0x78] sm:$0xf]
        %v684 = vld [vmem:[%s2 + $0x7c] sm:$0xf]
        %v685 = vld [vmem:[%s2 + $0x80] sm:$0xf]
        %v686 = vld [vmem:[%s2 + $0x84] sm:$0xf]
        %v687 = vld [vmem:[%s2 + $0x88] sm:$0xf]
        %v688 = vld [vmem:[%s2 + $0x8c] sm:$0xf]
        %v689 = vld [vmem:[%s2 + $0x90] sm:$0xf]
        %v690 = vld [vmem:[%s2 + $0x94] sm:$0xf]
        %v691 = vld [vmem:[%s2 + $0x98] sm:$0xf]
        %v692 = vld [vmem:[%s2 + $0x9c] sm:$0xf]
        %v693 = vld [vmem:[%s2 + $0xa0] sm:$0xf]
        %v694 = vld [vmem:[%s2 + $0xa4] sm:$0xf]
        %v695 = vld [vmem:[%s2 + $0xa8] sm:$0xf]
        %v696 = vld [vmem:[%s2 + $0xac] sm:$0xf]
        %v697 = vld [vmem:[%s2 + $0xb0] sm:$0xf]
        %v698 = vld [vmem:[%s2 + $0xb4] sm:$0xf]
        %v699 = vld [vmem:[%s2 + $0xb8] sm:$0xf]
        %v700 = vld [vmem:[%s2 + $0xbc] sm:$0xf]
        %v701 = vld [vmem:[%s2 + $0xc0] sm:$0xf]
        %v702 = vld [vmem:[%s2 + $0xc4] sm:$0xf]
        %v703 = vld [vmem:[%s2 + $0xc8] sm:$0xf]
        %v704 = vld [vmem:[%s2 + $0xcc] sm:$0xf]
        %v705 = vld [vmem:[%s2 + $0xd0] sm:$0xf]
        %v706 = vld [vmem:[%s2 + $0xd4] sm:$0xf]
        %v707 = vld [vmem:[%s2 + $0xd8] sm:$0xf]
        %v708 = vld [vmem:[%s2 + $0xdc] sm:$0xf]
        %v709 = vld [vmem:[%s2 + $0xe0] sm:$0xf]
        %v710 = vld [vmem:[%s2 + $0xe4] sm:$0xf]
        %v711 = vld [vmem:[%s2 + $0xe8] sm:$0xf]
        %v712 = vld [vmem:[%s2 + $0xec] sm:$0xf]
        %v713 = vld [vmem:[%s2 + $0xf0] sm:$0xf]
        %v714 = vld [vmem:[%s2 + $0xf4] sm:$0xf]
        %v715 = vld [vmem:[%s2 + $0xf8] sm:$0xf]
        %v716 = vld [vmem:[%s2 + $0xfc] sm:$0xf]
        %v717 = vld [vmem:[%s2 + $0x100] sm:$0xf]
        %v718 = vld [vmem:[%s2 + $0x104] sm:$0xf]
        %v719 = vld [vmem:[%s2 + $0x108] sm:$0xf]
        %v720 = vld [vmem:[%s2 + $0x10c] sm:$0xf]
        %v721 = vld [vmem:[%s2 + $0x110] sm:$0xf]
        %v722 = vld [vmem:[%s2 + $0x114] sm:$0xf]
        %v723 = vld [vmem:[%s2 + $0x118] sm:$0xf]
        %v724 = vld [vmem:[%s2 + $0x11c] sm:$0xf]
        %v725 = vld [vmem:[%s2 + $0x120] sm:$0xf]
        %v726 = vld [vmem:[%s2 + $0x124] sm:$0xf]
        %v727 = vld [vmem:[%s2 + $0x128] sm:$0xf]
        %v728 = vld [vmem:[%s2 + $0x12c] sm:$0xf]
        %v729 = vld [vmem:[%s2 + $0x130] sm:$0xf]
        %v730 = vld [vmem:[%s2 + $0x134] sm:$0xf]
        %v731 = vld [vmem:[%s2 + $0x138] sm:$0xf]
        %v732 = vld [vmem:[%s2 + $0x13c] sm:$0xf]
        %v733 = vld [vmem:[%s2 + $0x140] sm:$0xf]
        %v734 = vld [vmem:[%s2 + $0x144] sm:$0xf]
        %v735 = vld [vmem:[%s2 + $0x148] sm:$0xf]
        %v736 = vld [vmem:[%s2 + $0x14c] sm:$0xf]
        %v737 = vld [vmem:[%s2 + $0x150] sm:$0xf]
        %v738 = vld [vmem:[%s2 + $0x154] sm:$0xf]
        %v739 = vld [vmem:[%s2 + $0x158] sm:$0xf]
        %v740 = vld [vmem:[%s2 + $0x15c] sm:$0xf]
        %v741 = vld [vmem:[%s2 + $0x160] sm:$0xf]
        %v742 = vld [vmem:[%s2 + $0x164] sm:$0xf]
        %v743 = vld [vmem:[%s2 + $0x168] sm:$0xf]
        %v744 = vld [vmem:[%s2 + $0x16c] sm:$0xf]
        %v745 = vld [vmem:[%s2 + $0x170] sm:$0xf]
        %v746 = vld [vmem:[%s2 + $0x174] sm:$0xf]
        %v747 = vld [vmem:[%s2 + $0x178] sm:$0xf]
        %v748 = vld [vmem:[%s2 + $0x17c] sm:$0xf]
        %v749 = vld [vmem:[%s2 + $0x180] sm:$0xf]
        %v750 = vld [vmem:[%s2 + $0x184] sm:$0xf]
        %v751 = vperm.slane %v596, 0
        %v850 = vunpack.c.l.b16 %v653
        %v851 = vunpack.c.l.b16 %v654
        %v852 = vunpack.c.l.b16 %v655
        %v853 = vunpack.c.l.b16 %v656
        %v854 = vunpack.c.l.b16 %v657
        %v855 = vunpack.c.l.b16 %v658
        %v856 = vunpack.c.l.b16 %v659
        %v857 = vunpack.c.l.b16 %v660
        %v858 = vunpack.c.l.b16 %v661
        %v859 = vunpack.c.l.b16 %v662
        %v860 = vunpack.c.l.b16 %v663
        %v861 = vunpack.c.l.b16 %v664
        %v862 = vunpack.c.l.b16 %v665
        %v863 = vunpack.c.l.b16 %v666
        %v864 = vunpack.c.l.b16 %v667
        %v865 = vunpack.c.l.b16 %v668
        %v866 = vunpack.c.l.b16 %v669
        %v867 = vunpack.c.l.b16 %v670
        %v868 = vunpack.c.l.b16 %v671
        %v869 = vunpack.c.l.b16 %v672
        %v870 = vunpack.c.l.b16 %v673
        %v871 = vunpack.c.l.b16 %v674
        %v872 = vunpack.c.l.b16 %v675
        %v873 = vunpack.c.l.b16 %v676
        %v874 = vunpack.c.l.b16 %v677
        %v875 = vunpack.c.l.b16 %v678
        %v876 = vunpack.c.l.b16 %v679
        %v877 = vunpack.c.l.b16 %v680
        %v878 = vunpack.c.l.b16 %v681
        %v879 = vunpack.c.l.b16 %v682
        %v880 = vunpack.c.l.b16 %v683
        %v881 = vunpack.c.l.b16 %v684
        %v882 = vunpack.c.l.b16 %v685
        %v883 = vunpack.c.l.b16 %v686
        %v884 = vunpack.c.l.b16 %v687
        %v885 = vunpack.c.l.b16 %v688
        %v886 = vunpack.c.l.b16 %v689
        %v887 = vunpack.c.l.b16 %v690
        %v888 = vunpack.c.l.b16 %v691
        %v889 = vunpack.c.l.b16 %v692
        %v890 = vunpack.c.l.b16 %v693
        %v891 = vunpack.c.l.b16 %v694
        %v892 = vunpack.c.l.b16 %v695
        %v893 = vunpack.c.l.b16 %v696
        %v894 = vunpack.c.l.b16 %v697
        %v895 = vunpack.c.l.b16 %v698
        %v896 = vunpack.c.l.b16 %v699
        %v897 = vunpack.c.l.b16 %v700
        %v898 = vunpack.c.l.b16 %v701
        %v899 = vunpack.c.l.b16 %v702
        %v900 = vunpack.c.l.b16 %v703
        %v901 = vunpack.c.l.b16 %v704
        %v902 = vunpack.c.l.b16 %v705
        %v903 = vunpack.c.l.b16 %v706
        %v904 = vunpack.c.l.b16 %v707
        %v905 = vunpack.c.l.b16 %v708
        %v906 = vunpack.c.l.b16 %v709
        %v907 = vunpack.c.l.b16 %v710
        %v908 = vunpack.c.l.b16 %v711
        %v909 = vunpack.c.l.b16 %v712
        %v910 = vunpack.c.l.b16 %v713
        %v911 = vunpack.c.l.b16 %v714
        %v912 = vunpack.c.l.b16 %v715
        %v913 = vunpack.c.l.b16 %v716
        %v914 = vunpack.c.l.b16 %v717
        %v915 = vunpack.c.l.b16 %v718
        %v916 = vunpack.c.l.b16 %v719
        %v917 = vunpack.c.l.b16 %v720
        %v918 = vunpack.c.l.b16 %v721
        %v919 = vunpack.c.l.b16 %v722
        %v920 = vunpack.c.l.b16 %v723
        %v921 = vunpack.c.l.b16 %v724
        %v922 = vunpack.c.l.b16 %v725
        %v923 = vunpack.c.l.b16 %v726
        %v924 = vunpack.c.l.b16 %v727
        %v925 = vunpack.c.l.b16 %v728
        %v926 = vunpack.c.l.b16 %v729
        %v927 = vunpack.c.l.b16 %v730
        %v928 = vunpack.c.l.b16 %v731
        %v929 = vunpack.c.l.b16 %v732
        %v930 = vunpack.c.l.b16 %v733
        %v931 = vunpack.c.l.b16 %v734
        %v932 = vunpack.c.l.b16 %v735
        %v933 = vunpack.c.l.b16 %v736
        %v934 = vunpack.c.l.b16 %v737
        %v935 = vunpack.c.l.b16 %v738
        %v936 = vunpack.c.l.b16 %v739
        %v937 = vunpack.c.l.b16 %v740
        %v938 = vunpack.c.l.b16 %v741
        %v939 = vunpack.c.l.b16 %v742
        %v940 = vunpack.c.l.b16 %v743
        %v941 = vunpack.c.l.b16 %v744
        %v942 = vunpack.c.l.b16 %v745
        %v943 = vunpack.c.l.b16 %v746
        %v944 = vunpack.c.l.b16 %v747
        %v945 = vunpack.c.l.b16 %v748
        %v946 = vunpack.c.l.b16 %v749
        %v947 = vunpack.c.l.b16 %v750
        %v948 = vpack.c.b16 %v851, %v850
        %v949 = vpack.c.b16 %v853, %v852
        %v950 = vpack.c.b16 %v855, %v854
        %v951 = vpack.c.b16 %v857, %v856
        %v952 = vpack.c.b16 %v859, %v858
        %v953 = vpack.c.b16 %v861, %v860
        %v954 = vpack.c.b16 %v863, %v862
        %v955 = vpack.c.b16 %v865, %v864
        %v956 = vpack.c.b16 %v867, %v866
        %v957 = vpack.c.b16 %v869, %v868
        %v958 = vpack.c.b16 %v871, %v870
        %v959 = vpack.c.b16 %v873, %v872
        %v960 = vpack.c.b16 %v875, %v874
        %v961 = vpack.c.b16 %v877, %v876
        %v962 = vpack.c.b16 %v879, %v878
        %v963 = vpack.c.b16 %v881, %v880
        %v964 = vpack.c.b16 %v883, %v882
        %v965 = vpack.c.b16 %v885, %v884
        %v966 = vpack.c.b16 %v887, %v886
        %v967 = vpack.c.b16 %v889, %v888
        %v968 = vpack.c.b16 %v891, %v890
        %v969 = vpack.c.b16 %v893, %v892
        %v970 = vpack.c.b16 %v895, %v894
        %v971 = vpack.c.b16 %v897, %v896
        %v972 = vpack.c.b16 %v899, %v898
        %v973 = vpack.c.b16 %v901, %v900
        %v974 = vpack.c.b16 %v903, %v902
        %v975 = vpack.c.b16 %v905, %v904
        %v976 = vpack.c.b16 %v907, %v906
        %v977 = vpack.c.b16 %v909, %v908
        %v978 = vpack.c.b16 %v911, %v910
        %v979 = vpack.c.b16 %v913, %v912
        %v980 = vpack.c.b16 %v915, %v914
        %v981 = vpack.c.b16 %v917, %v916
        %v982 = vpack.c.b16 %v919, %v918
        %v983 = vpack.c.b16 %v921, %v920
        %v984 = vpack.c.b16 %v923, %v922
        %v985 = vpack.c.b16 %v925, %v924
        %v986 = vpack.c.b16 %v927, %v926
        %v987 = vpack.c.b16 %v929, %v928
        %v988 = vpack.c.b16 %v931, %v930
        %v989 = vpack.c.b16 %v933, %v932
        %v990 = vpack.c.b16 %v935, %v934
        %v991 = vpack.c.b16 %v937, %v936
        %v992 = vpack.c.b16 %v939, %v938
        %v993 = vpack.c.b16 %v941, %v940
        %v994 = vpack.c.b16 %v943, %v942
        %v995 = vpack.c.b16 %v945, %v944
        %v996 = vpack.c.b16 %v947, %v946
        %vm1046 = vcmask 130048
        %v1048 = vsel %vm1046, %v603, 0
        %v1051 = vsel %vm1046, %v610, 0
        %v1054 = vsel %vm1046, %v617, 0
        %v1057 = vsel %vm1046, %v624, 0
        %v1060 = vsel %vm1046, %v631, 0
        %v1063 = vsel %vm1046, %v638, 0
        %v1066 = vsel %vm1046, %v645, 0
        %v1069 = vsel %vm1046, %v652, 0
        %1071 = vmatpush.bf16.msra.mxu0 %v955
        %1072 = vmatpush.bf16.msra.mxu0 %v954
        %1073 = vmatpush.bf16.msra.mxu0 %v953
        %1074 = vmatpush.bf16.msra.mxu0 %v952
        %1075 = vmatpush.bf16.msra.mxu0 %v951
        %1076 = vmatpush.bf16.msra.mxu0 %v950
        %1077 = vmatpush.bf16.msra.mxu0 %v949
        %1078 = vmatpush.bf16.msra.mxu0 %v948
        %1079 = vmatmul.bf16.gmra.mxu0 %v597
        %v1080 = vpop.f32.mrf.mxu0
        %v1081 = vadd.f32 %v751, %v1080
        %v1082 = vpop.f32.mrf.mxu0
        %v1083 = vadd.f32 %v751, %v1082
        %1084 = vmatmul.bf16.gmra.mxu0 %v604
        %v1085 = vpop.f32.mrf.mxu0
        %v1086 = vadd.f32 %v751, %v1085
        %v1087 = vpop.f32.mrf.mxu0
        %v1088 = vadd.f32 %v751, %v1087
        %1089 = vmatmul.bf16.gmra.mxu0 %v611
        %v1090 = vpop.f32.mrf.mxu0
        %v1091 = vadd.f32 %v751, %v1090
        %v1092 = vpop.f32.mrf.mxu0
        %v1093 = vadd.f32 %v751, %v1092
        %1094 = vmatmul.bf16.gmra.mxu0 %v618
        %v1095 = vpop.f32.mrf.mxu0
        %v1096 = vadd.f32 %v751, %v1095
        %v1097 = vpop.f32.mrf.mxu0
        %v1098 = vadd.f32 %v751, %v1097
        %1099 = vmatmul.bf16.gmra.mxu0 %v625
        %v1100 = vpop.f32.mrf.mxu0
        %v1101 = vadd.f32 %v751, %v1100
        %v1102 = vpop.f32.mrf.mxu0
        %v1103 = vadd.f32 %v751, %v1102
        %1104 = vmatmul.bf16.gmra.mxu0 %v632
        %v1105 = vpop.f32.mrf.mxu0
        %v1106 = vadd.f32 %v751, %v1105
        %v1107 = vpop.f32.mrf.mxu0
        %v1108 = vadd.f32 %v751, %v1107
        %1109 = vmatmul.bf16.gmra.mxu0 %v639
        %v1110 = vpop.f32.mrf.mxu0
        %v1111 = vadd.f32 %v751, %v1110
        %v1112 = vpop.f32.mrf.mxu0
        %v1113 = vadd.f32 %v751, %v1112
        %1114 = vmatmul.bf16.gmra.mxu0 %v646
        %v1115 = vpop.f32.mrf.mxu0
        %v1116 = vadd.f32 %v751, %v1115
        %v1117 = vpop.f32.mrf.mxu0
        %v1118 = vadd.f32 %v751, %v1117
        %1119 = vdwg.mxu0
        %1120 = vmatpush.bf16.msra.mxu0 %v963
        %1121 = vmatpush.bf16.msra.mxu0 %v962
        %1122 = vmatpush.bf16.msra.mxu0 %v961
        %1123 = vmatpush.bf16.msra.mxu0 %v960
        %1124 = vmatpush.bf16.msra.mxu0 %v959
        %1125 = vmatpush.bf16.msra.mxu0 %v958
        %1126 = vmatpush.bf16.msra.mxu0 %v957
        %1127 = vmatpush.bf16.msra.mxu0 %v956
        %1128 = vmatmul.bf16.gmra.mxu0 %v598
        %v1129 = vpop.f32.mrf.mxu0
        %v1130 = vadd.f32 %v1081, %v1129
        %v1131 = vpop.f32.mrf.mxu0
        %v1132 = vadd.f32 %v1083, %v1131
        %1133 = vmatmul.bf16.gmra.mxu0 %v605
        %v1134 = vpop.f32.mrf.mxu0
        %v1135 = vadd.f32 %v1086, %v1134
        %v1136 = vpop.f32.mrf.mxu0
        %v1137 = vadd.f32 %v1088, %v1136
        %1138 = vmatmul.bf16.gmra.mxu0 %v612
        %v1139 = vpop.f32.mrf.mxu0
        %v1140 = vadd.f32 %v1091, %v1139
        %v1141 = vpop.f32.mrf.mxu0
        %v1142 = vadd.f32 %v1093, %v1141
        %1143 = vmatmul.bf16.gmra.mxu0 %v619
        %v1144 = vpop.f32.mrf.mxu0
        %v1145 = vadd.f32 %v1096, %v1144
        %v1146 = vpop.f32.mrf.mxu0
        %v1147 = vadd.f32 %v1098, %v1146
        %1148 = vmatmul.bf16.gmra.mxu0 %v626
        %v1149 = vpop.f32.mrf.mxu0
        %v1150 = vadd.f32 %v1101, %v1149
        %v1151 = vpop.f32.mrf.mxu0
        %v1152 = vadd.f32 %v1103, %v1151
        %1153 = vmatmul.bf16.gmra.mxu0 %v633
        %v1154 = vpop.f32.mrf.mxu0
        %v1155 = vadd.f32 %v1106, %v1154
        %v1156 = vpop.f32.mrf.mxu0
        %v1157 = vadd.f32 %v1108, %v1156
        %1158 = vmatmul.bf16.gmra.mxu0 %v640
        %v1159 = vpop.f32.mrf.mxu0
        %v1160 = vadd.f32 %v1111, %v1159
        %v1161 = vpop.f32.mrf.mxu0
        %v1162 = vadd.f32 %v1113, %v1161
        %1163 = vmatmul.bf16.gmra.mxu0 %v647
        %v1164 = vpop.f32.mrf.mxu0
        %v1165 = vadd.f32 %v1116, %v1164
        %v1166 = vpop.f32.mrf.mxu0
        %v1167 = vadd.f32 %v1118, %v1166
        %1168 = vdwg.mxu0
        %1169 = vmatpush.bf16.msra.mxu0 %v971
        %1170 = vmatpush.bf16.msra.mxu0 %v970
        %1171 = vmatpush.bf16.msra.mxu0 %v969
        %1172 = vmatpush.bf16.msra.mxu0 %v968
        %1173 = vmatpush.bf16.msra.mxu0 %v967
        %1174 = vmatpush.bf16.msra.mxu0 %v966
        %1175 = vmatpush.bf16.msra.mxu0 %v965
        %1176 = vmatpush.bf16.msra.mxu0 %v964
        %1177 = vmatmul.bf16.gmra.mxu0 %v599
        %v1178 = vpop.f32.mrf.mxu0
        %v1179 = vadd.f32 %v1130, %v1178
        %v1180 = vpop.f32.mrf.mxu0
        %v1181 = vadd.f32 %v1132, %v1180
        %1182 = vmatmul.bf16.gmra.mxu0 %v606
        %v1183 = vpop.f32.mrf.mxu0
        %v1184 = vadd.f32 %v1135, %v1183
        %v1185 = vpop.f32.mrf.mxu0
        %v1186 = vadd.f32 %v1137, %v1185
        %1187 = vmatmul.bf16.gmra.mxu0 %v613
        %v1188 = vpop.f32.mrf.mxu0
        %v1189 = vadd.f32 %v1140, %v1188
        %v1190 = vpop.f32.mrf.mxu0
        %v1191 = vadd.f32 %v1142, %v1190
        %1192 = vmatmul.bf16.gmra.mxu0 %v620
        %v1193 = vpop.f32.mrf.mxu0
        %v1194 = vadd.f32 %v1145, %v1193
        %v1195 = vpop.f32.mrf.mxu0
        %v1196 = vadd.f32 %v1147, %v1195
        %1197 = vmatmul.bf16.gmra.mxu0 %v627
        %v1198 = vpop.f32.mrf.mxu0
        %v1199 = vadd.f32 %v1150, %v1198
        %v1200 = vpop.f32.mrf.mxu0
        %v1201 = vadd.f32 %v1152, %v1200
        %1202 = vmatmul.bf16.gmra.mxu0 %v634
        %v1203 = vpop.f32.mrf.mxu0
        %v1204 = vadd.f32 %v1155, %v1203
        %v1205 = vpop.f32.mrf.mxu0
        %v1206 = vadd.f32 %v1157, %v1205
        %1207 = vmatmul.bf16.gmra.mxu0 %v641
        %v1208 = vpop.f32.mrf.mxu0
        %v1209 = vadd.f32 %v1160, %v1208
        %v1210 = vpop.f32.mrf.mxu0
        %v1211 = vadd.f32 %v1162, %v1210
        %1212 = vmatmul.bf16.gmra.mxu0 %v648
        %v1213 = vpop.f32.mrf.mxu0
        %v1214 = vadd.f32 %v1165, %v1213
        %v1215 = vpop.f32.mrf.mxu0
        %v1216 = vadd.f32 %v1167, %v1215
        %1217 = vdwg.mxu0
        %1218 = vmatpush.bf16.msra.mxu0 %v979
        %1219 = vmatpush.bf16.msra.mxu0 %v978
        %1220 = vmatpush.bf16.msra.mxu0 %v977
        %1221 = vmatpush.bf16.msra.mxu0 %v976
        %1222 = vmatpush.bf16.msra.mxu0 %v975
        %1223 = vmatpush.bf16.msra.mxu0 %v974
        %1224 = vmatpush.bf16.msra.mxu0 %v973
        %1225 = vmatpush.bf16.msra.mxu0 %v972
        %1226 = vmatmul.bf16.gmra.mxu0 %v600
        %v1227 = vpop.f32.mrf.mxu0
        %v1228 = vadd.f32 %v1179, %v1227
        %v1229 = vpop.f32.mrf.mxu0
        %v1230 = vadd.f32 %v1181, %v1229
        %1231 = vmatmul.bf16.gmra.mxu0 %v607
        %v1232 = vpop.f32.mrf.mxu0
        %v1233 = vadd.f32 %v1184, %v1232
        %v1234 = vpop.f32.mrf.mxu0
        %v1235 = vadd.f32 %v1186, %v1234
        %1236 = vmatmul.bf16.gmra.mxu0 %v614
        %v1237 = vpop.f32.mrf.mxu0
        %v1238 = vadd.f32 %v1189, %v1237
        %v1239 = vpop.f32.mrf.mxu0
        %v1240 = vadd.f32 %v1191, %v1239
        %1241 = vmatmul.bf16.gmra.mxu0 %v621
        %v1242 = vpop.f32.mrf.mxu0
        %v1243 = vadd.f32 %v1194, %v1242
        %v1244 = vpop.f32.mrf.mxu0
        %v1245 = vadd.f32 %v1196, %v1244
        %1246 = vmatmul.bf16.gmra.mxu0 %v628
        %v1247 = vpop.f32.mrf.mxu0
        %v1248 = vadd.f32 %v1199, %v1247
        %v1249 = vpop.f32.mrf.mxu0
        %v1250 = vadd.f32 %v1201, %v1249
        %1251 = vmatmul.bf16.gmra.mxu0 %v635
        %v1252 = vpop.f32.mrf.mxu0
        %v1253 = vadd.f32 %v1204, %v1252
        %v1254 = vpop.f32.mrf.mxu0
        %v1255 = vadd.f32 %v1206, %v1254
        %1256 = vmatmul.bf16.gmra.mxu0 %v642
        %v1257 = vpop.f32.mrf.mxu0
        %v1258 = vadd.f32 %v1209, %v1257
        %v1259 = vpop.f32.mrf.mxu0
        %v1260 = vadd.f32 %v1211, %v1259
        %1261 = vmatmul.bf16.gmra.mxu0 %v649
        %v1262 = vpop.f32.mrf.mxu0
        %v1263 = vadd.f32 %v1214, %v1262
        %v1264 = vpop.f32.mrf.mxu0
        %v1265 = vadd.f32 %v1216, %v1264
        %1266 = vdwg.mxu0
        %1267 = vmatpush.bf16.msra.mxu0 %v987
        %1268 = vmatpush.bf16.msra.mxu0 %v986
        %1269 = vmatpush.bf16.msra.mxu0 %v985
        %1270 = vmatpush.bf16.msra.mxu0 %v984
        %1271 = vmatpush.bf16.msra.mxu0 %v983
        %1272 = vmatpush.bf16.msra.mxu0 %v982
        %1273 = vmatpush.bf16.msra.mxu0 %v981
        %1274 = vmatpush.bf16.msra.mxu0 %v980
        %1275 = vmatmul.bf16.gmra.mxu0 %v601
        %v1276 = vpop.f32.mrf.mxu0
        %v1277 = vadd.f32 %v1228, %v1276
        %v1278 = vpop.f32.mrf.mxu0
        %v1279 = vadd.f32 %v1230, %v1278
        %1280 = vmatmul.bf16.gmra.mxu0 %v608
        %v1281 = vpop.f32.mrf.mxu0
        %v1282 = vadd.f32 %v1233, %v1281
        %v1283 = vpop.f32.mrf.mxu0
        %v1284 = vadd.f32 %v1235, %v1283
        %1285 = vmatmul.bf16.gmra.mxu0 %v615
        %v1286 = vpop.f32.mrf.mxu0
        %v1287 = vadd.f32 %v1238, %v1286
        %v1288 = vpop.f32.mrf.mxu0
        %v1289 = vadd.f32 %v1240, %v1288
        %1290 = vmatmul.bf16.gmra.mxu0 %v622
        %v1291 = vpop.f32.mrf.mxu0
        %v1292 = vadd.f32 %v1243, %v1291
        %v1293 = vpop.f32.mrf.mxu0
        %v1294 = vadd.f32 %v1245, %v1293
        %1295 = vmatmul.bf16.gmra.mxu0 %v629
        %v1296 = vpop.f32.mrf.mxu0
        %v1297 = vadd.f32 %v1248, %v1296
        %v1298 = vpop.f32.mrf.mxu0
        %v1299 = vadd.f32 %v1250, %v1298
        %1300 = vmatmul.bf16.gmra.mxu0 %v636
        %v1301 = vpop.f32.mrf.mxu0
        %v1302 = vadd.f32 %v1253, %v1301
        %v1303 = vpop.f32.mrf.mxu0
        %v1304 = vadd.f32 %v1255, %v1303
        %1305 = vmatmul.bf16.gmra.mxu0 %v643
        %v1306 = vpop.f32.mrf.mxu0
        %v1307 = vadd.f32 %v1258, %v1306
        %v1308 = vpop.f32.mrf.mxu0
        %v1309 = vadd.f32 %v1260, %v1308
        %1310 = vmatmul.bf16.gmra.mxu0 %v650
        %v1311 = vpop.f32.mrf.mxu0
        %v1312 = vadd.f32 %v1263, %v1311
        %v1313 = vpop.f32.mrf.mxu0
        %v1314 = vadd.f32 %v1265, %v1313
        %1315 = vdwg.mxu0
        %1316 = vmatpush.bf16.msra.mxu0 %v995
        %1317 = vmatpush.bf16.msra.mxu0 %v994
        %1318 = vmatpush.bf16.msra.mxu0 %v993
        %1319 = vmatpush.bf16.msra.mxu0 %v992
        %1320 = vmatpush.bf16.msra.mxu0 %v991
        %1321 = vmatpush.bf16.msra.mxu0 %v990
        %1322 = vmatpush.bf16.msra.mxu0 %v989
        %1323 = vmatpush.bf16.msra.mxu0 %v988
        %1324 = vmatmul.bf16.gmra.mxu0 %v602
        %v1325 = vpop.f32.mrf.mxu0
        %v1326 = vadd.f32 %v1277, %v1325
        %v1327 = vpop.f32.mrf.mxu0
        %v1328 = vadd.f32 %v1279, %v1327
        %1329 = vmatmul.bf16.gmra.mxu0 %v609
        %v1330 = vpop.f32.mrf.mxu0
        %v1331 = vadd.f32 %v1282, %v1330
        %v1332 = vpop.f32.mrf.mxu0
        %v1333 = vadd.f32 %v1284, %v1332
        %1334 = vmatmul.bf16.gmra.mxu0 %v616
        %v1335 = vpop.f32.mrf.mxu0
        %v1336 = vadd.f32 %v1287, %v1335
        %v1337 = vpop.f32.mrf.mxu0
        %v1338 = vadd.f32 %v1289, %v1337
        %1339 = vmatmul.bf16.gmra.mxu0 %v623
        %v1340 = vpop.f32.mrf.mxu0
        %v1341 = vadd.f32 %v1292, %v1340
        %v1342 = vpop.f32.mrf.mxu0
        %v1343 = vadd.f32 %v1294, %v1342
        %1344 = vmatmul.bf16.gmra.mxu0 %v630
        %v1345 = vpop.f32.mrf.mxu0
        %v1346 = vadd.f32 %v1297, %v1345
        %v1347 = vpop.f32.mrf.mxu0
        %v1348 = vadd.f32 %v1299, %v1347
        %1349 = vmatmul.bf16.gmra.mxu0 %v637
        %v1350 = vpop.f32.mrf.mxu0
        %v1351 = vadd.f32 %v1302, %v1350
        %v1352 = vpop.f32.mrf.mxu0
        %v1353 = vadd.f32 %v1304, %v1352
        %1354 = vmatmul.bf16.gmra.mxu0 %v644
        %v1355 = vpop.f32.mrf.mxu0
        %v1356 = vadd.f32 %v1307, %v1355
        %v1357 = vpop.f32.mrf.mxu0
        %v1358 = vadd.f32 %v1309, %v1357
        %1359 = vmatmul.bf16.gmra.mxu0 %v651
        %v1360 = vpop.f32.mrf.mxu0
        %v1361 = vadd.f32 %v1312, %v1360
        %v1362 = vpop.f32.mrf.mxu0
        %v1363 = vadd.f32 %v1314, %v1362
        %1364 = vdwg.mxu0
        %1365 = vmatpush.bf16.msra.mxu0 0
        %1366 = vmatpush.bf16.msra.mxu0 0
        %1367 = vmatpush.bf16.msra.mxu0 0
        %1368 = vmatpush.bf16.msra.mxu0 0
        %1369 = vmatpush.bf16.msra.mxu0 0
        %1370 = vmatpush.bf16.msra.mxu0 0
        %1371 = vmatpush.bf16.msra.mxu0 0
        %1372 = vmatpush.bf16.msra.mxu0 %v996
        %1373 = vmatmul.bf16.gmra.mxu0 %v1048
        %v1374 = vpop.f32.mrf.mxu0
        %v1375 = vadd.f32 %v1326, %v1374
        %v1376 = vpop.f32.mrf.mxu0
        %v1377 = vadd.f32 %v1328, %v1376
        %1378 = vmatmul.bf16.gmra.mxu0 %v1051
        %v1379 = vpop.f32.mrf.mxu0
        %v1380 = vadd.f32 %v1331, %v1379
        %v1381 = vpop.f32.mrf.mxu0
        %v1382 = vadd.f32 %v1333, %v1381
        %1383 = vmatmul.bf16.gmra.mxu0 %v1054
        %v1384 = vpop.f32.mrf.mxu0
        %v1385 = vadd.f32 %v1336, %v1384
        %v1386 = vpop.f32.mrf.mxu0
        %v1387 = vadd.f32 %v1338, %v1386
        %1388 = vmatmul.bf16.gmra.mxu0 %v1057
        %v1389 = vpop.f32.mrf.mxu0
        %v1390 = vadd.f32 %v1341, %v1389
        %v1391 = vpop.f32.mrf.mxu0
        %v1392 = vadd.f32 %v1343, %v1391
        %1393 = vmatmul.bf16.gmra.mxu0 %v1060
        %v1394 = vpop.f32.mrf.mxu0
        %v1395 = vadd.f32 %v1346, %v1394
        %v1396 = vpop.f32.mrf.mxu0
        %v1397 = vadd.f32 %v1348, %v1396
        %1398 = vmatmul.bf16.gmra.mxu0 %v1063
        %v1399 = vpop.f32.mrf.mxu0
        %v1400 = vadd.f32 %v1351, %v1399
        %v1401 = vpop.f32.mrf.mxu0
        %v1402 = vadd.f32 %v1353, %v1401
        %1403 = vmatmul.bf16.gmra.mxu0 %v1066
        %v1404 = vpop.f32.mrf.mxu0
        %v1405 = vadd.f32 %v1356, %v1404
        %v1406 = vpop.f32.mrf.mxu0
        %v1407 = vadd.f32 %v1358, %v1406
        %1408 = vmatmul.bf16.gmra.mxu0 %v1069
        %v1409 = vpop.f32.mrf.mxu0
        %v1410 = vadd.f32 %v1361, %v1409
        %v1411 = vpop.f32.mrf.mxu0
        %v1412 = vadd.f32 %v1363, %v1411
        %1413 = vdwg.mxu0
        %v1414 = vmax.f32 %v1375, 0.0
        %v1415 = vmax.f32 %v1377, 0.0
        %v1416 = vmax.f32 %v1380, 0.0
        %v1417 = vmax.f32 %v1382, 0.0
        %v1418 = vmax.f32 %v1385, 0.0
        %v1419 = vmax.f32 %v1387, 0.0
        %v1420 = vmax.f32 %v1390, 0.0
        %v1421 = vmax.f32 %v1392, 0.0
        %v1422 = vmax.f32 %v1395, 0.0
        %v1423 = vmax.f32 %v1397, 0.0
        %v1424 = vmax.f32 %v1400, 0.0
        %v1425 = vmax.f32 %v1402, 0.0
        %v1426 = vmax.f32 %v1405, 0.0
        %v1427 = vmax.f32 %v1407, 0.0
        %v1428 = vmax.f32 %v1410, 0.0
        %v1429 = vmax.f32 %v1412, 0.0
        %v1430 = vpack.c.bf16 %v1415, %v1414
        %v1431 = vpack.c.bf16 %v1417, %v1416
        %v1432 = vpack.c.bf16 %v1419, %v1418
        %v1433 = vpack.c.bf16 %v1421, %v1420
        %v1434 = vpack.c.bf16 %v1423, %v1422
        %v1435 = vpack.c.bf16 %v1425, %v1424
        %v1436 = vpack.c.bf16 %v1427, %v1426
        %v1437 = vpack.c.bf16 %v1429, %v1428
        %v1438 = vld [vmem:[%s3] sm:$0xf]
        %v1439 = vld [vmem:[%s3 + $0x4] sm:$0xf]
        %v1440 = vld [vmem:[%s3 + $0x8] sm:$0xf]
        %v1441 = vld [vmem:[%s3 + $0xc] sm:$0xf]
        %v1442 = vld [vmem:[%s3 + $0x10] sm:$0xf]
        %v1443 = vld [vmem:[%s3 + $0x14] sm:$0xf]
        %v1444 = vld [vmem:[%s3 + $0x18] sm:$0xf]
        %v1445 = vld [vmem:[%s3 + $0x1c] sm:$0xf]
        %v1446 = vld [vmem:[%s3 + $0x20] sm:$0xf]
        %v1447 = vld [vmem:[%s3 + $0x24] sm:$0xf]
        %v1448 = vld [vmem:[%s3 + $0x28] sm:$0xf]
        %v1449 = vld [vmem:[%s3 + $0x2c] sm:$0xf]
        %v1450 = vld [vmem:[%s3 + $0x30] sm:$0xf]
        %v1451 = vld [vmem:[%s3 + $0x34] sm:$0xf]
        %v1452 = vld [vmem:[%s3 + $0x38] sm:$0xf]
        %v1453 = vld [vmem:[%s3 + $0x3c] sm:$0xf]
        %v1454 = vperm.slane %v596, 1
        %v1471 = vunpack.c.l.b16 %v1438
        %v1472 = vunpack.c.l.b16 %v1439
        %v1473 = vunpack.c.l.b16 %v1440
        %v1474 = vunpack.c.l.b16 %v1441
        %v1475 = vunpack.c.l.b16 %v1442
        %v1476 = vunpack.c.l.b16 %v1443
        %v1477 = vunpack.c.l.b16 %v1444
        %v1478 = vunpack.c.l.b16 %v1445
        %v1479 = vunpack.c.l.b16 %v1446
        %v1480 = vunpack.c.l.b16 %v1447
        %v1481 = vunpack.c.l.b16 %v1448
        %v1482 = vunpack.c.l.b16 %v1449
        %v1483 = vunpack.c.l.b16 %v1450
        %v1484 = vunpack.c.l.b16 %v1451
        %v1485 = vunpack.c.l.b16 %v1452
        %v1486 = vunpack.c.l.b16 %v1453
        %v1487 = vpack.c.b16 %v1472, %v1471
        %v1488 = vpack.c.b16 %v1474, %v1473
        %v1489 = vpack.c.b16 %v1476, %v1475
        %v1490 = vpack.c.b16 %v1478, %v1477
        %v1491 = vpack.c.b16 %v1480, %v1479
        %v1492 = vpack.c.b16 %v1482, %v1481
        %v1493 = vpack.c.b16 %v1484, %v1483
        %v1494 = vpack.c.b16 %v1486, %v1485
        %1503 = vmatpush.bf16.msra.mxu0 %v1494
        %1504 = vmatpush.bf16.msra.mxu0 %v1493
        %1505 = vmatpush.bf16.msra.mxu0 %v1492
        %1506 = vmatpush.bf16.msra.mxu0 %v1491
        %1507 = vmatpush.bf16.msra.mxu0 %v1490
        %1508 = vmatpush.bf16.msra.mxu0 %v1489
        %1509 = vmatpush.bf16.msra.mxu0 %v1488
        %1510 = vmatpush.bf16.msra.mxu0 %v1487
        %1511 = vmatmul.bf16.gmra.mxu0 %v1430
        %v1512 = vpop.f32.mrf.mxu0
        %v1513 = vadd.f32 %v1454, %v1512
        %v1514 = vpop.f32.mrf.mxu0
        %v1515 = vadd.f32 %v1454, %v1514
        %1516 = vmatmul.bf16.gmra.mxu0 %v1431
        %v1517 = vpop.f32.mrf.mxu0
        %v1518 = vadd.f32 %v1454, %v1517
        %v1519 = vpop.f32.mrf.mxu0
        %v1520 = vadd.f32 %v1454, %v1519
        %1521 = vmatmul.bf16.gmra.mxu0 %v1432
        %v1522 = vpop.f32.mrf.mxu0
        %v1523 = vadd.f32 %v1454, %v1522
        %v1524 = vpop.f32.mrf.mxu0
        %v1525 = vadd.f32 %v1454, %v1524
        %1526 = vmatmul.bf16.gmra.mxu0 %v1433
        %v1527 = vpop.f32.mrf.mxu0
        %v1528 = vadd.f32 %v1454, %v1527
        %v1529 = vpop.f32.mrf.mxu0
        %v1530 = vadd.f32 %v1454, %v1529
        %1531 = vmatmul.bf16.gmra.mxu0 %v1434
        %v1532 = vpop.f32.mrf.mxu0
        %v1533 = vadd.f32 %v1454, %v1532
        %v1534 = vpop.f32.mrf.mxu0
        %v1535 = vadd.f32 %v1454, %v1534
        %1536 = vmatmul.bf16.gmra.mxu0 %v1435
        %v1537 = vpop.f32.mrf.mxu0
        %v1538 = vadd.f32 %v1454, %v1537
        %v1539 = vpop.f32.mrf.mxu0
        %v1540 = vadd.f32 %v1454, %v1539
        %1541 = vmatmul.bf16.gmra.mxu0 %v1436
        %v1542 = vpop.f32.mrf.mxu0
        %v1543 = vadd.f32 %v1454, %v1542
        %v1544 = vpop.f32.mrf.mxu0
        %v1545 = vadd.f32 %v1454, %v1544
        %1546 = vmatmul.bf16.gmra.mxu0 %v1437
        %v1547 = vpop.f32.mrf.mxu0
        %v1548 = vadd.f32 %v1454, %v1547
        %v1549 = vpop.f32.mrf.mxu0
        %v1550 = vadd.f32 %v1454, %v1549
        %1551 = vdwg.mxu0
        %v1552 = vmax.f32 %v1513, 0.0
        %v1553 = vmax.f32 %v1515, 0.0
        %v1554 = vmax.f32 %v1518, 0.0
        %v1555 = vmax.f32 %v1520, 0.0
        %v1556 = vmax.f32 %v1523, 0.0
        %v1557 = vmax.f32 %v1525, 0.0
        %v1558 = vmax.f32 %v1528, 0.0
        %v1559 = vmax.f32 %v1530, 0.0
        %v1560 = vmax.f32 %v1533, 0.0
        %v1561 = vmax.f32 %v1535, 0.0
        %v1562 = vmax.f32 %v1538, 0.0
        %v1563 = vmax.f32 %v1540, 0.0
        %v1564 = vmax.f32 %v1543, 0.0
        %v1565 = vmax.f32 %v1545, 0.0
        %v1566 = vmax.f32 %v1548, 0.0
        %v1567 = vmax.f32 %v1550, 0.0
        %v1568 = vpack.c.bf16 %v1553, %v1552
        %v1569 = vpack.c.bf16 %v1555, %v1554
        %v1570 = vpack.c.bf16 %v1557, %v1556
        %v1571 = vpack.c.bf16 %v1559, %v1558
        %v1572 = vpack.c.bf16 %v1561, %v1560
        %v1573 = vpack.c.bf16 %v1563, %v1562
        %v1574 = vpack.c.bf16 %v1565, %v1564
        %v1575 = vpack.c.bf16 %v1567, %v1566
        %v1576 = vld [vmem:[%s4] sm:$0xf]
        %v1577 = vld [vmem:[%s4 + $0x4] sm:$0xf]
        %v1578 = vld [vmem:[%s4 + $0x8] sm:$0xf]
        %v1579 = vld [vmem:[%s4 + $0xc] sm:$0xf]
        %v1580 = vld [vmem:[%s4 + $0x10] sm:$0xf]
        %v1581 = vld [vmem:[%s4 + $0x14] sm:$0xf]
        %v1582 = vld [vmem:[%s4 + $0x18] sm:$0xf]
        %v1583 = vld [vmem:[%s4 + $0x1c] sm:$0xf]
        %v1584 = vld [vmem:[%s4 + $0x20] sm:$0xf]
        %v1585 = vld [vmem:[%s4 + $0x24] sm:$0xf]
        %v1586 = vld [vmem:[%s4 + $0x28] sm:$0xf]
        %v1587 = vld [vmem:[%s4 + $0x2c] sm:$0xf]
        %v1588 = vld [vmem:[%s4 + $0x30] sm:$0xf]
        %v1589 = vld [vmem:[%s4 + $0x34] sm:$0xf]
        %v1590 = vld [vmem:[%s4 + $0x38] sm:$0xf]
        %v1591 = vld [vmem:[%s4 + $0x3c] sm:$0xf]
        %v1592 = vperm.slane %v596, 2
        %v1609 = vunpack.c.l.b16 %v1576
        %v1610 = vunpack.c.l.b16 %v1577
        %v1611 = vunpack.c.l.b16 %v1578
        %v1612 = vunpack.c.l.b16 %v1579
        %v1613 = vunpack.c.l.b16 %v1580
        %v1614 = vunpack.c.l.b16 %v1581
        %v1615 = vunpack.c.l.b16 %v1582
        %v1616 = vunpack.c.l.b16 %v1583
        %v1617 = vunpack.c.l.b16 %v1584
        %v1618 = vunpack.c.l.b16 %v1585
        %v1619 = vunpack.c.l.b16 %v1586
        %v1620 = vunpack.c.l.b16 %v1587
        %v1621 = vunpack.c.l.b16 %v1588
        %v1622 = vunpack.c.l.b16 %v1589
        %v1623 = vunpack.c.l.b16 %v1590
        %v1624 = vunpack.c.l.b16 %v1591
        %v1625 = vpack.c.b16 %v1610, %v1609
        %v1626 = vpack.c.b16 %v1612, %v1611
        %v1627 = vpack.c.b16 %v1614, %v1613
        %v1628 = vpack.c.b16 %v1616, %v1615
        %v1629 = vpack.c.b16 %v1618, %v1617
        %v1630 = vpack.c.b16 %v1620, %v1619
        %v1631 = vpack.c.b16 %v1622, %v1621
        %v1632 = vpack.c.b16 %v1624, %v1623
        %1641 = vmatpush.bf16.msra.mxu0 %v1632
        %1642 = vmatpush.bf16.msra.mxu0 %v1631
        %1643 = vmatpush.bf16.msra.mxu0 %v1630
        %1644 = vmatpush.bf16.msra.mxu0 %v1629
        %1645 = vmatpush.bf16.msra.mxu0 %v1628
        %1646 = vmatpush.bf16.msra.mxu0 %v1627
        %1647 = vmatpush.bf16.msra.mxu0 %v1626
        %1648 = vmatpush.bf16.msra.mxu0 %v1625
        %1649 = vmatmul.bf16.gmra.mxu0 %v1568
        %v1650 = vpop.f32.mrf.mxu0
        %v1651 = vadd.f32 %v1592, %v1650
        %v1652 = vpop.f32.mrf.mxu0
        %v1653 = vadd.f32 %v1592, %v1652
        %1654 = vmatmul.bf16.gmra.mxu0 %v1569
        %v1655 = vpop.f32.mrf.mxu0
        %v1656 = vadd.f32 %v1592, %v1655
        %v1657 = vpop.f32.mrf.mxu0
        %v1658 = vadd.f32 %v1592, %v1657
        %1659 = vmatmul.bf16.gmra.mxu0 %v1570
        %v1660 = vpop.f32.mrf.mxu0
        %v1661 = vadd.f32 %v1592, %v1660
        %v1662 = vpop.f32.mrf.mxu0
        %v1663 = vadd.f32 %v1592, %v1662
        %1664 = vmatmul.bf16.gmra.mxu0 %v1571
        %v1665 = vpop.f32.mrf.mxu0
        %v1666 = vadd.f32 %v1592, %v1665
        %v1667 = vpop.f32.mrf.mxu0
        %v1668 = vadd.f32 %v1592, %v1667
        %1669 = vmatmul.bf16.gmra.mxu0 %v1572
        %v1670 = vpop.f32.mrf.mxu0
        %v1671 = vadd.f32 %v1592, %v1670
        %v1672 = vpop.f32.mrf.mxu0
        %v1673 = vadd.f32 %v1592, %v1672
        %1674 = vmatmul.bf16.gmra.mxu0 %v1573
        %v1675 = vpop.f32.mrf.mxu0
        %v1676 = vadd.f32 %v1592, %v1675
        %v1677 = vpop.f32.mrf.mxu0
        %v1678 = vadd.f32 %v1592, %v1677
        %1679 = vmatmul.bf16.gmra.mxu0 %v1574
        %v1680 = vpop.f32.mrf.mxu0
        %v1681 = vadd.f32 %v1592, %v1680
        %v1682 = vpop.f32.mrf.mxu0
        %v1683 = vadd.f32 %v1592, %v1682
        %1684 = vmatmul.bf16.gmra.mxu0 %v1575
        %v1685 = vpop.f32.mrf.mxu0
        %v1686 = vadd.f32 %v1592, %v1685
        %v1687 = vpop.f32.mrf.mxu0
        %v1688 = vadd.f32 %v1592, %v1687
        %1689 = vdwg.mxu0
        %v1690 = vmax.f32 %v1651, 0.0
        %v1691 = vmax.f32 %v1653, 0.0
        %v1692 = vmax.f32 %v1656, 0.0
        %v1693 = vmax.f32 %v1658, 0.0
        %v1694 = vmax.f32 %v1661, 0.0
        %v1695 = vmax.f32 %v1663, 0.0
        %v1696 = vmax.f32 %v1666, 0.0
        %v1697 = vmax.f32 %v1668, 0.0
        %v1698 = vmax.f32 %v1671, 0.0
        %v1699 = vmax.f32 %v1673, 0.0
        %v1700 = vmax.f32 %v1676, 0.0
        %v1701 = vmax.f32 %v1678, 0.0
        %v1702 = vmax.f32 %v1681, 0.0
        %v1703 = vmax.f32 %v1683, 0.0
        %v1704 = vmax.f32 %v1686, 0.0
        %v1705 = vmax.f32 %v1688, 0.0
        %v1706 = vpack.c.bf16 %v1691, %v1690
        %v1707 = vpack.c.bf16 %v1693, %v1692
        %v1708 = vpack.c.bf16 %v1695, %v1694
        %v1709 = vpack.c.bf16 %v1697, %v1696
        %v1710 = vpack.c.bf16 %v1699, %v1698
        %v1711 = vpack.c.bf16 %v1701, %v1700
        %v1712 = vpack.c.bf16 %v1703, %v1702
        %v1713 = vpack.c.bf16 %v1705, %v1704
        %v1714 = vld [vmem:[%s5] sm:$0xf]
        %v1715 = vld [vmem:[%s5 + $0x4] sm:$0xf]
        %v1716 = vld [vmem:[%s5 + $0x8] sm:$0xf]
        %v1717 = vld [vmem:[%s5 + $0xc] sm:$0xf]
        %v1718 = vld [vmem:[%s5 + $0x10] sm:$0xf]
        %v1719 = vld [vmem:[%s5 + $0x14] sm:$0xf]
        %v1720 = vld [vmem:[%s5 + $0x18] sm:$0xf]
        %v1721 = vld [vmem:[%s5 + $0x1c] sm:$0xf]
        %v1722 = vld [vmem:[%s5 + $0x20] sm:$0xf]
        %v1723 = vld [vmem:[%s5 + $0x24] sm:$0xf]
        %v1724 = vld [vmem:[%s5 + $0x28] sm:$0xf]
        %v1725 = vld [vmem:[%s5 + $0x2c] sm:$0xf]
        %v1726 = vld [vmem:[%s5 + $0x30] sm:$0xf]
        %v1727 = vld [vmem:[%s5 + $0x34] sm:$0xf]
        %v1728 = vld [vmem:[%s5 + $0x38] sm:$0xf]
        %v1729 = vld [vmem:[%s5 + $0x3c] sm:$0xf]
        %v1730 = vperm.slane %v596, 3
        %v1747 = vunpack.c.l.b16 %v1714
        %v1748 = vunpack.c.l.b16 %v1715
        %v1749 = vunpack.c.l.b16 %v1716
        %v1750 = vunpack.c.l.b16 %v1717
        %v1751 = vunpack.c.l.b16 %v1718
        %v1752 = vunpack.c.l.b16 %v1719
        %v1753 = vunpack.c.l.b16 %v1720
        %v1754 = vunpack.c.l.b16 %v1721
        %v1755 = vunpack.c.l.b16 %v1722
        %v1756 = vunpack.c.l.b16 %v1723
        %v1757 = vunpack.c.l.b16 %v1724
        %v1758 = vunpack.c.l.b16 %v1725
        %v1759 = vunpack.c.l.b16 %v1726
        %v1760 = vunpack.c.l.b16 %v1727
        %v1761 = vunpack.c.l.b16 %v1728
        %v1762 = vunpack.c.l.b16 %v1729
        %v1763 = vpack.c.b16 %v1748, %v1747
        %v1764 = vpack.c.b16 %v1750, %v1749
        %v1765 = vpack.c.b16 %v1752, %v1751
        %v1766 = vpack.c.b16 %v1754, %v1753
        %v1767 = vpack.c.b16 %v1756, %v1755
        %v1768 = vpack.c.b16 %v1758, %v1757
        %v1769 = vpack.c.b16 %v1760, %v1759
        %v1770 = vpack.c.b16 %v1762, %v1761
        %1779 = vmatpush.bf16.msra.mxu0 %v1770
        %1780 = vmatpush.bf16.msra.mxu0 %v1769
        %1781 = vmatpush.bf16.msra.mxu0 %v1768
        %1782 = vmatpush.bf16.msra.mxu0 %v1767
        %1783 = vmatpush.bf16.msra.mxu0 %v1766
        %1784 = vmatpush.bf16.msra.mxu0 %v1765
        %1785 = vmatpush.bf16.msra.mxu0 %v1764
        %1786 = vmatpush.bf16.msra.mxu0 %v1763
        %1787 = vmatmul.bf16.gmra.mxu0 %v1706
        %v1788 = vpop.f32.mrf.mxu0
        %v1789 = vadd.f32 %v1730, %v1788
        %v1790 = vpop.f32.mrf.mxu0
        %v1791 = vadd.f32 %v1730, %v1790
        %1792 = vmatmul.bf16.gmra.mxu0 %v1707
        %v1793 = vpop.f32.mrf.mxu0
        %v1794 = vadd.f32 %v1730, %v1793
        %v1795 = vpop.f32.mrf.mxu0
        %v1796 = vadd.f32 %v1730, %v1795
        %1797 = vmatmul.bf16.gmra.mxu0 %v1708
        %v1798 = vpop.f32.mrf.mxu0
        %v1799 = vadd.f32 %v1730, %v1798
        %v1800 = vpop.f32.mrf.mxu0
        %v1801 = vadd.f32 %v1730, %v1800
        %1802 = vmatmul.bf16.gmra.mxu0 %v1709
        %v1803 = vpop.f32.mrf.mxu0
        %v1804 = vadd.f32 %v1730, %v1803
        %v1805 = vpop.f32.mrf.mxu0
        %v1806 = vadd.f32 %v1730, %v1805
        %1807 = vmatmul.bf16.gmra.mxu0 %v1710
        %v1808 = vpop.f32.mrf.mxu0
        %v1809 = vadd.f32 %v1730, %v1808
        %v1810 = vpop.f32.mrf.mxu0
        %v1811 = vadd.f32 %v1730, %v1810
        %1812 = vmatmul.bf16.gmra.mxu0 %v1711
        %v1813 = vpop.f32.mrf.mxu0
        %v1814 = vadd.f32 %v1730, %v1813
        %v1815 = vpop.f32.mrf.mxu0
        %v1816 = vadd.f32 %v1730, %v1815
        %1817 = vmatmul.bf16.gmra.mxu0 %v1712
        %v1818 = vpop.f32.mrf.mxu0
        %v1819 = vadd.f32 %v1730, %v1818
        %v1820 = vpop.f32.mrf.mxu0
        %v1821 = vadd.f32 %v1730, %v1820
        %1822 = vmatmul.bf16.gmra.mxu0 %v1713
        %v1823 = vpop.f32.mrf.mxu0
        %v1824 = vadd.f32 %v1730, %v1823
        %v1825 = vpop.f32.mrf.mxu0
        %v1826 = vadd.f32 %v1730, %v1825
        %1827 = vdwg.mxu0
        %v1828 = vld [vmem:[%s473] sm:$0xff]
        %v1829 = vld [vmem:[%s473 + $0x8] sm:$0xff]
        %v1830 = vld [vmem:[%s473 + $0x10] sm:$0xff]
        %v1831 = vld [vmem:[%s473 + $0x18] sm:$0xff]
        %v1832 = vld [vmem:[%s473 + $0x20] sm:$0xff]
        %v1833 = vld [vmem:[%s473 + $0x28] sm:$0xff]
        %v1834 = vld [vmem:[%s473 + $0x30] sm:$0xff]
        %v1835 = vld [vmem:[%s473 + $0x38] sm:$0xff]
        %v1836 = vld [vmem:[%s473 + $0x40] sm:$0xff]
        %v1837 = vld [vmem:[%s473 + $0x48] sm:$0xff]
        %v1838 = vld [vmem:[%s473 + $0x50] sm:$0xff]
        %v1839 = vld [vmem:[%s473 + $0x58] sm:$0xff]
        %v1840 = vld [vmem:[%s473 + $0x60] sm:$0xff]
        %v1841 = vld [vmem:[%s473 + $0x68] sm:$0xff]
        %v1842 = vld [vmem:[%s473 + $0x70] sm:$0xff]
        %v1843 = vld [vmem:[%s473 + $0x78] sm:$0xff]
        %v1844 = vadd.f32 %v1789, %v1828
        %v1845 = vadd.f32 %v1791, %v1829
        %v1846 = vadd.f32 %v1794, %v1830
        %v1847 = vadd.f32 %v1796, %v1831
        %v1848 = vadd.f32 %v1799, %v1832
        %v1849 = vadd.f32 %v1801, %v1833
        %v1850 = vadd.f32 %v1804, %v1834
        %v1851 = vadd.f32 %v1806, %v1835
        %v1852 = vadd.f32 %v1809, %v1836
        %v1853 = vadd.f32 %v1811, %v1837
        %v1854 = vadd.f32 %v1814, %v1838
        %v1855 = vadd.f32 %v1816, %v1839
        %v1856 = vadd.f32 %v1819, %v1840
        %v1857 = vadd.f32 %v1821, %v1841
        %v1858 = vadd.f32 %v1824, %v1842
        %v1859 = vadd.f32 %v1826, %v1843
        %1860 = vst [vmem:[%s461] sm:$0xff] %v1844
        %1861 = vst [vmem:[%s461 + $0x8] sm:$0xff] %v1845
        %1862 = vst [vmem:[%s461 + $0x10] sm:$0xff] %v1846
        %1863 = vst [vmem:[%s461 + $0x18] sm:$0xff] %v1847
        %1864 = vst [vmem:[%s461 + $0x20] sm:$0xff] %v1848
        %1865 = vst [vmem:[%s461 + $0x28] sm:$0xff] %v1849
        %1866 = vst [vmem:[%s461 + $0x30] sm:$0xff] %v1850
        %1867 = vst [vmem:[%s461 + $0x38] sm:$0xff] %v1851
        %1868 = vst [vmem:[%s461 + $0x40] sm:$0xff] %v1852
        %1869 = vst [vmem:[%s461 + $0x48] sm:$0xff] %v1853
        %1870 = vst [vmem:[%s461 + $0x50] sm:$0xff] %v1854
        %1871 = vst [vmem:[%s461 + $0x58] sm:$0xff] %v1855
        %1872 = vst [vmem:[%s461 + $0x60] sm:$0xff] %v1856
        %1873 = vst [vmem:[%s461 + $0x68] sm:$0xff] %v1857
        %1874 = vst [vmem:[%s461 + $0x70] sm:$0xff] %v1858
        %1875 = vst [vmem:[%s461 + $0x78] sm:$0xff] %v1859
        %v1876 = vmax.f32 %v1844, 0.0
        %v1877 = vmax.f32 %v1845, 0.0
        %v1878 = vmax.f32 %v1846, 0.0
        %v1879 = vmax.f32 %v1847, 0.0
        %v1880 = vmax.f32 %v1848, 0.0
        %v1881 = vmax.f32 %v1849, 0.0
        %v1882 = vmax.f32 %v1850, 0.0
        %v1883 = vmax.f32 %v1851, 0.0
        %v1884 = vmax.f32 %v1852, 0.0
        %v1885 = vmax.f32 %v1853, 0.0
        %v1886 = vmax.f32 %v1854, 0.0
        %v1887 = vmax.f32 %v1855, 0.0
        %v1888 = vmax.f32 %v1856, 0.0
        %v1889 = vmax.f32 %v1857, 0.0
        %v1890 = vmax.f32 %v1858, 0.0
        %v1891 = vmax.f32 %v1859, 0.0
        %v1892 = vpack.c.bf16 %v1877, %v1876
        %v1893 = vpack.c.bf16 %v1879, %v1878
        %v1894 = vpack.c.bf16 %v1881, %v1880
        %v1895 = vpack.c.bf16 %v1883, %v1882
        %v1896 = vpack.c.bf16 %v1885, %v1884
        %v1897 = vpack.c.bf16 %v1887, %v1886
        %v1898 = vpack.c.bf16 %v1889, %v1888
        %v1899 = vpack.c.bf16 %v1891, %v1890
        %v1900 = vld [vmem:[%s6] sm:$0xf]
        %v1901 = vld [vmem:[%s6 + $0x4] sm:$0xf]
        %v1902 = vld [vmem:[%s6 + $0x8] sm:$0xf]
        %v1903 = vld [vmem:[%s6 + $0xc] sm:$0xf]
        %v1904 = vld [vmem:[%s6 + $0x10] sm:$0xf]
        %v1905 = vld [vmem:[%s6 + $0x14] sm:$0xf]
        %v1906 = vld [vmem:[%s6 + $0x18] sm:$0xf]
        %v1907 = vld [vmem:[%s6 + $0x1c] sm:$0xf]
        %v1908 = vld [vmem:[%s6 + $0x20] sm:$0xf]
        %v1909 = vld [vmem:[%s6 + $0x24] sm:$0xf]
        %v1910 = vld [vmem:[%s6 + $0x28] sm:$0xf]
        %v1911 = vld [vmem:[%s6 + $0x2c] sm:$0xf]
        %v1912 = vld [vmem:[%s6 + $0x30] sm:$0xf]
        %v1913 = vld [vmem:[%s6 + $0x34] sm:$0xf]
        %v1914 = vld [vmem:[%s6 + $0x38] sm:$0xf]
        %v1915 = vld [vmem:[%s6 + $0x3c] sm:$0xf]
        %v1916 = vperm.slane %v596, 4
        %v1933 = vunpack.c.l.b16 %v1900
        %v1934 = vunpack.c.l.b16 %v1901
        %v1935 = vunpack.c.l.b16 %v1902
        %v1936 = vunpack.c.l.b16 %v1903
        %v1937 = vunpack.c.l.b16 %v1904
        %v1938 = vunpack.c.l.b16 %v1905
        %v1939 = vunpack.c.l.b16 %v1906
        %v1940 = vunpack.c.l.b16 %v1907
        %v1941 = vunpack.c.l.b16 %v1908
        %v1942 = vunpack.c.l.b16 %v1909
        %v1943 = vunpack.c.l.b16 %v1910
        %v1944 = vunpack.c.l.b16 %v1911
        %v1945 = vunpack.c.l.b16 %v1912
        %v1946 = vunpack.c.l.b16 %v1913
        %v1947 = vunpack.c.l.b16 %v1914
        %v1948 = vunpack.c.l.b16 %v1915
        %v1949 = vpack.c.b16 %v1934, %v1933
        %v1950 = vpack.c.b16 %v1936, %v1935
        %v1951 = vpack.c.b16 %v1938, %v1937
        %v1952 = vpack.c.b16 %v1940, %v1939
        %v1953 = vpack.c.b16 %v1942, %v1941
        %v1954 = vpack.c.b16 %v1944, %v1943
        %v1955 = vpack.c.b16 %v1946, %v1945
        %v1956 = vpack.c.b16 %v1948, %v1947
        %1965 = vmatpush.bf16.msra.mxu0 %v1956
        %1966 = vmatpush.bf16.msra.mxu0 %v1955
        %1967 = vmatpush.bf16.msra.mxu0 %v1954
        %1968 = vmatpush.bf16.msra.mxu0 %v1953
        %1969 = vmatpush.bf16.msra.mxu0 %v1952
        %1970 = vmatpush.bf16.msra.mxu0 %v1951
        %1971 = vmatpush.bf16.msra.mxu0 %v1950
        %1972 = vmatpush.bf16.msra.mxu0 %v1949
        %1973 = vmatmul.bf16.gmra.mxu0 %v1892
        %v1974 = vpop.f32.mrf.mxu0
        %v1975 = vadd.f32 %v1916, %v1974
        %v1976 = vpop.f32.mrf.mxu0
        %v1977 = vadd.f32 %v1916, %v1976
        %1978 = vmatmul.bf16.gmra.mxu0 %v1893
        %v1979 = vpop.f32.mrf.mxu0
        %v1980 = vadd.f32 %v1916, %v1979
        %v1981 = vpop.f32.mrf.mxu0
        %v1982 = vadd.f32 %v1916, %v1981
        %1983 = vmatmul.bf16.gmra.mxu0 %v1894
        %v1984 = vpop.f32.mrf.mxu0
        %v1985 = vadd.f32 %v1916, %v1984
        %v1986 = vpop.f32.mrf.mxu0
        %v1987 = vadd.f32 %v1916, %v1986
        %1988 = vmatmul.bf16.gmra.mxu0 %v1895
        %v1989 = vpop.f32.mrf.mxu0
        %v1990 = vadd.f32 %v1916, %v1989
        %v1991 = vpop.f32.mrf.mxu0
        %v1992 = vadd.f32 %v1916, %v1991
        %1993 = vmatmul.bf16.gmra.mxu0 %v1896
        %v1994 = vpop.f32.mrf.mxu0
        %v1995 = vadd.f32 %v1916, %v1994
        %v1996 = vpop.f32.mrf.mxu0
        %v1997 = vadd.f32 %v1916, %v1996
        %1998 = vmatmul.bf16.gmra.mxu0 %v1897
        %v1999 = vpop.f32.mrf.mxu0
        %v2000 = vadd.f32 %v1916, %v1999
        %v2001 = vpop.f32.mrf.mxu0
        %v2002 = vadd.f32 %v1916, %v2001
        %2003 = vmatmul.bf16.gmra.mxu0 %v1898
        %v2004 = vpop.f32.mrf.mxu0
        %v2005 = vadd.f32 %v1916, %v2004
        %v2006 = vpop.f32.mrf.mxu0
        %v2007 = vadd.f32 %v1916, %v2006
        %2008 = vmatmul.bf16.gmra.mxu0 %v1899
        %v2009 = vpop.f32.mrf.mxu0
        %v2010 = vadd.f32 %v1916, %v2009
        %v2011 = vpop.f32.mrf.mxu0
        %v2012 = vadd.f32 %v1916, %v2011
        %2013 = vdwg.mxu0
        %v2014 = vpack.c.bf16 %v1977, %v1975
        %v2015 = vpack.c.bf16 %v1982, %v1980
        %v2016 = vpack.c.bf16 %v1987, %v1985
        %v2017 = vpack.c.bf16 %v1992, %v1990
        %v2018 = vpack.c.bf16 %v1997, %v1995
        %v2019 = vpack.c.bf16 %v2002, %v2000
        %v2020 = vpack.c.bf16 %v2007, %v2005
        %v2021 = vpack.c.bf16 %v2012, %v2010
        %v2022 = vld [vmem:[%s7] sm:$0xf]
        %v2023 = vld [vmem:[%s7 + $0x4] sm:$0xf]
        %v2024 = vld [vmem:[%s7 + $0x8] sm:$0xf]
        %v2025 = vld [vmem:[%s7 + $0xc] sm:$0xf]
        %v2026 = vld [vmem:[%s7 + $0x10] sm:$0xf]
        %v2027 = vld [vmem:[%s7 + $0x14] sm:$0xf]
        %v2028 = vld [vmem:[%s7 + $0x18] sm:$0xf]
        %v2029 = vld [vmem:[%s7 + $0x1c] sm:$0xf]
        %v2030 = vld [vmem:[%s7 + $0x20] sm:$0xf]
        %v2031 = vld [vmem:[%s7 + $0x24] sm:$0xf]
        %v2032 = vld [vmem:[%s7 + $0x28] sm:$0xf]
        %v2033 = vld [vmem:[%s7 + $0x2c] sm:$0xf]
        %v2034 = vld [vmem:[%s7 + $0x30] sm:$0xf]
        %v2035 = vld [vmem:[%s7 + $0x34] sm:$0xf]
        %v2036 = vld [vmem:[%s7 + $0x38] sm:$0xf]
        %v2037 = vld [vmem:[%s7 + $0x3c] sm:$0xf]
        %v2038 = vperm.slane %v596, 5
        %v2055 = vunpack.c.l.b16 %v2022
        %v2056 = vunpack.c.l.b16 %v2023
        %v2057 = vunpack.c.l.b16 %v2024
        %v2058 = vunpack.c.l.b16 %v2025
        %v2059 = vunpack.c.l.b16 %v2026
        %v2060 = vunpack.c.l.b16 %v2027
        %v2061 = vunpack.c.l.b16 %v2028
        %v2062 = vunpack.c.l.b16 %v2029
        %v2063 = vunpack.c.l.b16 %v2030
        %v2064 = vunpack.c.l.b16 %v2031
        %v2065 = vunpack.c.l.b16 %v2032
        %v2066 = vunpack.c.l.b16 %v2033
        %v2067 = vunpack.c.l.b16 %v2034
        %v2068 = vunpack.c.l.b16 %v2035
        %v2069 = vunpack.c.l.b16 %v2036
        %v2070 = vunpack.c.l.b16 %v2037
        %v2071 = vpack.c.b16 %v2056, %v2055
        %v2072 = vpack.c.b16 %v2058, %v2057
        %v2073 = vpack.c.b16 %v2060, %v2059
        %v2074 = vpack.c.b16 %v2062, %v2061
        %v2075 = vpack.c.b16 %v2064, %v2063
        %v2076 = vpack.c.b16 %v2066, %v2065
        %v2077 = vpack.c.b16 %v2068, %v2067
        %v2078 = vpack.c.b16 %v2070, %v2069
        %2087 = vmatpush.bf16.msra.mxu0 %v2078
        %2088 = vmatpush.bf16.msra.mxu0 %v2077
        %2089 = vmatpush.bf16.msra.mxu0 %v2076
        %2090 = vmatpush.bf16.msra.mxu0 %v2075
        %2091 = vmatpush.bf16.msra.mxu0 %v2074
        %2092 = vmatpush.bf16.msra.mxu0 %v2073
        %2093 = vmatpush.bf16.msra.mxu0 %v2072
        %2094 = vmatpush.bf16.msra.mxu0 %v2071
        %2095 = vmatmul.bf16.gmra.mxu0 %v2014
        %v2096 = vpop.f32.mrf.mxu0
        %v2097 = vadd.f32 %v2038, %v2096
        %v2098 = vpop.f32.mrf.mxu0
        %v2099 = vadd.f32 %v2038, %v2098
        %2100 = vmatmul.bf16.gmra.mxu0 %v2015
        %v2101 = vpop.f32.mrf.mxu0
        %v2102 = vadd.f32 %v2038, %v2101
        %v2103 = vpop.f32.mrf.mxu0
        %v2104 = vadd.f32 %v2038, %v2103
        %2105 = vmatmul.bf16.gmra.mxu0 %v2016
        %v2106 = vpop.f32.mrf.mxu0
        %v2107 = vadd.f32 %v2038, %v2106
        %v2108 = vpop.f32.mrf.mxu0
        %v2109 = vadd.f32 %v2038, %v2108
        %2110 = vmatmul.bf16.gmra.mxu0 %v2017
        %v2111 = vpop.f32.mrf.mxu0
        %v2112 = vadd.f32 %v2038, %v2111
        %v2113 = vpop.f32.mrf.mxu0
        %v2114 = vadd.f32 %v2038, %v2113
        %2115 = vmatmul.bf16.gmra.mxu0 %v2018
        %v2116 = vpop.f32.mrf.mxu0
        %v2117 = vadd.f32 %v2038, %v2116
        %v2118 = vpop.f32.mrf.mxu0
        %v2119 = vadd.f32 %v2038, %v2118
        %2120 = vmatmul.bf16.gmra.mxu0 %v2019
        %v2121 = vpop.f32.mrf.mxu0
        %v2122 = vadd.f32 %v2038, %v2121
        %v2123 = vpop.f32.mrf.mxu0
        %v2124 = vadd.f32 %v2038, %v2123
        %2125 = vmatmul.bf16.gmra.mxu0 %v2020
        %v2126 = vpop.f32.mrf.mxu0
        %v2127 = vadd.f32 %v2038, %v2126
        %v2128 = vpop.f32.mrf.mxu0
        %v2129 = vadd.f32 %v2038, %v2128
        %2130 = vmatmul.bf16.gmra.mxu0 %v2021
        %v2131 = vpop.f32.mrf.mxu0
        %v2132 = vadd.f32 %v2038, %v2131
        %v2133 = vpop.f32.mrf.mxu0
        %v2134 = vadd.f32 %v2038, %v2133
        %2135 = vdwg.mxu0
        %v2136 = vmax.f32 %v2097, 0.0
        %v2137 = vmax.f32 %v2099, 0.0
        %v2138 = vmax.f32 %v2102, 0.0
        %v2139 = vmax.f32 %v2104, 0.0
        %v2140 = vmax.f32 %v2107, 0.0
        %v2141 = vmax.f32 %v2109, 0.0
        %v2142 = vmax.f32 %v2112, 0.0
        %v2143 = vmax.f32 %v2114, 0.0
        %v2144 = vmax.f32 %v2117, 0.0
        %v2145 = vmax.f32 %v2119, 0.0
        %v2146 = vmax.f32 %v2122, 0.0
        %v2147 = vmax.f32 %v2124, 0.0
        %v2148 = vmax.f32 %v2127, 0.0
        %v2149 = vmax.f32 %v2129, 0.0
        %v2150 = vmax.f32 %v2132, 0.0
        %v2151 = vmax.f32 %v2134, 0.0
        %v2152 = vpack.c.bf16 %v2137, %v2136
        %v2153 = vpack.c.bf16 %v2139, %v2138
        %v2154 = vpack.c.bf16 %v2141, %v2140
        %v2155 = vpack.c.bf16 %v2143, %v2142
        %v2156 = vpack.c.bf16 %v2145, %v2144
        %v2157 = vpack.c.bf16 %v2147, %v2146
        %v2158 = vpack.c.bf16 %v2149, %v2148
        %v2159 = vpack.c.bf16 %v2151, %v2150
        %v2160 = vld [vmem:[%s8] sm:$0xf]
        %v2161 = vld [vmem:[%s8 + $0x4] sm:$0xf]
        %v2162 = vld [vmem:[%s8 + $0x8] sm:$0xf]
        %v2163 = vld [vmem:[%s8 + $0xc] sm:$0xf]
        %v2164 = vld [vmem:[%s8 + $0x10] sm:$0xf]
        %v2165 = vld [vmem:[%s8 + $0x14] sm:$0xf]
        %v2166 = vld [vmem:[%s8 + $0x18] sm:$0xf]
        %v2167 = vld [vmem:[%s8 + $0x1c] sm:$0xf]
        %v2168 = vld [vmem:[%s8 + $0x20] sm:$0xf]
        %v2169 = vld [vmem:[%s8 + $0x24] sm:$0xf]
        %v2170 = vld [vmem:[%s8 + $0x28] sm:$0xf]
        %v2171 = vld [vmem:[%s8 + $0x2c] sm:$0xf]
        %v2172 = vld [vmem:[%s8 + $0x30] sm:$0xf]
        %v2173 = vld [vmem:[%s8 + $0x34] sm:$0xf]
        %v2174 = vld [vmem:[%s8 + $0x38] sm:$0xf]
        %v2175 = vld [vmem:[%s8 + $0x3c] sm:$0xf]
        %v2176 = vperm.slane %v596, 6
        %v2193 = vunpack.c.l.b16 %v2160
        %v2194 = vunpack.c.l.b16 %v2161
        %v2195 = vunpack.c.l.b16 %v2162
        %v2196 = vunpack.c.l.b16 %v2163
        %v2197 = vunpack.c.l.b16 %v2164
        %v2198 = vunpack.c.l.b16 %v2165
        %v2199 = vunpack.c.l.b16 %v2166
        %v2200 = vunpack.c.l.b16 %v2167
        %v2201 = vunpack.c.l.b16 %v2168
        %v2202 = vunpack.c.l.b16 %v2169
        %v2203 = vunpack.c.l.b16 %v2170
        %v2204 = vunpack.c.l.b16 %v2171
        %v2205 = vunpack.c.l.b16 %v2172
        %v2206 = vunpack.c.l.b16 %v2173
        %v2207 = vunpack.c.l.b16 %v2174
        %v2208 = vunpack.c.l.b16 %v2175
        %v2209 = vpack.c.b16 %v2194, %v2193
        %v2210 = vpack.c.b16 %v2196, %v2195
        %v2211 = vpack.c.b16 %v2198, %v2197
        %v2212 = vpack.c.b16 %v2200, %v2199
        %v2213 = vpack.c.b16 %v2202, %v2201
        %v2214 = vpack.c.b16 %v2204, %v2203
        %v2215 = vpack.c.b16 %v2206, %v2205
        %v2216 = vpack.c.b16 %v2208, %v2207
        %2225 = vmatpush.bf16.msra.mxu0 %v2216
        %2226 = vmatpush.bf16.msra.mxu0 %v2215
        %2227 = vmatpush.bf16.msra.mxu0 %v2214
        %2228 = vmatpush.bf16.msra.mxu0 %v2213
        %2229 = vmatpush.bf16.msra.mxu0 %v2212
        %2230 = vmatpush.bf16.msra.mxu0 %v2211
        %2231 = vmatpush.bf16.msra.mxu0 %v2210
        %2232 = vmatpush.bf16.msra.mxu0 %v2209
        %2233 = vmatmul.bf16.gmra.mxu0 %v2152
        %v2234 = vpop.f32.mrf.mxu0
        %v2235 = vadd.f32 %v2176, %v2234
        %v2236 = vpop.f32.mrf.mxu0
        %v2237 = vadd.f32 %v2176, %v2236
        %2238 = vmatmul.bf16.gmra.mxu0 %v2153
        %v2239 = vpop.f32.mrf.mxu0
        %v2240 = vadd.f32 %v2176, %v2239
        %v2241 = vpop.f32.mrf.mxu0
        %v2242 = vadd.f32 %v2176, %v2241
        %2243 = vmatmul.bf16.gmra.mxu0 %v2154
        %v2244 = vpop.f32.mrf.mxu0
        %v2245 = vadd.f32 %v2176, %v2244
        %v2246 = vpop.f32.mrf.mxu0
        %v2247 = vadd.f32 %v2176, %v2246
        %2248 = vmatmul.bf16.gmra.mxu0 %v2155
        %v2249 = vpop.f32.mrf.mxu0
        %v2250 = vadd.f32 %v2176, %v2249
        %v2251 = vpop.f32.mrf.mxu0
        %v2252 = vadd.f32 %v2176, %v2251
        %2253 = vmatmul.bf16.gmra.mxu0 %v2156
        %v2254 = vpop.f32.mrf.mxu0
        %v2255 = vadd.f32 %v2176, %v2254
        %v2256 = vpop.f32.mrf.mxu0
        %v2257 = vadd.f32 %v2176, %v2256
        %2258 = vmatmul.bf16.gmra.mxu0 %v2157
        %v2259 = vpop.f32.mrf.mxu0
        %v2260 = vadd.f32 %v2176, %v2259
        %v2261 = vpop.f32.mrf.mxu0
        %v2262 = vadd.f32 %v2176, %v2261
        %2263 = vmatmul.bf16.gmra.mxu0 %v2158
        %v2264 = vpop.f32.mrf.mxu0
        %v2265 = vadd.f32 %v2176, %v2264
        %v2266 = vpop.f32.mrf.mxu0
        %v2267 = vadd.f32 %v2176, %v2266
        %2268 = vmatmul.bf16.gmra.mxu0 %v2159
        %v2269 = vpop.f32.mrf.mxu0
        %v2270 = vadd.f32 %v2176, %v2269
        %v2271 = vpop.f32.mrf.mxu0
        %v2272 = vadd.f32 %v2176, %v2271
        %2273 = vdwg.mxu0
        %v2274 = vmax.f32 %v2235, 0.0
        %v2275 = vmax.f32 %v2237, 0.0
        %v2276 = vmax.f32 %v2240, 0.0
        %v2277 = vmax.f32 %v2242, 0.0
        %v2278 = vmax.f32 %v2245, 0.0
        %v2279 = vmax.f32 %v2247, 0.0
        %v2280 = vmax.f32 %v2250, 0.0
        %v2281 = vmax.f32 %v2252, 0.0
        %v2282 = vmax.f32 %v2255, 0.0
        %v2283 = vmax.f32 %v2257, 0.0
        %v2284 = vmax.f32 %v2260, 0.0
        %v2285 = vmax.f32 %v2262, 0.0
        %v2286 = vmax.f32 %v2265, 0.0
        %v2287 = vmax.f32 %v2267, 0.0
        %v2288 = vmax.f32 %v2270, 0.0
        %v2289 = vmax.f32 %v2272, 0.0
        %v2290 = vpack.c.bf16 %v2275, %v2274
        %v2291 = vpack.c.bf16 %v2277, %v2276
        %v2292 = vpack.c.bf16 %v2279, %v2278
        %v2293 = vpack.c.bf16 %v2281, %v2280
        %v2294 = vpack.c.bf16 %v2283, %v2282
        %v2295 = vpack.c.bf16 %v2285, %v2284
        %v2296 = vpack.c.bf16 %v2287, %v2286
        %v2297 = vpack.c.bf16 %v2289, %v2288
        %v2298 = vld [vmem:[%s9] sm:$0xff]
        %v2299 = vld [vmem:[%s9 + $0x8] sm:$0xff]
        %v2300 = vld [vmem:[%s9 + $0x10] sm:$0xff]
        %v2301 = vld [vmem:[%s9 + $0x18] sm:$0xf]
        %v2302 = vld [vmem:[%s9 + $0x1c] sm:$0xff]
        %v2303 = vld [vmem:[%s9 + $0x24] sm:$0xff]
        %v2304 = vld [vmem:[%s9 + $0x2c] sm:$0xff]
        %v2305 = vld [vmem:[%s9 + $0x34] sm:$0xf]
        %v2306 = vld [vmem:[%s9 + $0x38] sm:$0xff]
        %v2307 = vld [vmem:[%s9 + $0x40] sm:$0xff]
        %v2308 = vld [vmem:[%s9 + $0x48] sm:$0xff]
        %v2309 = vld [vmem:[%s9 + $0x50] sm:$0xf]
        %v2310 = vld [vmem:[%s9 + $0x54] sm:$0xff]
        %v2311 = vld [vmem:[%s9 + $0x5c] sm:$0xff]
        %v2312 = vld [vmem:[%s9 + $0x64] sm:$0xff]
        %v2313 = vld [vmem:[%s9 + $0x6c] sm:$0xf]
        %v2314 = vld [vmem:[%s9 + $0x70] sm:$0xff]
        %v2315 = vld [vmem:[%s9 + $0x78] sm:$0xff]
        %v2316 = vld [vmem:[%s9 + $0x80] sm:$0xff]
        %v2317 = vld [vmem:[%s9 + $0x88] sm:$0xf]
        %v2318 = vld [vmem:[%s9 + $0x8c] sm:$0xff]
        %v2319 = vld [vmem:[%s9 + $0x94] sm:$0xff]
        %v2320 = vld [vmem:[%s9 + $0x9c] sm:$0xff]
        %v2321 = vld [vmem:[%s9 + $0xa4] sm:$0xf]
        %v2322 = vld [vmem:[%s9 + $0xa8] sm:$0xff]
        %v2323 = vld [vmem:[%s9 + $0xb0] sm:$0xff]
        %v2324 = vld [vmem:[%s9 + $0xb8] sm:$0xff]
        %v2325 = vld [vmem:[%s9 + $0xc0] sm:$0xf]
        %v2326 = vld [vmem:[%s9 + $0xc4] sm:$0xff]
        %v2327 = vld [vmem:[%s9 + $0xcc] sm:$0xff]
        %v2328 = vld [vmem:[%s9 + $0xd4] sm:$0xff]
        %v2329 = vld [vmem:[%s9 + $0xdc] sm:$0xf]
        %v2330 = vld [vmem:[%s9 + $0xe0] sm:$0xff]
        %v2331 = vld [vmem:[%s9 + $0xe8] sm:$0xff]
        %v2332 = vld [vmem:[%s9 + $0xf0] sm:$0xff]
        %v2333 = vld [vmem:[%s9 + $0xf8] sm:$0xf]
        %v2334 = vld [vmem:[%s9 + $0xfc] sm:$0xff]
        %v2335 = vld [vmem:[%s9 + $0x104] sm:$0xff]
        %v2336 = vld [vmem:[%s9 + $0x10c] sm:$0xff]
        %v2337 = vld [vmem:[%s9 + $0x114] sm:$0xf]
        %v2338 = vld [vmem:[%s9 + $0x118] sm:$0xff]
        %v2339 = vld [vmem:[%s9 + $0x120] sm:$0xff]
        %v2340 = vld [vmem:[%s9 + $0x128] sm:$0xff]
        %v2341 = vld [vmem:[%s9 + $0x130] sm:$0xf]
        %v2342 = vld [vmem:[%s9 + $0x134] sm:$0xff]
        %v2343 = vld [vmem:[%s9 + $0x13c] sm:$0xff]
        %v2344 = vld [vmem:[%s9 + $0x144] sm:$0xff]
        %v2345 = vld [vmem:[%s9 + $0x14c] sm:$0xf]
        %v2346 = vld [vmem:[%s9 + $0x150] sm:$0xff]
        %v2347 = vld [vmem:[%s9 + $0x158] sm:$0xff]
        %v2348 = vld [vmem:[%s9 + $0x160] sm:$0xff]
        %v2349 = vld [vmem:[%s9 + $0x168] sm:$0xf]
        %v2350 = vld [vmem:[%s9 + $0x16c] sm:$0xff]
        %v2351 = vld [vmem:[%s9 + $0x174] sm:$0xff]
        %v2352 = vld [vmem:[%s9 + $0x17c] sm:$0xff]
        %v2353 = vld [vmem:[%s9 + $0x184] sm:$0xf]
        %v2354 = vld [vmem:[%s9 + $0x188] sm:$0xff]
        %v2355 = vld [vmem:[%s9 + $0x190] sm:$0xff]
        %v2356 = vld [vmem:[%s9 + $0x198] sm:$0xff]
        %v2357 = vld [vmem:[%s9 + $0x1a0] sm:$0xf]
        %v2358 = vld [vmem:[%s9 + $0x1a4] sm:$0xff]
        %v2359 = vld [vmem:[%s9 + $0x1ac] sm:$0xff]
        %v2360 = vld [vmem:[%s9 + $0x1b4] sm:$0xff]
        %v2361 = vld [vmem:[%s9 + $0x1bc] sm:$0xf]
        %v2362 = vld [vmem:[%s11] sm:$0x7f]
        %v2364 = vperm.slane %v2362, 0
        %v2365 = vperm.slane %v2362, 1
        %v2366 = vperm.slane %v2362, 2
        %v2367 = vperm.slane %v2362, 3
        %v2368 = vperm.slane %v2362, 4
        %v2369 = vperm.slane %v2362, 5
        %v2370 = vperm.slane %v2362, 6
        %v2442 = vunpack.c.l.b16 %v2298
        %v2443 = vunpack.c.h.b16 %v2298
        %v2444 = vunpack.c.l.b16 %v2299
        %v2445 = vunpack.c.h.b16 %v2299
        %v2446 = vunpack.c.l.b16 %v2300
        %v2447 = vunpack.c.h.b16 %v2300
        %v2448 = vunpack.c.l.b16 %v2301
        %v2449 = vunpack.c.l.b16 %v2302
        %v2450 = vunpack.c.h.b16 %v2302
        %v2451 = vunpack.c.l.b16 %v2303
        %v2452 = vunpack.c.h.b16 %v2303
        %v2453 = vunpack.c.l.b16 %v2304
        %v2454 = vunpack.c.h.b16 %v2304
        %v2455 = vunpack.c.l.b16 %v2305
        %v2456 = vunpack.c.l.b16 %v2306
        %v2457 = vunpack.c.h.b16 %v2306
        %v2458 = vunpack.c.l.b16 %v2307
        %v2459 = vunpack.c.h.b16 %v2307
        %v2460 = vunpack.c.l.b16 %v2308
        %v2461 = vunpack.c.h.b16 %v2308
        %v2462 = vunpack.c.l.b16 %v2309
        %v2463 = vunpack.c.l.b16 %v2310
        %v2464 = vunpack.c.h.b16 %v2310
        %v2465 = vunpack.c.l.b16 %v2311
        %v2466 = vunpack.c.h.b16 %v2311
        %v2467 = vunpack.c.l.b16 %v2312
        %v2468 = vunpack.c.h.b16 %v2312
        %v2469 = vunpack.c.l.b16 %v2313
        %v2470 = vunpack.c.l.b16 %v2314
        %v2471 = vunpack.c.h.b16 %v2314
        %v2472 = vunpack.c.l.b16 %v2315
        %v2473 = vunpack.c.h.b16 %v2315
        %v2474 = vunpack.c.l.b16 %v2316
        %v2475 = vunpack.c.h.b16 %v2316
        %v2476 = vunpack.c.l.b16 %v2317
        %v2477 = vunpack.c.l.b16 %v2318
        %v2478 = vunpack.c.h.b16 %v2318
        %v2479 = vunpack.c.l.b16 %v2319
        %v2480 = vunpack.c.h.b16 %v2319
        %v2481 = vunpack.c.l.b16 %v2320
        %v2482 = vunpack.c.h.b16 %v2320
        %v2483 = vunpack.c.l.b16 %v2321
        %v2484 = vunpack.c.l.b16 %v2322
        %v2485 = vunpack.c.h.b16 %v2322
        %v2486 = vunpack.c.l.b16 %v2323
        %v2487 = vunpack.c.h.b16 %v2323
        %v2488 = vunpack.c.l.b16 %v2324
        %v2489 = vunpack.c.h.b16 %v2324
        %v2490 = vunpack.c.l.b16 %v2325
        %v2491 = vunpack.c.l.b16 %v2326
        %v2492 = vunpack.c.h.b16 %v2326
        %v2493 = vunpack.c.l.b16 %v2327
        %v2494 = vunpack.c.h.b16 %v2327
        %v2495 = vunpack.c.l.b16 %v2328
        %v2496 = vunpack.c.h.b16 %v2328
        %v2497 = vunpack.c.l.b16 %v2329
        %v2498 = vunpack.c.l.b16 %v2330
        %v2499 = vunpack.c.h.b16 %v2330
        %v2500 = vunpack.c.l.b16 %v2331
        %v2501 = vunpack.c.h.b16 %v2331
        %v2502 = vunpack.c.l.b16 %v2332
        %v2503 = vunpack.c.h.b16 %v2332
        %v2504 = vunpack.c.l.b16 %v2333
        %v2505 = vunpack.c.l.b16 %v2334
        %v2506 = vunpack.c.h.b16 %v2334
        %v2507 = vunpack.c.l.b16 %v2335
        %v2508 = vunpack.c.h.b16 %v2335
        %v2509 = vunpack.c.l.b16 %v2336
        %v2510 = vunpack.c.h.b16 %v2336
        %v2511 = vunpack.c.l.b16 %v2337
        %v2512 = vunpack.c.l.b16 %v2338
        %v2513 = vunpack.c.h.b16 %v2338
        %v2514 = vunpack.c.l.b16 %v2339
        %v2515 = vunpack.c.h.b16 %v2339
        %v2516 = vunpack.c.l.b16 %v2340
        %v2517 = vunpack.c.h.b16 %v2340
        %v2518 = vunpack.c.l.b16 %v2341
        %v2519 = vunpack.c.l.b16 %v2342
        %v2520 = vunpack.c.h.b16 %v2342
        %v2521 = vunpack.c.l.b16 %v2343
        %v2522 = vunpack.c.h.b16 %v2343
        %v2523 = vunpack.c.l.b16 %v2344
        %v2524 = vunpack.c.h.b16 %v2344
        %v2525 = vunpack.c.l.b16 %v2345
        %v2526 = vunpack.c.l.b16 %v2346
        %v2527 = vunpack.c.h.b16 %v2346
        %v2528 = vunpack.c.l.b16 %v2347
        %v2529 = vunpack.c.h.b16 %v2347
        %v2530 = vunpack.c.l.b16 %v2348
        %v2531 = vunpack.c.h.b16 %v2348
        %v2532 = vunpack.c.l.b16 %v2349
        %v2533 = vunpack.c.l.b16 %v2350
        %v2534 = vunpack.c.h.b16 %v2350
        %v2535 = vunpack.c.l.b16 %v2351
        %v2536 = vunpack.c.h.b16 %v2351
        %v2537 = vunpack.c.l.b16 %v2352
        %v2538 = vunpack.c.h.b16 %v2352
        %v2539 = vunpack.c.l.b16 %v2353
        %v2540 = vunpack.c.l.b16 %v2354
        %v2541 = vunpack.c.h.b16 %v2354
        %v2542 = vunpack.c.l.b16 %v2355
        %v2543 = vunpack.c.h.b16 %v2355
        %v2544 = vunpack.c.l.b16 %v2356
        %v2545 = vunpack.c.h.b16 %v2356
        %v2546 = vunpack.c.l.b16 %v2357
        %v2547 = vunpack.c.l.b16 %v2358
        %v2548 = vunpack.c.h.b16 %v2358
        %v2549 = vunpack.c.l.b16 %v2359
        %v2550 = vunpack.c.h.b16 %v2359
        %v2551 = vunpack.c.l.b16 %v2360
        %v2552 = vunpack.c.h.b16 %v2360
        %v2553 = vunpack.c.l.b16 %v2361
        %v2554 = vpack.c.b16 %v2449, %v2442
        %v2555 = vpack.c.b16 %v2450, %v2443
        %v2556 = vpack.c.b16 %v2451, %v2444
        %v2557 = vpack.c.b16 %v2452, %v2445
        %v2558 = vpack.c.b16 %v2453, %v2446
        %v2559 = vpack.c.b16 %v2454, %v2447
        %v2560 = vpack.c.b16 %v2455, %v2448
        %v2561 = vpack.c.b16 %v2463, %v2456
        %v2562 = vpack.c.b16 %v2464, %v2457
        %v2563 = vpack.c.b16 %v2465, %v2458
        %v2564 = vpack.c.b16 %v2466, %v2459
        %v2565 = vpack.c.b16 %v2467, %v2460
        %v2566 = vpack.c.b16 %v2468, %v2461
        %v2567 = vpack.c.b16 %v2469, %v2462
        %v2568 = vpack.c.b16 %v2477, %v2470
        %v2569 = vpack.c.b16 %v2478, %v2471
        %v2570 = vpack.c.b16 %v2479, %v2472
        %v2571 = vpack.c.b16 %v2480, %v2473
        %v2572 = vpack.c.b16 %v2481, %v2474
        %v2573 = vpack.c.b16 %v2482, %v2475
        %v2574 = vpack.c.b16 %v2483, %v2476
        %v2575 = vpack.c.b16 %v2491, %v2484
        %v2576 = vpack.c.b16 %v2492, %v2485
        %v2577 = vpack.c.b16 %v2493, %v2486
        %v2578 = vpack.c.b16 %v2494, %v2487
        %v2579 = vpack.c.b16 %v2495, %v2488
        %v2580 = vpack.c.b16 %v2496, %v2489
        %v2581 = vpack.c.b16 %v2497, %v2490
        %v2582 = vpack.c.b16 %v2505, %v2498
        %v2583 = vpack.c.b16 %v2506, %v2499
        %v2584 = vpack.c.b16 %v2507, %v2500
        %v2585 = vpack.c.b16 %v2508, %v2501
        %v2586 = vpack.c.b16 %v2509, %v2502
        %v2587 = vpack.c.b16 %v2510, %v2503
        %v2588 = vpack.c.b16 %v2511, %v2504
        %v2589 = vpack.c.b16 %v2519, %v2512
        %v2590 = vpack.c.b16 %v2520, %v2513
        %v2591 = vpack.c.b16 %v2521, %v2514
        %v2592 = vpack.c.b16 %v2522, %v2515
        %v2593 = vpack.c.b16 %v2523, %v2516
        %v2594 = vpack.c.b16 %v2524, %v2517
        %v2595 = vpack.c.b16 %v2525, %v2518
        %v2596 = vpack.c.b16 %v2533, %v2526
        %v2597 = vpack.c.b16 %v2534, %v2527
        %v2598 = vpack.c.b16 %v2535, %v2528
        %v2599 = vpack.c.b16 %v2536, %v2529
        %v2600 = vpack.c.b16 %v2537, %v2530
        %v2601 = vpack.c.b16 %v2538, %v2531
        %v2602 = vpack.c.b16 %v2539, %v2532
        %v2603 = vpack.c.b16 %v2547, %v2540
        %v2604 = vpack.c.b16 %v2548, %v2541
        %v2605 = vpack.c.b16 %v2549, %v2542
        %v2606 = vpack.c.b16 %v2550, %v2543
        %v2607 = vpack.c.b16 %v2551, %v2544
        %v2608 = vpack.c.b16 %v2552, %v2545
        %v2609 = vpack.c.b16 %v2553, %v2546
        %2666 = vmatpush.bf16.msra.mxu0 %v2603
        %2667 = vmatpush.bf16.msra.mxu0 %v2596
        %2668 = vmatpush.bf16.msra.mxu0 %v2589
        %2669 = vmatpush.bf16.msra.mxu0 %v2582
        %2670 = vmatpush.bf16.msra.mxu0 %v2575
        %2671 = vmatpush.bf16.msra.mxu0 %v2568
        %2672 = vmatpush.bf16.msra.mxu0 %v2561
        %2673 = vmatpush.bf16.msra.mxu0 %v2554
        %2674 = vmatmul.bf16.gmra.mxu0 %v2290
        %v2675 = vpop.f32.mrf.mxu0
        %v2676 = vadd.f32 %v2364, %v2675
        %v2677 = vpop.f32.mrf.mxu0
        %v2678 = vadd.f32 %v2364, %v2677
        %2679 = vmatmul.bf16.gmra.mxu0 %v2291
        %v2680 = vpop.f32.mrf.mxu0
        %v2681 = vadd.f32 %v2364, %v2680
        %v2682 = vpop.f32.mrf.mxu0
        %v2683 = vadd.f32 %v2364, %v2682
        %2684 = vmatmul.bf16.gmra.mxu0 %v2292
        %v2685 = vpop.f32.mrf.mxu0
        %v2686 = vadd.f32 %v2364, %v2685
        %v2687 = vpop.f32.mrf.mxu0
        %v2688 = vadd.f32 %v2364, %v2687
        %2689 = vmatmul.bf16.gmra.mxu0 %v2293
        %v2690 = vpop.f32.mrf.mxu0
        %v2691 = vadd.f32 %v2364, %v2690
        %v2692 = vpop.f32.mrf.mxu0
        %v2693 = vadd.f32 %v2364, %v2692
        %2694 = vmatmul.bf16.gmra.mxu0 %v2294
        %v2695 = vpop.f32.mrf.mxu0
        %v2696 = vadd.f32 %v2364, %v2695
        %v2697 = vpop.f32.mrf.mxu0
        %v2698 = vadd.f32 %v2364, %v2697
        %2699 = vmatmul.bf16.gmra.mxu0 %v2295
        %v2700 = vpop.f32.mrf.mxu0
        %v2701 = vadd.f32 %v2364, %v2700
        %v2702 = vpop.f32.mrf.mxu0
        %v2703 = vadd.f32 %v2364, %v2702
        %2704 = vmatmul.bf16.gmra.mxu0 %v2296
        %v2705 = vpop.f32.mrf.mxu0
        %v2706 = vadd.f32 %v2364, %v2705
        %v2707 = vpop.f32.mrf.mxu0
        %v2708 = vadd.f32 %v2364, %v2707
        %2709 = vmatmul.bf16.gmra.mxu0 %v2297
        %v2710 = vpop.f32.mrf.mxu0
        %v2711 = vadd.f32 %v2364, %v2710
        %v2712 = vpop.f32.mrf.mxu0
        %v2713 = vadd.f32 %v2364, %v2712
        %2714 = vdwg.mxu0
        %2715 = vmatpush.bf16.msra.mxu0 %v2604
        %2716 = vmatpush.bf16.msra.mxu0 %v2597
        %2717 = vmatpush.bf16.msra.mxu0 %v2590
        %2718 = vmatpush.bf16.msra.mxu0 %v2583
        %2719 = vmatpush.bf16.msra.mxu0 %v2576
        %2720 = vmatpush.bf16.msra.mxu0 %v2569
        %2721 = vmatpush.bf16.msra.mxu0 %v2562
        %2722 = vmatpush.bf16.msra.mxu0 %v2555
        %2723 = vmatmul.bf16.gmra.mxu0 %v2290
        %v2724 = vpop.f32.mrf.mxu0
        %v2725 = vadd.f32 %v2365, %v2724
        %v2726 = vpop.f32.mrf.mxu0
        %v2727 = vadd.f32 %v2365, %v2726
        %2728 = vmatmul.bf16.gmra.mxu0 %v2291
        %v2729 = vpop.f32.mrf.mxu0
        %v2730 = vadd.f32 %v2365, %v2729
        %v2731 = vpop.f32.mrf.mxu0
        %v2732 = vadd.f32 %v2365, %v2731
        %2733 = vmatmul.bf16.gmra.mxu0 %v2292
        %v2734 = vpop.f32.mrf.mxu0
        %v2735 = vadd.f32 %v2365, %v2734
        %v2736 = vpop.f32.mrf.mxu0
        %v2737 = vadd.f32 %v2365, %v2736
        %2738 = vmatmul.bf16.gmra.mxu0 %v2293
        %v2739 = vpop.f32.mrf.mxu0
        %v2740 = vadd.f32 %v2365, %v2739
        %v2741 = vpop.f32.mrf.mxu0
        %v2742 = vadd.f32 %v2365, %v2741
        %2743 = vmatmul.bf16.gmra.mxu0 %v2294
        %v2744 = vpop.f32.mrf.mxu0
        %v2745 = vadd.f32 %v2365, %v2744
        %v2746 = vpop.f32.mrf.mxu0
        %v2747 = vadd.f32 %v2365, %v2746
        %2748 = vmatmul.bf16.gmra.mxu0 %v2295
        %v2749 = vpop.f32.mrf.mxu0
        %v2750 = vadd.f32 %v2365, %v2749
        %v2751 = vpop.f32.mrf.mxu0
        %v2752 = vadd.f32 %v2365, %v2751
        %2753 = vmatmul.bf16.gmra.mxu0 %v2296
        %v2754 = vpop.f32.mrf.mxu0
        %v2755 = vadd.f32 %v2365, %v2754
        %v2756 = vpop.f32.mrf.mxu0
        %v2757 = vadd.f32 %v2365, %v2756
        %2758 = vmatmul.bf16.gmra.mxu0 %v2297
        %v2759 = vpop.f32.mrf.mxu0
        %v2760 = vadd.f32 %v2365, %v2759
        %v2761 = vpop.f32.mrf.mxu0
        %v2762 = vadd.f32 %v2365, %v2761
        %2763 = vdwg.mxu0
        %2764 = vmatpush.bf16.msra.mxu0 %v2605
        %2765 = vmatpush.bf16.msra.mxu0 %v2598
        %2766 = vmatpush.bf16.msra.mxu0 %v2591
        %2767 = vmatpush.bf16.msra.mxu0 %v2584
        %2768 = vmatpush.bf16.msra.mxu0 %v2577
        %2769 = vmatpush.bf16.msra.mxu0 %v2570
        %2770 = vmatpush.bf16.msra.mxu0 %v2563
        %2771 = vmatpush.bf16.msra.mxu0 %v2556
        %2772 = vmatmul.bf16.gmra.mxu0 %v2290
        %v2773 = vpop.f32.mrf.mxu0
        %v2774 = vadd.f32 %v2366, %v2773
        %v2775 = vpop.f32.mrf.mxu0
        %v2776 = vadd.f32 %v2366, %v2775
        %2777 = vmatmul.bf16.gmra.mxu0 %v2291
        %v2778 = vpop.f32.mrf.mxu0
        %v2779 = vadd.f32 %v2366, %v2778
        %v2780 = vpop.f32.mrf.mxu0
        %v2781 = vadd.f32 %v2366, %v2780
        %2782 = vmatmul.bf16.gmra.mxu0 %v2292
        %v2783 = vpop.f32.mrf.mxu0
        %v2784 = vadd.f32 %v2366, %v2783
        %v2785 = vpop.f32.mrf.mxu0
        %v2786 = vadd.f32 %v2366, %v2785
        %2787 = vmatmul.bf16.gmra.mxu0 %v2293
        %v2788 = vpop.f32.mrf.mxu0
        %v2789 = vadd.f32 %v2366, %v2788
        %v2790 = vpop.f32.mrf.mxu0
        %v2791 = vadd.f32 %v2366, %v2790
        %2792 = vmatmul.bf16.gmra.mxu0 %v2294
        %v2793 = vpop.f32.mrf.mxu0
        %v2794 = vadd.f32 %v2366, %v2793
        %v2795 = vpop.f32.mrf.mxu0
        %v2796 = vadd.f32 %v2366, %v2795
        %2797 = vmatmul.bf16.gmra.mxu0 %v2295
        %v2798 = vpop.f32.mrf.mxu0
        %v2799 = vadd.f32 %v2366, %v2798
        %v2800 = vpop.f32.mrf.mxu0
        %v2801 = vadd.f32 %v2366, %v2800
        %2802 = vmatmul.bf16.gmra.mxu0 %v2296
        %v2803 = vpop.f32.mrf.mxu0
        %v2804 = vadd.f32 %v2366, %v2803
        %v2805 = vpop.f32.mrf.mxu0
        %v2806 = vadd.f32 %v2366, %v2805
        %2807 = vmatmul.bf16.gmra.mxu0 %v2297
        %v2808 = vpop.f32.mrf.mxu0
        %v2809 = vadd.f32 %v2366, %v2808
        %v2810 = vpop.f32.mrf.mxu0
        %v2811 = vadd.f32 %v2366, %v2810
        %2812 = vdwg.mxu0
        %2813 = vmatpush.bf16.msra.mxu0 %v2606
        %2814 = vmatpush.bf16.msra.mxu0 %v2599
        %2815 = vmatpush.bf16.msra.mxu0 %v2592
        %2816 = vmatpush.bf16.msra.mxu0 %v2585
        %2817 = vmatpush.bf16.msra.mxu0 %v2578
        %2818 = vmatpush.bf16.msra.mxu0 %v2571
        %2819 = vmatpush.bf16.msra.mxu0 %v2564
        %2820 = vmatpush.bf16.msra.mxu0 %v2557
        %2821 = vmatmul.bf16.gmra.mxu0 %v2290
        %v2822 = vpop.f32.mrf.mxu0
        %v2823 = vadd.f32 %v2367, %v2822
        %v2824 = vpop.f32.mrf.mxu0
        %v2825 = vadd.f32 %v2367, %v2824
        %2826 = vmatmul.bf16.gmra.mxu0 %v2291
        %v2827 = vpop.f32.mrf.mxu0
        %v2828 = vadd.f32 %v2367, %v2827
        %v2829 = vpop.f32.mrf.mxu0
        %v2830 = vadd.f32 %v2367, %v2829
        %2831 = vmatmul.bf16.gmra.mxu0 %v2292
        %v2832 = vpop.f32.mrf.mxu0
        %v2833 = vadd.f32 %v2367, %v2832
        %v2834 = vpop.f32.mrf.mxu0
        %v2835 = vadd.f32 %v2367, %v2834
        %2836 = vmatmul.bf16.gmra.mxu0 %v2293
        %v2837 = vpop.f32.mrf.mxu0
        %v2838 = vadd.f32 %v2367, %v2837
        %v2839 = vpop.f32.mrf.mxu0
        %v2840 = vadd.f32 %v2367, %v2839
        %2841 = vmatmul.bf16.gmra.mxu0 %v2294
        %v2842 = vpop.f32.mrf.mxu0
        %v2843 = vadd.f32 %v2367, %v2842
        %v2844 = vpop.f32.mrf.mxu0
        %v2845 = vadd.f32 %v2367, %v2844
        %2846 = vmatmul.bf16.gmra.mxu0 %v2295
        %v2847 = vpop.f32.mrf.mxu0
        %v2848 = vadd.f32 %v2367, %v2847
        %v2849 = vpop.f32.mrf.mxu0
        %v2850 = vadd.f32 %v2367, %v2849
        %2851 = vmatmul.bf16.gmra.mxu0 %v2296
        %v2852 = vpop.f32.mrf.mxu0
        %v2853 = vadd.f32 %v2367, %v2852
        %v2854 = vpop.f32.mrf.mxu0
        %v2855 = vadd.f32 %v2367, %v2854
        %2856 = vmatmul.bf16.gmra.mxu0 %v2297
        %v2857 = vpop.f32.mrf.mxu0
        %v2858 = vadd.f32 %v2367, %v2857
        %v2859 = vpop.f32.mrf.mxu0
        %v2860 = vadd.f32 %v2367, %v2859
        %2861 = vdwg.mxu0
        %2862 = vmatpush.bf16.msra.mxu0 %v2607
        %2863 = vmatpush.bf16.msra.mxu0 %v2600
        %2864 = vmatpush.bf16.msra.mxu0 %v2593
        %2865 = vmatpush.bf16.msra.mxu0 %v2586
        %2866 = vmatpush.bf16.msra.mxu0 %v2579
        %2867 = vmatpush.bf16.msra.mxu0 %v2572
        %2868 = vmatpush.bf16.msra.mxu0 %v2565
        %2869 = vmatpush.bf16.msra.mxu0 %v2558
        %2870 = vmatmul.bf16.gmra.mxu0 %v2290
        %v2871 = vpop.f32.mrf.mxu0
        %v2872 = vadd.f32 %v2368, %v2871
        %v2873 = vpop.f32.mrf.mxu0
        %v2874 = vadd.f32 %v2368, %v2873
        %2875 = vmatmul.bf16.gmra.mxu0 %v2291
        %v2876 = vpop.f32.mrf.mxu0
        %v2877 = vadd.f32 %v2368, %v2876
        %v2878 = vpop.f32.mrf.mxu0
        %v2879 = vadd.f32 %v2368, %v2878
        %2880 = vmatmul.bf16.gmra.mxu0 %v2292
        %v2881 = vpop.f32.mrf.mxu0
        %v2882 = vadd.f32 %v2368, %v2881
        %v2883 = vpop.f32.mrf.mxu0
        %v2884 = vadd.f32 %v2368, %v2883
        %2885 = vmatmul.bf16.gmra.mxu0 %v2293
        %v2886 = vpop.f32.mrf.mxu0
        %v2887 = vadd.f32 %v2368, %v2886
        %v2888 = vpop.f32.mrf.mxu0
        %v2889 = vadd.f32 %v2368, %v2888
        %2890 = vmatmul.bf16.gmra.mxu0 %v2294
        %v2891 = vpop.f32.mrf.mxu0
        %v2892 = vadd.f32 %v2368, %v2891
        %v2893 = vpop.f32.mrf.mxu0
        %v2894 = vadd.f32 %v2368, %v2893
        %2895 = vmatmul.bf16.gmra.mxu0 %v2295
        %v2896 = vpop.f32.mrf.mxu0
        %v2897 = vadd.f32 %v2368, %v2896
        %v2898 = vpop.f32.mrf.mxu0
        %v2899 = vadd.f32 %v2368, %v2898
        %2900 = vmatmul.bf16.gmra.mxu0 %v2296
        %v2901 = vpop.f32.mrf.mxu0
        %v2902 = vadd.f32 %v2368, %v2901
        %v2903 = vpop.f32.mrf.mxu0
        %v2904 = vadd.f32 %v2368, %v2903
        %2905 = vmatmul.bf16.gmra.mxu0 %v2297
        %v2906 = vpop.f32.mrf.mxu0
        %v2907 = vadd.f32 %v2368, %v2906
        %v2908 = vpop.f32.mrf.mxu0
        %v2909 = vadd.f32 %v2368, %v2908
        %2910 = vdwg.mxu0
        %2911 = vmatpush.bf16.msra.mxu0 %v2608
        %2912 = vmatpush.bf16.msra.mxu0 %v2601
        %2913 = vmatpush.bf16.msra.mxu0 %v2594
        %2914 = vmatpush.bf16.msra.mxu0 %v2587
        %2915 = vmatpush.bf16.msra.mxu0 %v2580
        %2916 = vmatpush.bf16.msra.mxu0 %v2573
        %2917 = vmatpush.bf16.msra.mxu0 %v2566
        %2918 = vmatpush.bf16.msra.mxu0 %v2559
        %2919 = vmatmul.bf16.gmra.mxu0 %v2290
        %v2920 = vpop.f32.mrf.mxu0
        %v2921 = vadd.f32 %v2369, %v2920
        %v2922 = vpop.f32.mrf.mxu0
        %v2923 = vadd.f32 %v2369, %v2922
        %2924 = vmatmul.bf16.gmra.mxu0 %v2291
        %v2925 = vpop.f32.mrf.mxu0
        %v2926 = vadd.f32 %v2369, %v2925
        %v2927 = vpop.f32.mrf.mxu0
        %v2928 = vadd.f32 %v2369, %v2927
        %2929 = vmatmul.bf16.gmra.mxu0 %v2292
        %v2930 = vpop.f32.mrf.mxu0
        %v2931 = vadd.f32 %v2369, %v2930
        %v2932 = vpop.f32.mrf.mxu0
        %v2933 = vadd.f32 %v2369, %v2932
        %2934 = vmatmul.bf16.gmra.mxu0 %v2293
        %v2935 = vpop.f32.mrf.mxu0
        %v2936 = vadd.f32 %v2369, %v2935
        %v2937 = vpop.f32.mrf.mxu0
        %v2938 = vadd.f32 %v2369, %v2937
        %2939 = vmatmul.bf16.gmra.mxu0 %v2294
        %v2940 = vpop.f32.mrf.mxu0
        %v2941 = vadd.f32 %v2369, %v2940
        %v2942 = vpop.f32.mrf.mxu0
        %v2943 = vadd.f32 %v2369, %v2942
        %2944 = vmatmul.bf16.gmra.mxu0 %v2295
        %v2945 = vpop.f32.mrf.mxu0
        %v2946 = vadd.f32 %v2369, %v2945
        %v2947 = vpop.f32.mrf.mxu0
        %v2948 = vadd.f32 %v2369, %v2947
        %2949 = vmatmul.bf16.gmra.mxu0 %v2296
        %v2950 = vpop.f32.mrf.mxu0
        %v2951 = vadd.f32 %v2369, %v2950
        %v2952 = vpop.f32.mrf.mxu0
        %v2953 = vadd.f32 %v2369, %v2952
        %2954 = vmatmul.bf16.gmra.mxu0 %v2297
        %v2955 = vpop.f32.mrf.mxu0
        %v2956 = vadd.f32 %v2369, %v2955
        %v2957 = vpop.f32.mrf.mxu0
        %v2958 = vadd.f32 %v2369, %v2957
        %2959 = vdwg.mxu0
        %2960 = vmatpush.bf16.msra.mxu0 %v2609
        %2961 = vmatpush.bf16.msra.mxu0 %v2602
        %2962 = vmatpush.bf16.msra.mxu0 %v2595
        %2963 = vmatpush.bf16.msra.mxu0 %v2588
        %2964 = vmatpush.bf16.msra.mxu0 %v2581
        %2965 = vmatpush.bf16.msra.mxu0 %v2574
        %2966 = vmatpush.bf16.msra.mxu0 %v2567
        %2967 = vmatpush.bf16.msra.mxu0 %v2560
        %2968 = vmatmul.bf16.gmra.mxu0 %v2290
        %v2969 = vpop.f32.mrf.mxu0
        %v2970 = vadd.f32 %v2370, %v2969
        %v2971 = vpop.f32.mrf.mxu0
        %v2972 = vadd.f32 %v2370, %v2971
        %2973 = vmatmul.bf16.gmra.mxu0 %v2291
        %v2974 = vpop.f32.mrf.mxu0
        %v2975 = vadd.f32 %v2370, %v2974
        %v2976 = vpop.f32.mrf.mxu0
        %v2977 = vadd.f32 %v2370, %v2976
        %2978 = vmatmul.bf16.gmra.mxu0 %v2292
        %v2979 = vpop.f32.mrf.mxu0
        %v2980 = vadd.f32 %v2370, %v2979
        %v2981 = vpop.f32.mrf.mxu0
        %v2982 = vadd.f32 %v2370, %v2981
        %2983 = vmatmul.bf16.gmra.mxu0 %v2293
        %v2984 = vpop.f32.mrf.mxu0
        %v2985 = vadd.f32 %v2370, %v2984
        %v2986 = vpop.f32.mrf.mxu0
        %v2987 = vadd.f32 %v2370, %v2986
        %2988 = vmatmul.bf16.gmra.mxu0 %v2294
        %v2989 = vpop.f32.mrf.mxu0
        %v2990 = vadd.f32 %v2370, %v2989
        %v2991 = vpop.f32.mrf.mxu0
        %v2992 = vadd.f32 %v2370, %v2991
        %2993 = vmatmul.bf16.gmra.mxu0 %v2295
        %v2994 = vpop.f32.mrf.mxu0
        %v2995 = vadd.f32 %v2370, %v2994
        %v2996 = vpop.f32.mrf.mxu0
        %v2997 = vadd.f32 %v2370, %v2996
        %2998 = vmatmul.bf16.gmra.mxu0 %v2296
        %v2999 = vpop.f32.mrf.mxu0
        %v3000 = vadd.f32 %v2370, %v2999
        %v3001 = vpop.f32.mrf.mxu0
        %v3002 = vadd.f32 %v2370, %v3001
        %3003 = vmatmul.bf16.gmra.mxu0 %v2297
        %v3004 = vpop.f32.mrf.mxu0
        %v3005 = vadd.f32 %v2370, %v3004
        %v3006 = vpop.f32.mrf.mxu0
        %v3007 = vadd.f32 %v2370, %v3006
        %3008 = vdwg.mxu0
        %v3009 = vtanh.pop %v2676
        %v3010 = vtanh.pop %v2725
        %v3011 = vtanh.pop %v2774
        %v3012 = vtanh.pop %v2823
        %v3013 = vtanh.pop %v2872
        %v3014 = vtanh.pop %v2921
        %v3015 = vtanh.pop %v2970
        %v3016 = vtanh.pop %v2678
        %v3017 = vtanh.pop %v2727
        %v3018 = vtanh.pop %v2776
        %v3019 = vtanh.pop %v2825
        %v3020 = vtanh.pop %v2874
        %v3021 = vtanh.pop %v2923
        %v3022 = vtanh.pop %v2972
        %v3023 = vtanh.pop %v2681
        %v3024 = vtanh.pop %v2730
        %v3025 = vtanh.pop %v2779
        %v3026 = vtanh.pop %v2828
        %v3027 = vtanh.pop %v2877
        %v3028 = vtanh.pop %v2926
        %v3029 = vtanh.pop %v2975
        %v3030 = vtanh.pop %v2683
        %v3031 = vtanh.pop %v2732
        %v3032 = vtanh.pop %v2781
        %v3033 = vtanh.pop %v2830
        %v3034 = vtanh.pop %v2879
        %v3035 = vtanh.pop %v2928
        %v3036 = vtanh.pop %v2977
        %v3037 = vtanh.pop %v2686
        %v3038 = vtanh.pop %v2735
        %v3039 = vtanh.pop %v2784
        %v3040 = vtanh.pop %v2833
        %v3041 = vtanh.pop %v2882
        %v3042 = vtanh.pop %v2931
        %v3043 = vtanh.pop %v2980
        %v3044 = vtanh.pop %v2688
        %v3045 = vtanh.pop %v2737
        %v3046 = vtanh.pop %v2786
        %v3047 = vtanh.pop %v2835
        %v3048 = vtanh.pop %v2884
        %v3049 = vtanh.pop %v2933
        %v3050 = vtanh.pop %v2982
        %v3051 = vtanh.pop %v2691
        %v3052 = vtanh.pop %v2740
        %v3053 = vtanh.pop %v2789
        %v3054 = vtanh.pop %v2838
        %v3055 = vtanh.pop %v2887
        %v3056 = vtanh.pop %v2936
        %v3057 = vtanh.pop %v2985
        %v3058 = vtanh.pop %v2693
        %v3059 = vtanh.pop %v2742
        %v3060 = vtanh.pop %v2791
        %v3061 = vtanh.pop %v2840
        %v3062 = vtanh.pop %v2889
        %v3063 = vtanh.pop %v2938
        %v3064 = vtanh.pop %v2987
        %v3065 = vtanh.pop %v2696
        %v3066 = vtanh.pop %v2745
        %v3067 = vtanh.pop %v2794
        %v3068 = vtanh.pop %v2843
        %v3069 = vtanh.pop %v2892
        %v3070 = vtanh.pop %v2941
        %v3071 = vtanh.pop %v2990
        %v3072 = vtanh.pop %v2698
        %v3073 = vtanh.pop %v2747
        %v3074 = vtanh.pop %v2796
        %v3075 = vtanh.pop %v2845
        %v3076 = vtanh.pop %v2894
        %v3077 = vtanh.pop %v2943
        %v3078 = vtanh.pop %v2992
        %v3079 = vtanh.pop %v2701
        %v3080 = vtanh.pop %v2750
        %v3081 = vtanh.pop %v2799
        %v3082 = vtanh.pop %v2848
        %v3083 = vtanh.pop %v2897
        %v3084 = vtanh.pop %v2946
        %v3085 = vtanh.pop %v2995
        %v3086 = vtanh.pop %v2703
        %v3087 = vtanh.pop %v2752
        %v3088 = vtanh.pop %v2801
        %v3089 = vtanh.pop %v2850
        %v3090 = vtanh.pop %v2899
        %v3091 = vtanh.pop %v2948
        %v3092 = vtanh.pop %v2997
        %v3093 = vtanh.pop %v2706
        %v3094 = vtanh.pop %v2755
        %v3095 = vtanh.pop %v2804
        %v3096 = vtanh.pop %v2853
        %v3097 = vtanh.pop %v2902
        %v3098 = vtanh.pop %v2951
        %v3099 = vtanh.pop %v3000
        %v3100 = vtanh.pop %v2708
        %v3101 = vtanh.pop %v2757
        %v3102 = vtanh.pop %v2806
        %v3103 = vtanh.pop %v2855
        %v3104 = vtanh.pop %v2904
        %v3105 = vtanh.pop %v2953
        %v3106 = vtanh.pop %v3002
        %v3107 = vtanh.pop %v2711
        %v3108 = vtanh.pop %v2760
        %v3109 = vtanh.pop %v2809
        %v3110 = vtanh.pop %v2858
        %v3111 = vtanh.pop %v2907
        %v3112 = vtanh.pop %v2956
        %v3113 = vtanh.pop %v3005
        %v3114 = vtanh.pop %v2713
        %v3115 = vtanh.pop %v2762
        %v3116 = vtanh.pop %v2811
        %v3117 = vtanh.pop %v2860
        %v3118 = vtanh.pop %v2909
        %v3119 = vtanh.pop %v2958
        %v3120 = vtanh.pop %v3007
        %3121 = vst [vmem:[%s480] sm:$0xff] %v3009
        %3122 = vst [vmem:[%s480 + $0x8] sm:$0xff] %v3010
        %3123 = vst [vmem:[%s480 + $0x10] sm:$0xff] %v3011
        %3124 = vst [vmem:[%s480 + $0x18] sm:$0xff] %v3012
        %3125 = vst [vmem:[%s480 + $0x20] sm:$0xff] %v3013
        %3126 = vst [vmem:[%s480 + $0x28] sm:$0xff] %v3014
        %3127 = vst.msk [vmem:[%s480 + $0x30] sm:$0xff] %vm1046, %v3015
        %3128 = vst [vmem:[%s480 + $0x38] sm:$0xff] %v3016
        %3129 = vst [vmem:[%s480 + $0x40] sm:$0xff] %v3017
        %3130 = vst [vmem:[%s480 + $0x48] sm:$0xff] %v3018
        %3131 = vst [vmem:[%s480 + $0x50] sm:$0xff] %v3019
        %3132 = vst [vmem:[%s480 + $0x58] sm:$0xff] %v3020
        %3133 = vst [vmem:[%s480 + $0x60] sm:$0xff] %v3021
        %3134 = vst.msk [vmem:[%s480 + $0x68] sm:$0xff] %vm1046, %v3022
        %3135 = vst [vmem:[%s480 + $0x70] sm:$0xff] %v3023
        %3136 = vst [vmem:[%s480 + $0x78] sm:$0xff] %v3024
        %3137 = vst [vmem:[%s480 + $0x80] sm:$0xff] %v3025
        %3138 = vst [vmem:[%s480 + $0x88] sm:$0xff] %v3026
        %3139 = vst [vmem:[%s480 + $0x90] sm:$0xff] %v3027
        %3140 = vst [vmem:[%s480 + $0x98] sm:$0xff] %v3028
        %3141 = vst.msk [vmem:[%s480 + $0xa0] sm:$0xff] %vm1046, %v3029
        %3142 = vst [vmem:[%s480 + $0xa8] sm:$0xff] %v3030
        %3143 = vst [vmem:[%s480 + $0xb0] sm:$0xff] %v3031
        %3144 = vst [vmem:[%s480 + $0xb8] sm:$0xff] %v3032
        %3145 = vst [vmem:[%s480 + $0xc0] sm:$0xff] %v3033
        %3146 = vst [vmem:[%s480 + $0xc8] sm:$0xff] %v3034
        %3147 = vst [vmem:[%s480 + $0xd0] sm:$0xff] %v3035
        %3148 = vst.msk [vmem:[%s480 + $0xd8] sm:$0xff] %vm1046, %v3036
        %3149 = vst [vmem:[%s480 + $0xe0] sm:$0xff] %v3037
        %3150 = vst [vmem:[%s480 + $0xe8] sm:$0xff] %v3038
        %3151 = vst [vmem:[%s480 + $0xf0] sm:$0xff] %v3039
        %3152 = vst [vmem:[%s480 + $0xf8] sm:$0xff] %v3040
        %3153 = vst [vmem:[%s480 + $0x100] sm:$0xff] %v3041
        %3154 = vst [vmem:[%s480 + $0x108] sm:$0xff] %v3042
        %3155 = vst.msk [vmem:[%s480 + $0x110] sm:$0xff] %vm1046, %v3043
        %3156 = vst [vmem:[%s480 + $0x118] sm:$0xff] %v3044
        %3157 = vst [vmem:[%s480 + $0x120] sm:$0xff] %v3045
        %3158 = vst [vmem:[%s480 + $0x128] sm:$0xff] %v3046
        %3159 = vst [vmem:[%s480 + $0x130] sm:$0xff] %v3047
        %3160 = vst [vmem:[%s480 + $0x138] sm:$0xff] %v3048
        %3161 = vst [vmem:[%s480 + $0x140] sm:$0xff] %v3049
        %3162 = vst.msk [vmem:[%s480 + $0x148] sm:$0xff] %vm1046, %v3050
        %3163 = vst [vmem:[%s480 + $0x150] sm:$0xff] %v3051
        %3164 = vst [vmem:[%s480 + $0x158] sm:$0xff] %v3052
        %3165 = vst [vmem:[%s480 + $0x160] sm:$0xff] %v3053
        %3166 = vst [vmem:[%s480 + $0x168] sm:$0xff] %v3054
        %3167 = vst [vmem:[%s480 + $0x170] sm:$0xff] %v3055
        %3168 = vst [vmem:[%s480 + $0x178] sm:$0xff] %v3056
        %3169 = vst.msk [vmem:[%s480 + $0x180] sm:$0xff] %vm1046, %v3057
        %3170 = vst [vmem:[%s480 + $0x188] sm:$0xff] %v3058
        %3171 = vst [vmem:[%s480 + $0x190] sm:$0xff] %v3059
        %3172 = vst [vmem:[%s480 + $0x198] sm:$0xff] %v3060
        %3173 = vst [vmem:[%s480 + $0x1a0] sm:$0xff] %v3061
        %3174 = vst [vmem:[%s480 + $0x1a8] sm:$0xff] %v3062
        %3175 = vst [vmem:[%s480 + $0x1b0] sm:$0xff] %v3063
        %3176 = vst.msk [vmem:[%s480 + $0x1b8] sm:$0xff] %vm1046, %v3064
        %3177 = vst [vmem:[%s480 + $0x1c0] sm:$0xff] %v3065
        %3178 = vst [vmem:[%s480 + $0x1c8] sm:$0xff] %v3066
        %3179 = vst [vmem:[%s480 + $0x1d0] sm:$0xff] %v3067
        %3180 = vst [vmem:[%s480 + $0x1d8] sm:$0xff] %v3068
        %3181 = vst [vmem:[%s480 + $0x1e0] sm:$0xff] %v3069
        %3182 = vst [vmem:[%s480 + $0x1e8] sm:$0xff] %v3070
        %3183 = vst.msk [vmem:[%s480 + $0x1f0] sm:$0xff] %vm1046, %v3071
        %3184 = vst [vmem:[%s480 + $0x1f8] sm:$0xff] %v3072
        %3185 = vst [vmem:[%s480 + $0x200] sm:$0xff] %v3073
        %3186 = vst [vmem:[%s480 + $0x208] sm:$0xff] %v3074
        %3187 = vst [vmem:[%s480 + $0x210] sm:$0xff] %v3075
        %3188 = vst [vmem:[%s480 + $0x218] sm:$0xff] %v3076
        %3189 = vst [vmem:[%s480 + $0x220] sm:$0xff] %v3077
        %3190 = vst.msk [vmem:[%s480 + $0x228] sm:$0xff] %vm1046, %v3078
        %3191 = vst [vmem:[%s480 + $0x230] sm:$0xff] %v3079
        %3192 = vst [vmem:[%s480 + $0x238] sm:$0xff] %v3080
        %3193 = vst [vmem:[%s480 + $0x240] sm:$0xff] %v3081
        %3194 = vst [vmem:[%s480 + $0x248] sm:$0xff] %v3082
        %3195 = vst [vmem:[%s480 + $0x250] sm:$0xff] %v3083
        %3196 = vst [vmem:[%s480 + $0x258] sm:$0xff] %v3084
        %3197 = vst.msk [vmem:[%s480 + $0x260] sm:$0xff] %vm1046, %v3085
        %3198 = vst [vmem:[%s480 + $0x268] sm:$0xff] %v3086
        %3199 = vst [vmem:[%s480 + $0x270] sm:$0xff] %v3087
        %3200 = vst [vmem:[%s480 + $0x278] sm:$0xff] %v3088
        %3201 = vst [vmem:[%s480 + $0x280] sm:$0xff] %v3089
        %3202 = vst [vmem:[%s480 + $0x288] sm:$0xff] %v3090
        %3203 = vst [vmem:[%s480 + $0x290] sm:$0xff] %v3091
        %3204 = vst.msk [vmem:[%s480 + $0x298] sm:$0xff] %vm1046, %v3092
        %3205 = vst [vmem:[%s480 + $0x2a0] sm:$0xff] %v3093
        %3206 = vst [vmem:[%s480 + $0x2a8] sm:$0xff] %v3094
        %3207 = vst [vmem:[%s480 + $0x2b0] sm:$0xff] %v3095
        %3208 = vst [vmem:[%s480 + $0x2b8] sm:$0xff] %v3096
        %3209 = vst [vmem:[%s480 + $0x2c0] sm:$0xff] %v3097
        %3210 = vst [vmem:[%s480 + $0x2c8] sm:$0xff] %v3098
        %3211 = vst.msk [vmem:[%s480 + $0x2d0] sm:$0xff] %vm1046, %v3099
        %3212 = vst [vmem:[%s480 + $0x2d8] sm:$0xff] %v3100
        %3213 = vst [vmem:[%s480 + $0x2e0] sm:$0xff] %v3101
        %3214 = vst [vmem:[%s480 + $0x2e8] sm:$0xff] %v3102
        %3215 = vst [vmem:[%s480 + $0x2f0] sm:$0xff] %v3103
        %3216 = vst [vmem:[%s480 + $0x2f8] sm:$0xff] %v3104
        %3217 = vst [vmem:[%s480 + $0x300] sm:$0xff] %v3105
        %3218 = vst.msk [vmem:[%s480 + $0x308] sm:$0xff] %vm1046, %v3106
        %3219 = vst [vmem:[%s480 + $0x310] sm:$0xff] %v3107
        %3220 = vst [vmem:[%s480 + $0x318] sm:$0xff] %v3108
        %3221 = vst [vmem:[%s480 + $0x320] sm:$0xff] %v3109
        %3222 = vst [vmem:[%s480 + $0x328] sm:$0xff] %v3110
        %3223 = vst [vmem:[%s480 + $0x330] sm:$0xff] %v3111
        %3224 = vst [vmem:[%s480 + $0x338] sm:$0xff] %v3112
        %3225 = vst.msk [vmem:[%s480 + $0x340] sm:$0xff] %vm1046, %v3113
        %3226 = vst [vmem:[%s480 + $0x348] sm:$0xff] %v3114
        %3227 = vst [vmem:[%s480 + $0x350] sm:$0xff] %v3115
        %3228 = vst [vmem:[%s480 + $0x358] sm:$0xff] %v3116
        %3229 = vst [vmem:[%s480 + $0x360] sm:$0xff] %v3117
        %3230 = vst [vmem:[%s480 + $0x368] sm:$0xff] %v3118
        %3231 = vst [vmem:[%s480 + $0x370] sm:$0xff] %v3119
        %3232 = vst.msk [vmem:[%s480 + $0x378] sm:$0xff] %vm1046, %v3120
        %s3233 = smul.u32 16, %s28
        %p3234 = scmp.lt.s32.totalorder %s3233, 31
        %s3235 = scalar_select %p3234, %s3233, 31
        %s3236 = smul.addr %s3235, 7
        %s3237 = smul.addr %s3236, 8
        %s3238 = scalar_lea.vmem %s12, %s3237
        %s3239 = sand.u32 %s324, 1
        %s3240 = scalar_lea.sflag [#allocation3], %s3239
        %s3241 = sand.u32 %s324, 1
        %s3242 = smul.addr %s3241, 128
        %s3243 = scalar_lea.vmem [#allocation2], %s3242
        // Predicated region
        $region69: #{tpu_custom_call.1} parent=67 // pred_check
          %p3244 = pneg %p308
        $region70: #{tpu_custom_call.1} parent=67 // pred_check_branch
          %3246 = sbr.rel (%p3244) target = $region72
        $region71: #{tpu_custom_call.1} parent=67 // pred_region
          %s3247 = smul.u32 16, %s28
        $region72: #{tpu_custom_call.1} parent=67 // pred_fallthru
          _
        // Predicated region
        $region73: #{tpu_custom_call.1} parent=67 // pred_check
          %p3248 = pneg %p334
        $region74: #{tpu_custom_call.1} parent=67 // pred_check_branch
          %3250 = sbr.rel (%p3248) target = $region76
        $region75: #{tpu_custom_call.1} parent=67 // pred_region
          %s3251 = smul.u32 16, %s28
          %3253 = vsyncadd %s3240, 0
          %s3254 = smul.addr %s3251, 8
          %s3255 = scalar_lea.hbm %s13, %s3254
          %s3256 = sshll.u32 %s3243, 4
          %s3257 = int_to_ptr.vmem [resolvable:$true] %s3256
          %s3258 = sshll.u32 %s3255, 4
          %s3259 = int_to_ptr.hbm [resolvable:$true] %s3258
          %3264 = dma.vmem_to_hbm [thread:$0]  %s3257, 2048, %s3259, %s3240, 128, 128, 8
        $region76: #{tpu_custom_call.1} parent=67 // pred_fallthru
          _
      $region68: #{tpu_custom_call.1} parent=5 // pred_fallthru
        _
      %p3265 = scmp.le.s32.totalorder 2, %s23
      // Predicated region
      $region77: #{tpu_custom_call.1} parent=5 // pred_check
        %p3266 = pneg %p3265
      $region78: #{tpu_custom_call.1} parent=5 // pred_check_branch
        %3268 = sbr.rel (%p3266) target = $region80
      $region79: #{tpu_custom_call.1} parent=5 // pred_region
        %s3269 = ssub.s32 %s23, 2
        // Predicated region
        $region81: #{tpu_custom_call.1} parent=79 // pred_check
          %p3270 = pneg %p314
        $region82: #{tpu_custom_call.1} parent=79 // pred_check_branch
          %3272 = sbr.rel (%p3270) target = $region84
        $region83: #{tpu_custom_call.1} parent=79 // pred_region
          %s3273 = smul.u32 16, %s29
          %p3274 = scmp.lt.s32.totalorder %s3273, 31
          %s3275 = scalar_select %p3274, %s3273, 31
          %s3276 = smul.addr %s3275, 7
          %s3277 = smul.addr %s3276, 8
          %s3278 = scalar_lea.vmem %s12, %s3277
        $region84: #{tpu_custom_call.1} parent=79 // pred_fallthru
          _
        // Predicated region
        $region85: #{tpu_custom_call.1} parent=79 // pred_check
          %p3279 = pneg %p340
        $region86: #{tpu_custom_call.1} parent=79 // pred_check_branch
          %3281 = sbr.rel (%p3279) target = $region88
        $region87: #{tpu_custom_call.1} parent=79 // pred_region
          %s3282 = sand.u32 %s325, 1
          %s3283 = scalar_lea.sflag [#allocation3], %s3282
          %s3284 = sand.u32 %s325, 1
          %s3285 = smul.addr %s3284, 128
          %s3286 = scalar_lea.vmem [#allocation2], %s3285
          %3288 = dma.done %s3283, 2048
        $region88: #{tpu_custom_call.1} parent=79 // pred_fallthru
          _
      $region80: #{tpu_custom_call.1} parent=5 // pred_fallthru
        _
    $region6: #{tpu_custom_call.1} parent=1 // loop_footer
      %s27 = sadd.s32 1, %s23
    $region7: #{tpu_custom_call.1} parent=1 // loop_footer_branch
      %22 = sbr.rel target = $region3
    $region8: #{tpu_custom_call.1} parent=1 // loop_exit
      _
    %3289 = vsyncpa [#allocation3], 1
    %s3290 = scalar_lea.sflag [#allocation3], 1
    %3291 = vsyncpa %s3290, 1

</llo_original>
